<compile_context>
chip_gen: v7x
topology: tpu7x:2x2x1
jax: 0.10.0
libtpu: 0.0.40
codegen_flags: <defaults>
</compile_context>

<pallas_src>
import functools

import jax
import jax.numpy as jnp
import numpy as np
from jax.experimental import pallas as pl
from jax.experimental.pallas import tpu as pltpu


def _vpu_linear(c, w, b):
    """Tiny-K linear (K == feat_per_channel, here 2) as VPU broadcast FMAs."""
    acc = c[:, 0:1] * w[0:1, :] + b
    for k in range(1, c.shape[1]):
        acc = acc + c[:, k:k + 1] * w[k:k + 1, :]
    return acc


def _inr_kernel(c0_ref, c1_ref,
                w_in0_ref, b_in0_ref, w_in1_ref, b_in1_ref,
                w_after_ref, b_after_ref,
                w_before_ref, b_before_ref,
                w_rgb_ref, b_rgb_ref,
                out_ref, *, n_after, n_before, mxu_bf16):
    tn = c0_ref.shape[0]

    def mm(h, w):
        if mxu_bf16:
            # bf16 MXU operands, f32 accumulate; all elementwise math stays f32
            # (keeps v5e's VPU on its native f32 path).
            return jnp.dot(h.astype(jnp.bfloat16), w.astype(jnp.bfloat16),
                           preferred_element_type=jnp.float32)
        return jnp.dot(h, w, preferred_element_type=jnp.float32)

    # Per-channel input layer (plain Linear, no activation) on the VPU.
    h0 = _vpu_linear(c0_ref[...], w_in0_ref[...], b_in0_ref[...])
    h1 = _vpu_linear(c1_ref[...], w_in1_ref[...], b_in1_ref[...])

    # Shared coord_net (ReLULayer = Linear + ReLU). Both channels use the same
    # weights, so stack them on the sublane axis and do one matmul per layer.
    h01 = jnp.concatenate([h0, h1], axis=0)              # (2*tn, hidden)
    for i in range(n_after):
        h01 = jnp.maximum(mm(h01, w_after_ref[i]) + b_after_ref[i], 0.0)

    # Fusion: elementwise product across channels (sublane-aligned slices).
    h = h01[:tn, :] * h01[tn:, :]
    # TODO(synk): R>1 reduce path (reshape(..., before_hidden, -1).sum(-1)) not
    # needed here since R == 1 and after_hidden == before_hidden.

    # "before" net: ReLULayer stack.
    for i in range(n_before):
        h = jnp.maximum(mm(h, w_before_ref[i]) + b_before_ref[i], 0.0)

    # Final rgb linear. w_rgb/b_rgb are zero-padded to 128 lanes in the wrapper,
    # so this store is lane-dense (no masked vst.msk).
    out_ref[...] = (mm(h, w_rgb_ref[...]) + b_rgb_ref[...]).astype(out_ref.dtype)


def _pick_tile(n):
    """Largest sublane-aligned tile keeping >=2 grid steps and <=12.5% padding."""
    for t in (4096, 2048, 1024, 512, 256, 128, 64, 32, 16, 8):
        if n >= 2 * t and (-n % t) * 8 <= n:
            return t
    return max(8, n + (-n % 8))   # single full-array step


def inr_forward_pallas(coord0, coord1, params, *, tn=None, mxu_bf16=False):
    """Runs the full INR forward on TPU via one pallas_call, tiled over points."""
    (w_in0, b_in0, w_in1, b_in1,
     w_after, b_after, w_before, b_before, w_rgb, b_rgb) = params

    n, f0 = coord0.shape
    f1 = coord1.shape[1]
    hidden = w_in0.shape[1]
    out_features = w_rgb.shape[1]
    n_after = w_after.shape[0]
    n_before = w_before.shape[0]

    if tn is None:
        tn = _pick_tile(n)
    # Zero-pad the point axis to a multiple of the tile (extra rows compute
    # garbage that is sliced off below).
    n_eff = n + (-n % tn)
    if n_eff != n:
        coord0 = jnp.pad(coord0, ((0, n_eff - n), (0, 0)))
        coord1 = jnp.pad(coord1, ((0, n_eff - n), (0, 0)))
    grid = (n_eff // tn,)

    # Lane-dense output: zero-pad the rgb layer to a multiple of 128 lanes so
    # the padded output tile (tn, out_pad) is written with full-lane stores.
    out_pad = out_features + (-out_features % 128)
    w_rgb_p = jnp.pad(w_rgb, ((0, 0), (0, out_pad - out_features)))
    b_rgb_p = jnp.pad(b_rgb, ((0, 0), (0, out_pad - out_features)))

    def full(shape):
        # whole-array block, constant index_map -> fetched once, kept resident.
        return pl.BlockSpec(shape, lambda i: (0,) * len(shape))

    in_specs = [
        pl.BlockSpec((tn, f0), lambda i: (i, 0)),     # coord channel 0
        pl.BlockSpec((tn, f1), lambda i: (i, 0)),     # coord channel 1
        full(w_in0.shape), full(b_in0.shape),
        full(w_in1.shape), full(b_in1.shape),
        full(w_after.shape), full(b_after.shape),
        full(w_before.shape), full(b_before.shape),
        full(w_rgb_p.shape), full(b_rgb_p.shape),
    ]
    out_specs = pl.BlockSpec((tn, out_pad), lambda i: (i, 0))

    kernel = functools.partial(_inr_kernel, n_after=n_after,
                               n_before=n_before, mxu_bf16=mxu_bf16)

    # Advisory cost hint for XLA's scheduler around the custom call.
    flops_per_pt = 2 * (f0 * hidden + f1 * hidden
                        + 2 * n_after * hidden * hidden
                        + n_before * hidden * hidden
                        + hidden * out_pad)
    bytes_w = 4 * sum(int(np.prod(a.shape)) for a in
                      (w_in0, b_in0, w_in1, b_in1, w_after, b_after,
                       w_before, b_before, w_rgb_p, b_rgb_p))
    cost = pl.CostEstimate(
        flops=flops_per_pt * n_eff,
        transcendentals=0,
        bytes_accessed=4 * (n_eff * (f0 + f1) + n_eff * out_pad) + bytes_w)

    out_padded = pl.pallas_call(
        kernel,
        out_shape=jax.ShapeDtypeStruct((n_eff, out_pad), jnp.float32),
        grid_spec=pltpu.PrefetchScalarGridSpec(
            num_scalar_prefetch=0,
            grid=grid,
            in_specs=in_specs,
            out_specs=out_specs,
        ),
        compiler_params=pltpu.CompilerParams(
            dimension_semantics=("parallel",)),
        cost_estimate=cost,
    )(coord0, coord1, w_in0, b_in0, w_in1, b_in1,
      w_after, b_after, w_before, b_before, w_rgb_p, b_rgb_p)

    # Slice off the lane padding and any row padding (cheap XLA slice).
    return out_padded[:n, :out_features]


def inr_forward_ref(coord0, coord1, params):
    """Pure-JAX reference mirroring the PyTorch module semantics."""
    (w_in0, b_in0, w_in1, b_in1,
     w_after, b_after, w_before, b_before, w_rgb, b_rgb) = params
    h0 = coord0 @ w_in0 + b_in0
    h1 = coord1 @ w_in1 + b_in1
    for i in range(w_after.shape[0]):
        h0 = jnp.maximum(h0 @ w_after[i] + b_after[i], 0.0)
        h1 = jnp.maximum(h1 @ w_after[i] + b_after[i], 0.0)
    h = h0 * h1
    for i in range(w_before.shape[0]):
        h = jnp.maximum(h @ w_before[i] + b_before[i], 0.0)
    h = h @ w_rgb + b_rgb
    return h.reshape(-1, h.shape[-1])


def init_params(key, *, feat_per_channel, hidden, after_layers, before_layers,
                out_features):
    """Deterministic PyTorch-Linear-style init (uniform +-1/sqrt(fan_in))."""
    keys = jax.random.split(key, 10)

    def lin(k, fan_in, shape):
        bound = 1.0 / np.sqrt(fan_in)
        return jax.random.uniform(k, shape, jnp.float32, -bound, bound)

    f0, f1 = feat_per_channel
    w_in0 = lin(keys[0], f0, (f0, hidden))
    b_in0 = lin(keys[1], f0, (1, hidden))
    w_in1 = lin(keys[2], f1, (f1, hidden))
    b_in1 = lin(keys[3], f1, (1, hidden))
    w_after = lin(keys[4], hidden, (after_layers, hidden, hidden))
    b_after = lin(keys[5], hidden, (after_layers, 1, hidden))
    w_before = lin(keys[6], hidden, (before_layers, hidden, hidden))
    b_before = lin(keys[7], hidden, (before_layers, 1, hidden))
    w_rgb = lin(keys[8], hidden, (hidden, out_features))
    b_rgb = lin(keys[9], hidden, (1, out_features))
    return (w_in0, b_in0, w_in1, b_in1,
            w_after, b_after, w_before, b_before, w_rgb, b_rgb)


if __name__ == "__main__":
    key = jax.random.PRNGKey(0)
    k_c0, k_c1, k_p = jax.random.split(key, 3)

    # Small shapes consistent with the module:
    #   feat_per_channel=[2, 2], hidden=32, after_hidden_layers=2,
    #   before_hidden_layers=2, out_features=3, R=1, N=1024 points per channel.
    N = 1024
    HIDDEN = 32
    AFTER_LAYERS = 2
    BEFORE_LAYERS = 2
    OUT_FEATURES = 3
    FEAT_PER_CHANNEL = (2, 2)

    coord0 = jax.random.uniform(k_c0, (N, FEAT_PER_CHANNEL[0]), jnp.float32,
                                -1.0, 1.0)
    coord1 = jax.random.uniform(k_c1, (N, FEAT_PER_CHANNEL[1]), jnp.float32,
                                -1.0, 1.0)
    params = init_params(k_p,
                         feat_per_channel=FEAT_PER_CHANNEL,
                         hidden=HIDDEN,
                         after_layers=AFTER_LAYERS,
                         before_layers=BEFORE_LAYERS,
                         out_features=OUT_FEATURES)

    # Auto tile -> 512 points/step, 2 grid steps (keeps both v7x TCs busy).
    out = inr_forward_pallas(coord0, coord1, params)
    out = jax.block_until_ready(out)

    ref = inr_forward_ref(coord0, coord1, params)
    np.testing.assert_allclose(np.asarray(out), np.asarray(ref),
                               rtol=1e-5, atol=1e-5)
    assert out.shape == (N, OUT_FEATURES)

    print("KERNEL_OK")
</pallas_src>

<mosaic_0001>
module attributes {stable_mosaic.version = 11 : i64} {
  func.func @_inr_kernel(%arg0: i32, %arg1: memref<512x2xf32, #tpu.memory_space<vmem>>, %arg2: memref<512x2xf32, #tpu.memory_space<vmem>>, %arg3: memref<2x32xf32, #tpu.memory_space<vmem>>, %arg4: memref<1x32xf32, #tpu.memory_space<vmem>>, %arg5: memref<2x32xf32, #tpu.memory_space<vmem>>, %arg6: memref<1x32xf32, #tpu.memory_space<vmem>>, %arg7: memref<2x32x32xf32, #tpu.memory_space<vmem>>, %arg8: memref<2x1x32xf32, #tpu.memory_space<vmem>>, %arg9: memref<2x32x32xf32, #tpu.memory_space<vmem>>, %arg10: memref<2x1x32xf32, #tpu.memory_space<vmem>>, %arg11: memref<32x128xf32, #tpu.memory_space<vmem>>, %arg12: memref<1x128xf32, #tpu.memory_space<vmem>>, %arg13: memref<512x128xf32, #tpu.memory_space<vmem>>) attributes {dimension_semantics = [#tpu.dimension_semantics<parallel>], iteration_bounds = array<i64: 2>, scalar_prefetch = 0 : i64, scratch_operands = 0 : i64, tpu.core_type = #tpu.core_type<tc>, window_params = [{transform_indices = @transform_0, window_bounds = array<i64: 512, 2>}, {transform_indices = @transform_1, window_bounds = array<i64: 512, 2>}, {pipeline_mode = #tpu.pipeline_mode<synchronous>, transform_indices = @transform_2, window_bounds = array<i64: 2, 32>}, {pipeline_mode = #tpu.pipeline_mode<synchronous>, transform_indices = @transform_3, window_bounds = array<i64: 1, 32>}, {pipeline_mode = #tpu.pipeline_mode<synchronous>, transform_indices = @transform_4, window_bounds = array<i64: 2, 32>}, {pipeline_mode = #tpu.pipeline_mode<synchronous>, transform_indices = @transform_5, window_bounds = array<i64: 1, 32>}, {pipeline_mode = #tpu.pipeline_mode<synchronous>, transform_indices = @transform_6, window_bounds = array<i64: 2, 32, 32>}, {pipeline_mode = #tpu.pipeline_mode<synchronous>, transform_indices = @transform_7, window_bounds = array<i64: 2, 1, 32>}, {pipeline_mode = #tpu.pipeline_mode<synchronous>, transform_indices = @transform_8, window_bounds = array<i64: 2, 32, 32>}, {pipeline_mode = #tpu.pipeline_mode<synchronous>, transform_indices = @transform_9, window_bounds = array<i64: 2, 1, 32>}, {pipeline_mode = #tpu.pipeline_mode<synchronous>, transform_indices = @transform_10, window_bounds = array<i64: 32, 128>}, {pipeline_mode = #tpu.pipeline_mode<synchronous>, transform_indices = @transform_11, window_bounds = array<i64: 1, 128>}, {transform_indices = @transform_12, window_bounds = array<i64: 512, 128>}]} {
    %c0 = arith.constant 0 : index
    %c0_0 = arith.constant 0 : index
    %0 = vector.load %arg1[%c0, %c0_0] : memref<512x2xf32, #tpu.memory_space<vmem>>, vector<512x2xf32>
    %c0_1 = arith.constant 0 : index
    %c0_2 = arith.constant 0 : index
    %1 = vector.load %arg3[%c0_1, %c0_2] : memref<2x32xf32, #tpu.memory_space<vmem>>, vector<2x32xf32>
    %c0_3 = arith.constant 0 : index
    %c0_4 = arith.constant 0 : index
    %2 = vector.load %arg4[%c0_3, %c0_4] : memref<1x32xf32, #tpu.memory_space<vmem>>, vector<1x32xf32>
    %3 = vector.extract_strided_slice %0 {offsets = [0, 0], sizes = [512, 1], strides = [1, 1]} : vector<512x2xf32> to vector<512x1xf32>
    %4 = vector.extract_strided_slice %1 {offsets = [0, 0], sizes = [1, 32], strides = [1, 1]} : vector<2x32xf32> to vector<1x32xf32>
    %5 = vector.broadcast %3 : vector<512x1xf32> to vector<512x32xf32>
    %6 = vector.broadcast %4 : vector<1x32xf32> to vector<512x32xf32>
    %7 = arith.mulf %5, %6 : vector<512x32xf32>
    %8 = vector.broadcast %2 : vector<1x32xf32> to vector<512x32xf32>
    %9 = arith.addf %7, %8 : vector<512x32xf32>
    %10 = vector.extract_strided_slice %0 {offsets = [0, 1], sizes = [512, 1], strides = [1, 1]} : vector<512x2xf32> to vector<512x1xf32>
    %11 = vector.extract_strided_slice %1 {offsets = [1, 0], sizes = [1, 32], strides = [1, 1]} : vector<2x32xf32> to vector<1x32xf32>
    %12 = vector.broadcast %10 : vector<512x1xf32> to vector<512x32xf32>
    %13 = vector.broadcast %11 : vector<1x32xf32> to vector<512x32xf32>
    %14 = arith.mulf %12, %13 : vector<512x32xf32>
    %15 = arith.addf %9, %14 : vector<512x32xf32>
    %c0_5 = arith.constant 0 : index
    %c0_6 = arith.constant 0 : index
    %16 = vector.load %arg2[%c0_5, %c0_6] : memref<512x2xf32, #tpu.memory_space<vmem>>, vector<512x2xf32>
    %c0_7 = arith.constant 0 : index
    %c0_8 = arith.constant 0 : index
    %17 = vector.load %arg5[%c0_7, %c0_8] : memref<2x32xf32, #tpu.memory_space<vmem>>, vector<2x32xf32>
    %c0_9 = arith.constant 0 : index
    %c0_10 = arith.constant 0 : index
    %18 = vector.load %arg6[%c0_9, %c0_10] : memref<1x32xf32, #tpu.memory_space<vmem>>, vector<1x32xf32>
    %19 = vector.extract_strided_slice %16 {offsets = [0, 0], sizes = [512, 1], strides = [1, 1]} : vector<512x2xf32> to vector<512x1xf32>
    %20 = vector.extract_strided_slice %17 {offsets = [0, 0], sizes = [1, 32], strides = [1, 1]} : vector<2x32xf32> to vector<1x32xf32>
    %21 = vector.broadcast %19 : vector<512x1xf32> to vector<512x32xf32>
    %22 = vector.broadcast %20 : vector<1x32xf32> to vector<512x32xf32>
    %23 = arith.mulf %21, %22 : vector<512x32xf32>
    %24 = vector.broadcast %18 : vector<1x32xf32> to vector<512x32xf32>
    %25 = arith.addf %23, %24 : vector<512x32xf32>
    %26 = vector.extract_strided_slice %16 {offsets = [0, 1], sizes = [512, 1], strides = [1, 1]} : vector<512x2xf32> to vector<512x1xf32>
    %27 = vector.extract_strided_slice %17 {offsets = [1, 0], sizes = [1, 32], strides = [1, 1]} : vector<2x32xf32> to vector<1x32xf32>
    %28 = vector.broadcast %26 : vector<512x1xf32> to vector<512x32xf32>
    %29 = vector.broadcast %27 : vector<1x32xf32> to vector<512x32xf32>
    %30 = arith.mulf %28, %29 : vector<512x32xf32>
    %31 = arith.addf %25, %30 : vector<512x32xf32>
    %32 = tpu.concatenate %15, %31 in 0 : vector<512x32xf32>, vector<512x32xf32> -> vector<1024x32xf32>
    %c0_11 = arith.constant 0 : index
    %c0_12 = arith.constant 0 : index
    %c0_13 = arith.constant 0 : index
    %33 = vector.load %arg7[%c0_11, %c0_12, %c0_13] : memref<2x32x32xf32, #tpu.memory_space<vmem>>, vector<1x32x32xf32>
    %34 = vector.shape_cast %33 : vector<1x32x32xf32> to vector<32x32xf32>
    %cst = arith.constant dense<0.000000e+00> : vector<1024x32xf32>
    %35 = tpu.matmul %32, %34, %cst {dimension_numbers = #tpu.dot_dimension_numbers<[1], [0], [0], [1], [0, 0, 1, 1], [], []>} : vector<1024x32xf32>, vector<32x32xf32>, vector<1024x32xf32> -> vector<1024x32xf32>
    %c0_14 = arith.constant 0 : index
    %c0_15 = arith.constant 0 : index
    %c0_16 = arith.constant 0 : index
    %36 = vector.load %arg8[%c0_14, %c0_15, %c0_16] : memref<2x1x32xf32, #tpu.memory_space<vmem>>, vector<1x1x32xf32>
    %37 = vector.shape_cast %36 : vector<1x1x32xf32> to vector<1x32xf32>
    %38 = vector.broadcast %37 : vector<1x32xf32> to vector<1024x32xf32>
    %39 = arith.addf %35, %38 : vector<1024x32xf32>
    %cst_17 = arith.constant 0.000000e+00 : f32
    %40 = vector.broadcast %cst_17 : f32 to vector<1024x32xf32>
    %41 = arith.maximumf %39, %40 : vector<1024x32xf32>
    %c1 = arith.constant 1 : index
    %c0_18 = arith.constant 0 : index
    %c0_19 = arith.constant 0 : index
    %42 = vector.load %arg7[%c1, %c0_18, %c0_19] : memref<2x32x32xf32, #tpu.memory_space<vmem>>, vector<1x32x32xf32>
    %43 = vector.shape_cast %42 : vector<1x32x32xf32> to vector<32x32xf32>
    %cst_20 = arith.constant dense<0.000000e+00> : vector<1024x32xf32>
    %44 = tpu.matmul %41, %43, %cst_20 {dimension_numbers = #tpu.dot_dimension_numbers<[1], [0], [0], [1], [0, 0, 1, 1], [], []>} : vector<1024x32xf32>, vector<32x32xf32>, vector<1024x32xf32> -> vector<1024x32xf32>
    %c1_21 = arith.constant 1 : index
    %c0_22 = arith.constant 0 : index
    %c0_23 = arith.constant 0 : index
    %45 = vector.load %arg8[%c1_21, %c0_22, %c0_23] : memref<2x1x32xf32, #tpu.memory_space<vmem>>, vector<1x1x32xf32>
    %46 = vector.shape_cast %45 : vector<1x1x32xf32> to vector<1x32xf32>
    %47 = vector.broadcast %46 : vector<1x32xf32> to vector<1024x32xf32>
    %48 = arith.addf %44, %47 : vector<1024x32xf32>
    %cst_24 = arith.constant 0.000000e+00 : f32
    %49 = vector.broadcast %cst_24 : f32 to vector<1024x32xf32>
    %50 = arith.maximumf %48, %49 : vector<1024x32xf32>
    %51 = vector.extract_strided_slice %50 {offsets = [0, 0], sizes = [512, 32], strides = [1, 1]} : vector<1024x32xf32> to vector<512x32xf32>
    %52 = vector.extract_strided_slice %50 {offsets = [512, 0], sizes = [512, 32], strides = [1, 1]} : vector<1024x32xf32> to vector<512x32xf32>
    %53 = arith.mulf %51, %52 : vector<512x32xf32>
    %c0_25 = arith.constant 0 : index
    %c0_26 = arith.constant 0 : index
    %c0_27 = arith.constant 0 : index
    %54 = vector.load %arg9[%c0_25, %c0_26, %c0_27] : memref<2x32x32xf32, #tpu.memory_space<vmem>>, vector<1x32x32xf32>
    %55 = vector.shape_cast %54 : vector<1x32x32xf32> to vector<32x32xf32>
    %cst_28 = arith.constant dense<0.000000e+00> : vector<512x32xf32>
    %56 = tpu.matmul %53, %55, %cst_28 {dimension_numbers = #tpu.dot_dimension_numbers<[1], [0], [0], [1], [0, 0, 1, 1], [], []>} : vector<512x32xf32>, vector<32x32xf32>, vector<512x32xf32> -> vector<512x32xf32>
    %c0_29 = arith.constant 0 : index
    %c0_30 = arith.constant 0 : index
    %c0_31 = arith.constant 0 : index
    %57 = vector.load %arg10[%c0_29, %c0_30, %c0_31] : memref<2x1x32xf32, #tpu.memory_space<vmem>>, vector<1x1x32xf32>
    %58 = vector.shape_cast %57 : vector<1x1x32xf32> to vector<1x32xf32>
    %59 = vector.broadcast %58 : vector<1x32xf32> to vector<512x32xf32>
    %60 = arith.addf %56, %59 : vector<512x32xf32>
    %cst_32 = arith.constant 0.000000e+00 : f32
    %61 = vector.broadcast %cst_32 : f32 to vector<512x32xf32>
    %62 = arith.maximumf %60, %61 : vector<512x32xf32>
    %c1_33 = arith.constant 1 : index
    %c0_34 = arith.constant 0 : index
    %c0_35 = arith.constant 0 : index
    %63 = vector.load %arg9[%c1_33, %c0_34, %c0_35] : memref<2x32x32xf32, #tpu.memory_space<vmem>>, vector<1x32x32xf32>
    %64 = vector.shape_cast %63 : vector<1x32x32xf32> to vector<32x32xf32>
    %cst_36 = arith.constant dense<0.000000e+00> : vector<512x32xf32>
    %65 = tpu.matmul %62, %64, %cst_36 {dimension_numbers = #tpu.dot_dimension_numbers<[1], [0], [0], [1], [0, 0, 1, 1], [], []>} : vector<512x32xf32>, vector<32x32xf32>, vector<512x32xf32> -> vector<512x32xf32>
    %c1_37 = arith.constant 1 : index
    %c0_38 = arith.constant 0 : index
    %c0_39 = arith.constant 0 : index
    %66 = vector.load %arg10[%c1_37, %c0_38, %c0_39] : memref<2x1x32xf32, #tpu.memory_space<vmem>>, vector<1x1x32xf32>
    %67 = vector.shape_cast %66 : vector<1x1x32xf32> to vector<1x32xf32>
    %68 = vector.broadcast %67 : vector<1x32xf32> to vector<512x32xf32>
    %69 = arith.addf %65, %68 : vector<512x32xf32>
    %cst_40 = arith.constant 0.000000e+00 : f32
    %70 = vector.broadcast %cst_40 : f32 to vector<512x32xf32>
    %71 = arith.maximumf %69, %70 : vector<512x32xf32>
    %c0_41 = arith.constant 0 : index
    %c0_42 = arith.constant 0 : index
    %72 = vector.load %arg11[%c0_41, %c0_42] : memref<32x128xf32, #tpu.memory_space<vmem>>, vector<32x128xf32>
    %cst_43 = arith.constant dense<0.000000e+00> : vector<512x128xf32>
    %73 = tpu.matmul %71, %72, %cst_43 {dimension_numbers = #tpu.dot_dimension_numbers<[1], [0], [0], [1], [0, 0, 1, 1], [], []>} : vector<512x32xf32>, vector<32x128xf32>, vector<512x128xf32> -> vector<512x128xf32>
    %c0_44 = arith.constant 0 : index
    %c0_45 = arith.constant 0 : index
    %74 = vector.load %arg12[%c0_44, %c0_45] : memref<1x128xf32, #tpu.memory_space<vmem>>, vector<1x128xf32>
    %75 = vector.broadcast %74 : vector<1x128xf32> to vector<512x128xf32>
    %76 = arith.addf %73, %75 : vector<512x128xf32>
    %c0_46 = arith.constant 0 : index
    %c0_47 = arith.constant 0 : index
    %77 = vector.load %arg13[%c0_46, %c0_47] : memref<512x128xf32, #tpu.memory_space<vmem>>, vector<512x128xf32>
    tpu.vector_store %arg13[%c0_46, %c0_47], %76 {strides = array<i32>} : memref<512x128xf32, #tpu.memory_space<vmem>>, vector<512x128xf32>,
    return
  }
  func.func @transform_0(%arg0: i32) -> (i32, i32) {
    %c0_i32 = arith.constant 0 : i32
    %c0_i32_0 = arith.constant 0 : i32
    return %arg0, %c0_i32 : i32, i32
  }
  func.func @transform_1(%arg0: i32) -> (i32, i32) {
    %c0_i32 = arith.constant 0 : i32
    %c0_i32_0 = arith.constant 0 : i32
    return %arg0, %c0_i32 : i32, i32
  }
  func.func @transform_2(%arg0: i32) -> (i32, i32) {
    %c0_i32 = arith.constant 0 : i32
    %c0_i32_0 = arith.constant 0 : i32
    %c0_i32_1 = arith.constant 0 : i32
    return %c0_i32, %c0_i32_0 : i32, i32
  }
  func.func @transform_3(%arg0: i32) -> (i32, i32) {
    %c0_i32 = arith.constant 0 : i32
    %c0_i32_0 = arith.constant 0 : i32
    %c0_i32_1 = arith.constant 0 : i32
    return %c0_i32, %c0_i32_0 : i32, i32
  }
  func.func @transform_4(%arg0: i32) -> (i32, i32) {
    %c0_i32 = arith.constant 0 : i32
    %c0_i32_0 = arith.constant 0 : i32
    %c0_i32_1 = arith.constant 0 : i32
    return %c0_i32, %c0_i32_0 : i32, i32
  }
  func.func @transform_5(%arg0: i32) -> (i32, i32) {
    %c0_i32 = arith.constant 0 : i32
    %c0_i32_0 = arith.constant 0 : i32
    %c0_i32_1 = arith.constant 0 : i32
    return %c0_i32, %c0_i32_0 : i32, i32
  }
  func.func @transform_6(%arg0: i32) -> (i32, i32, i32) {
    %c0_i32 = arith.constant 0 : i32
    %c0_i32_0 = arith.constant 0 : i32
    %c0_i32_1 = arith.constant 0 : i32
    %c0_i32_2 = arith.constant 0 : i32
    return %c0_i32, %c0_i32_0, %c0_i32_1 : i32, i32, i32
  }
  func.func @transform_7(%arg0: i32) -> (i32, i32, i32) {
    %c0_i32 = arith.constant 0 : i32
    %c0_i32_0 = arith.constant 0 : i32
    %c0_i32_1 = arith.constant 0 : i32
    %c0_i32_2 = arith.constant 0 : i32
    return %c0_i32, %c0_i32_0, %c0_i32_1 : i32, i32, i32
  }
  func.func @transform_8(%arg0: i32) -> (i32, i32, i32) {
    %c0_i32 = arith.constant 0 : i32
    %c0_i32_0 = arith.constant 0 : i32
    %c0_i32_1 = arith.constant 0 : i32
    %c0_i32_2 = arith.constant 0 : i32
    return %c0_i32, %c0_i32_0, %c0_i32_1 : i32, i32, i32
  }
  func.func @transform_9(%arg0: i32) -> (i32, i32, i32) {
    %c0_i32 = arith.constant 0 : i32
    %c0_i32_0 = arith.constant 0 : i32
    %c0_i32_1 = arith.constant 0 : i32
    %c0_i32_2 = arith.constant 0 : i32
    return %c0_i32, %c0_i32_0, %c0_i32_1 : i32, i32, i32
  }
  func.func @transform_10(%arg0: i32) -> (i32, i32) {
    %c0_i32 = arith.constant 0 : i32
    %c0_i32_0 = arith.constant 0 : i32
    %c0_i32_1 = arith.constant 0 : i32
    return %c0_i32, %c0_i32_0 : i32, i32
  }
  func.func @transform_11(%arg0: i32) -> (i32, i32) {
    %c0_i32 = arith.constant 0 : i32
    %c0_i32_0 = arith.constant 0 : i32
    %c0_i32_1 = arith.constant 0 : i32
    return %c0_i32, %c0_i32_0 : i32, i32
  }
  func.func @transform_12(%arg0: i32) -> (i32, i32) {
    %c0_i32 = arith.constant 0 : i32
    %c0_i32_0 = arith.constant 0 : i32
    return %arg0, %c0_i32 : i32, i32
  }
}

</mosaic_0001>

<llo_original>
// kernel: tpu_custom_call.1
$region0: #{tpu_custom_call.1}
  #allocation0 [shape = 'u32[]', space=smem, size = 0x4, offset = 0x4, fixed_abs, tag = 'smem constant byte address 0x4 - core index']
  #allocation1 [shape = 'u32[144,128]{1,0:T(1,128)}', space=vmem, size = 0x12000, scoped, tag = 'internal scratch']
  %s0 = inlined_call_operand.vmem [shape: f32[1024,2], index: 0, kind: input, shape index: {}]
  %s1 = inlined_call_operand.vmem [shape: f32[1024,2], index: 1, kind: input, shape index: {}]
  %s2 = inlined_call_operand.vmem [shape: f32[2,32], index: 2, kind: input, shape index: {}]
  %s3 = inlined_call_operand.vmem [shape: f32[1,32], index: 3, kind: input, shape index: {}]
  %s4 = inlined_call_operand.vmem [shape: f32[2,32], index: 4, kind: input, shape index: {}]
  %s5 = inlined_call_operand.vmem [shape: f32[1,32], index: 5, kind: input, shape index: {}]
  %s6 = inlined_call_operand.vmem [shape: f32[2,32,32], index: 6, kind: input, shape index: {}]
  %s7 = inlined_call_operand.vmem [shape: f32[2,1,32], index: 7, kind: input, shape index: {}]
  %s8 = inlined_call_operand.vmem [shape: f32[2,32,32], index: 8, kind: input, shape index: {}]
  %s9 = inlined_call_operand.vmem [shape: f32[2,1,32], index: 9, kind: input, shape index: {}]
  %s10 = inlined_call_operand.vmem [shape: f32[32,128], index: 10, kind: input, shape index: {}]
  %s11 = inlined_call_operand.vmem [shape: f32[1,128], index: 11, kind: input, shape index: {}]
  %s12 = inlined_call_operand.hbm [shape: f32[1024,128], index: 12, kind: output, shape index: {}]
  %s13 = sld [smem:[#allocation0]]
  $region81: #{tpu_custom_call.1} parent=0
    _
  %s15 = ssub.s32 1, %s13
  %s16 = scalar_select 0, %s15, %s13
  $region1: #{tpu_custom_call.1} parent=0
    #allocation2 [shape = 'u8[524288]{0}', space=vmem, size = 0x80000, scoped, tag = 'output window, operand 0']
    #allocation3 [shape = 's32[2]{0}', space=sflag, size = 0x8, scoped, tag = 'scoped memory for tpu_custom_call.1']
    %17 = vsyncpa [#allocation3], 0
    %s18 = scalar_lea.sflag [#allocation3], 1
    %19 = vsyncpa %s18, 0
    loop: start=0, step=1, limit=4
    $region2: #{tpu_custom_call.1} parent=1 // loop_pre_header
      _
    $region3: #{tpu_custom_call.1} parent=1 // loop_header
      %s21 = sphi 0, %s25
      %p22 = scmp.ge.s32.totalorder %s21, 4
      %s31 = sphi 0, %s33
      %s34 = sphi 0, %s31
      %s35 = sphi 0, %s34
      %s51 = sphi 0, %s35
      %s57 = sphi 0, %s59
      %s60 = sphi 0, %s57
      %s61 = sphi 0, %s60
      %s77 = sphi 0, %s61
      %s81 = sphi 0, %s81
      %s83 = sphi 0, %s81
      %s84 = sphi 0, %s83
      %s98 = sphi 0, %s84
      %s102 = sphi 0, %s102
      %s104 = sphi 0, %s102
      %s105 = sphi 0, %s104
      %s119 = sphi 0, %s105
      %s123 = sphi 0, %s123
      %s125 = sphi 0, %s123
      %s126 = sphi 0, %s125
      %s140 = sphi 0, %s126
      %s144 = sphi 0, %s144
      %s146 = sphi 0, %s144
      %s147 = sphi 0, %s146
      %s161 = sphi 0, %s147
      %s165 = sphi 0, %s165
      %s167 = sphi 0, %s165
      %s168 = sphi 0, %s167
      %s182 = sphi 0, %s168
      %s186 = sphi 0, %s186
      %s188 = sphi 0, %s186
      %s189 = sphi 0, %s188
      %s203 = sphi 0, %s189
      %s207 = sphi 0, %s207
      %s209 = sphi 0, %s207
      %s210 = sphi 0, %s209
      %s224 = sphi 0, %s210
      %s228 = sphi 0, %s228
      %s230 = sphi 0, %s228
      %s231 = sphi 0, %s230
      %s245 = sphi 0, %s231
      %s249 = sphi 0, %s249
      %s251 = sphi 0, %s249
      %s252 = sphi 0, %s251
      %s266 = sphi 0, %s252
      %s270 = sphi 0, %s270
      %s272 = sphi 0, %s270
      %s273 = sphi 0, %s272
      %s287 = sphi 0, %s273
      %s293 = sphi 0, %s295
      %s296 = sphi 0, %s293
      %s297 = sphi 0, %s296
      %s313 = sphi 0, %s297
    $region4: #{tpu_custom_call.1} parent=1 // loop_header_branch
      %24 = sbr.rel (%p22) target = $region8
    $region5: #{tpu_custom_call.1} parent=1 // loop_body
      %s26 = ssub.s32 %s21, 1
      %s27 = ssub.s32 %s21, 2
      %s28 = sadd.s32 %s21, 1
      %s29 = ssub.s32 %s21, %s28
      %p30 = scmp.eq.s32.totalorder %s29, 0
      %s32 = sadd.s32 %s31, 1
      %s33 = scalar_select %p30, %s31, %s32
      %p36 = pneg %p30
      %p37 = scmp.eq.s32.totalorder %s21, 1
      %p38 = por %p36, %p37
      %p39 = scmp.ne.s32.totalorder %s31, %s34
      %p40 = scmp.eq.s32.totalorder %s21, 0
      %p41 = por %p39, %p40
      %p42 = scmp.ne.s32.totalorder %s31, %s34
      %p43 = scmp.eq.s32.totalorder %s26, 1
      %p44 = por %p42, %p43
      %p45 = scmp.ne.s32.totalorder %s34, %s35
      %p46 = scmp.eq.s32.totalorder %s26, 0
      %p47 = por %p45, %p46
      %p48 = scmp.ne.s32.totalorder %s34, %s35
      %p49 = scmp.eq.s32.totalorder %s27, 1
      %p50 = por %p48, %p49
      %p52 = scmp.ne.s32.totalorder %s35, %s51
      %p53 = scmp.eq.s32.totalorder %s27, 0
      %p54 = por %p52, %p53
      %s55 = ssub.s32 %s21, %s28
      %p56 = scmp.eq.s32.totalorder %s55, 0
      %s58 = sadd.s32 %s57, 1
      %s59 = scalar_select %p56, %s57, %s58
      %p62 = pneg %p56
      %p63 = scmp.eq.s32.totalorder %s21, 1
      %p64 = por %p62, %p63
      %p65 = scmp.ne.s32.totalorder %s57, %s60
      %p66 = scmp.eq.s32.totalorder %s21, 0
      %p67 = por %p65, %p66
      %p68 = scmp.ne.s32.totalorder %s57, %s60
      %p69 = scmp.eq.s32.totalorder %s26, 1
      %p70 = por %p68, %p69
      %p71 = scmp.ne.s32.totalorder %s60, %s61
      %p72 = scmp.eq.s32.totalorder %s26, 0
      %p73 = por %p71, %p72
      %p74 = scmp.ne.s32.totalorder %s60, %s61
      %p75 = scmp.eq.s32.totalorder %s27, 1
      %p76 = por %p74, %p75
      %p78 = scmp.ne.s32.totalorder %s61, %s77
      %p79 = scmp.eq.s32.totalorder %s27, 0
      %p80 = por %p78, %p79
      %s82 = sadd.s32 %s81, 1
      %p85 = scmp.eq.s32.totalorder %s21, 1
      %p86 = scmp.ne.s32.totalorder %s81, %s83
      %p87 = scmp.eq.s32.totalorder %s21, 0
      %p88 = por %p86, %p87
      %p89 = scmp.ne.s32.totalorder %s81, %s83
      %p90 = scmp.eq.s32.totalorder %s26, 1
      %p91 = por %p89, %p90
      %p92 = scmp.ne.s32.totalorder %s83, %s84
      %p93 = scmp.eq.s32.totalorder %s26, 0
      %p94 = por %p92, %p93
      %p95 = scmp.ne.s32.totalorder %s83, %s84
      %p96 = scmp.eq.s32.totalorder %s27, 1
      %p97 = por %p95, %p96
      %p99 = scmp.ne.s32.totalorder %s84, %s98
      %p100 = scmp.eq.s32.totalorder %s27, 0
      %p101 = por %p99, %p100
      %s103 = sadd.s32 %s102, 1
      %p106 = scmp.eq.s32.totalorder %s21, 1
      %p107 = scmp.ne.s32.totalorder %s102, %s104
      %p108 = scmp.eq.s32.totalorder %s21, 0
      %p109 = por %p107, %p108
      %p110 = scmp.ne.s32.totalorder %s102, %s104
      %p111 = scmp.eq.s32.totalorder %s26, 1
      %p112 = por %p110, %p111
      %p113 = scmp.ne.s32.totalorder %s104, %s105
      %p114 = scmp.eq.s32.totalorder %s26, 0
      %p115 = por %p113, %p114
      %p116 = scmp.ne.s32.totalorder %s104, %s105
      %p117 = scmp.eq.s32.totalorder %s27, 1
      %p118 = por %p116, %p117
      %p120 = scmp.ne.s32.totalorder %s105, %s119
      %p121 = scmp.eq.s32.totalorder %s27, 0
      %p122 = por %p120, %p121
      %s124 = sadd.s32 %s123, 1
      %p127 = scmp.eq.s32.totalorder %s21, 1
      %p128 = scmp.ne.s32.totalorder %s123, %s125
      %p129 = scmp.eq.s32.totalorder %s21, 0
      %p130 = por %p128, %p129
      %p131 = scmp.ne.s32.totalorder %s123, %s125
      %p132 = scmp.eq.s32.totalorder %s26, 1
      %p133 = por %p131, %p132
      %p134 = scmp.ne.s32.totalorder %s125, %s126
      %p135 = scmp.eq.s32.totalorder %s26, 0
      %p136 = por %p134, %p135
      %p137 = scmp.ne.s32.totalorder %s125, %s126
      %p138 = scmp.eq.s32.totalorder %s27, 1
      %p139 = por %p137, %p138
      %p141 = scmp.ne.s32.totalorder %s126, %s140
      %p142 = scmp.eq.s32.totalorder %s27, 0
      %p143 = por %p141, %p142
      %s145 = sadd.s32 %s144, 1
      %p148 = scmp.eq.s32.totalorder %s21, 1
      %p149 = scmp.ne.s32.totalorder %s144, %s146
      %p150 = scmp.eq.s32.totalorder %s21, 0
      %p151 = por %p149, %p150
      %p152 = scmp.ne.s32.totalorder %s144, %s146
      %p153 = scmp.eq.s32.totalorder %s26, 1
      %p154 = por %p152, %p153
      %p155 = scmp.ne.s32.totalorder %s146, %s147
      %p156 = scmp.eq.s32.totalorder %s26, 0
      %p157 = por %p155, %p156
      %p158 = scmp.ne.s32.totalorder %s146, %s147
      %p159 = scmp.eq.s32.totalorder %s27, 1
      %p160 = por %p158, %p159
      %p162 = scmp.ne.s32.totalorder %s147, %s161
      %p163 = scmp.eq.s32.totalorder %s27, 0
      %p164 = por %p162, %p163
      %s166 = sadd.s32 %s165, 1
      %p169 = scmp.eq.s32.totalorder %s21, 1
      %p170 = scmp.ne.s32.totalorder %s165, %s167
      %p171 = scmp.eq.s32.totalorder %s21, 0
      %p172 = por %p170, %p171
      %p173 = scmp.ne.s32.totalorder %s165, %s167
      %p174 = scmp.eq.s32.totalorder %s26, 1
      %p175 = por %p173, %p174
      %p176 = scmp.ne.s32.totalorder %s167, %s168
      %p177 = scmp.eq.s32.totalorder %s26, 0
      %p178 = por %p176, %p177
      %p179 = scmp.ne.s32.totalorder %s167, %s168
      %p180 = scmp.eq.s32.totalorder %s27, 1
      %p181 = por %p179, %p180
      %p183 = scmp.ne.s32.totalorder %s168, %s182
      %p184 = scmp.eq.s32.totalorder %s27, 0
      %p185 = por %p183, %p184
      %s187 = sadd.s32 %s186, 1
      %p190 = scmp.eq.s32.totalorder %s21, 1
      %p191 = scmp.ne.s32.totalorder %s186, %s188
      %p192 = scmp.eq.s32.totalorder %s21, 0
      %p193 = por %p191, %p192
      %p194 = scmp.ne.s32.totalorder %s186, %s188
      %p195 = scmp.eq.s32.totalorder %s26, 1
      %p196 = por %p194, %p195
      %p197 = scmp.ne.s32.totalorder %s188, %s189
      %p198 = scmp.eq.s32.totalorder %s26, 0
      %p199 = por %p197, %p198
      %p200 = scmp.ne.s32.totalorder %s188, %s189
      %p201 = scmp.eq.s32.totalorder %s27, 1
      %p202 = por %p200, %p201
      %p204 = scmp.ne.s32.totalorder %s189, %s203
      %p205 = scmp.eq.s32.totalorder %s27, 0
      %p206 = por %p204, %p205
      %s208 = sadd.s32 %s207, 1
      %p211 = scmp.eq.s32.totalorder %s21, 1
      %p212 = scmp.ne.s32.totalorder %s207, %s209
      %p213 = scmp.eq.s32.totalorder %s21, 0
      %p214 = por %p212, %p213
      %p215 = scmp.ne.s32.totalorder %s207, %s209
      %p216 = scmp.eq.s32.totalorder %s26, 1
      %p217 = por %p215, %p216
      %p218 = scmp.ne.s32.totalorder %s209, %s210
      %p219 = scmp.eq.s32.totalorder %s26, 0
      %p220 = por %p218, %p219
      %p221 = scmp.ne.s32.totalorder %s209, %s210
      %p222 = scmp.eq.s32.totalorder %s27, 1
      %p223 = por %p221, %p222
      %p225 = scmp.ne.s32.totalorder %s210, %s224
      %p226 = scmp.eq.s32.totalorder %s27, 0
      %p227 = por %p225, %p226
      %s229 = sadd.s32 %s228, 1
      %p232 = scmp.eq.s32.totalorder %s21, 1
      %p233 = scmp.ne.s32.totalorder %s228, %s230
      %p234 = scmp.eq.s32.totalorder %s21, 0
      %p235 = por %p233, %p234
      %p236 = scmp.ne.s32.totalorder %s228, %s230
      %p237 = scmp.eq.s32.totalorder %s26, 1
      %p238 = por %p236, %p237
      %p239 = scmp.ne.s32.totalorder %s230, %s231
      %p240 = scmp.eq.s32.totalorder %s26, 0
      %p241 = por %p239, %p240
      %p242 = scmp.ne.s32.totalorder %s230, %s231
      %p243 = scmp.eq.s32.totalorder %s27, 1
      %p244 = por %p242, %p243
      %p246 = scmp.ne.s32.totalorder %s231, %s245
      %p247 = scmp.eq.s32.totalorder %s27, 0
      %p248 = por %p246, %p247
      %s250 = sadd.s32 %s249, 1
      %p253 = scmp.eq.s32.totalorder %s21, 1
      %p254 = scmp.ne.s32.totalorder %s249, %s251
      %p255 = scmp.eq.s32.totalorder %s21, 0
      %p256 = por %p254, %p255
      %p257 = scmp.ne.s32.totalorder %s249, %s251
      %p258 = scmp.eq.s32.totalorder %s26, 1
      %p259 = por %p257, %p258
      %p260 = scmp.ne.s32.totalorder %s251, %s252
      %p261 = scmp.eq.s32.totalorder %s26, 0
      %p262 = por %p260, %p261
      %p263 = scmp.ne.s32.totalorder %s251, %s252
      %p264 = scmp.eq.s32.totalorder %s27, 1
      %p265 = por %p263, %p264
      %p267 = scmp.ne.s32.totalorder %s252, %s266
      %p268 = scmp.eq.s32.totalorder %s27, 0
      %p269 = por %p267, %p268
      %s271 = sadd.s32 %s270, 1
      %p274 = scmp.eq.s32.totalorder %s21, 1
      %p275 = scmp.ne.s32.totalorder %s270, %s272
      %p276 = scmp.eq.s32.totalorder %s21, 0
      %p277 = por %p275, %p276
      %p278 = scmp.ne.s32.totalorder %s270, %s272
      %p279 = scmp.eq.s32.totalorder %s26, 1
      %p280 = por %p278, %p279
      %p281 = scmp.ne.s32.totalorder %s272, %s273
      %p282 = scmp.eq.s32.totalorder %s26, 0
      %p283 = por %p281, %p282
      %p284 = scmp.ne.s32.totalorder %s272, %s273
      %p285 = scmp.eq.s32.totalorder %s27, 1
      %p286 = por %p284, %p285
      %p288 = scmp.ne.s32.totalorder %s273, %s287
      %p289 = scmp.eq.s32.totalorder %s27, 0
      %p290 = por %p288, %p289
      %s291 = ssub.s32 %s21, %s28
      %p292 = scmp.eq.s32.totalorder %s291, 0
      %s294 = sadd.s32 %s293, 1
      %s295 = scalar_select %p292, %s293, %s294
      %p298 = pneg %p292
      %p299 = scmp.eq.s32.totalorder %s21, 1
      %p300 = por %p298, %p299
      %p301 = scmp.ne.s32.totalorder %s293, %s296
      %p302 = scmp.eq.s32.totalorder %s21, 0
      %p303 = por %p301, %p302
      %p304 = scmp.ne.s32.totalorder %s293, %s296
      %p305 = scmp.eq.s32.totalorder %s26, 1
      %p306 = por %p304, %p305
      %p307 = scmp.ne.s32.totalorder %s296, %s297
      %p308 = scmp.eq.s32.totalorder %s26, 0
      %p309 = por %p307, %p308
      %p310 = scmp.ne.s32.totalorder %s296, %s297
      %p311 = scmp.eq.s32.totalorder %s27, 1
      %p312 = por %p310, %p311
      %p314 = scmp.ne.s32.totalorder %s297, %s313
      %p315 = scmp.eq.s32.totalorder %s27, 0
      %p316 = por %p314, %p315
      %p317 = scmp.le.s32.totalorder 1, %s21
      %p318 = scmp.lt.s32.totalorder %s21, 3
      %p319 = pnand %p317, %p318
      %p320 = pneg %p319
      // Predicated region
      $region9: #{tpu_custom_call.1} parent=5 // pred_check
        _
      $region10: #{tpu_custom_call.1} parent=5 // pred_check_branch
        %322 = sbr.rel (%p319) target = $region12
      $region11: #{tpu_custom_call.1} parent=5 // pred_region
        %s323 = ssub.s32 %s21, 1
        // Predicated region
        $region13: #{tpu_custom_call.1} parent=11 // pred_check
          %p324 = pneg %p94
        $region14: #{tpu_custom_call.1} parent=11 // pred_check_branch
          %326 = sbr.rel (%p324) target = $region16
        $region15: #{tpu_custom_call.1} parent=11 // pred_region
          _
        $region16: #{tpu_custom_call.1} parent=11 // pred_fallthru
          _
        // Predicated region
        $region17: #{tpu_custom_call.1} parent=11 // pred_check
          %p327 = pneg %p115
        $region18: #{tpu_custom_call.1} parent=11 // pred_check_branch
          %329 = sbr.rel (%p327) target = $region20
        $region19: #{tpu_custom_call.1} parent=11 // pred_region
          _
        $region20: #{tpu_custom_call.1} parent=11 // pred_fallthru
          _
        // Predicated region
        $region21: #{tpu_custom_call.1} parent=11 // pred_check
          %p330 = pneg %p136
        $region22: #{tpu_custom_call.1} parent=11 // pred_check_branch
          %332 = sbr.rel (%p330) target = $region24
        $region23: #{tpu_custom_call.1} parent=11 // pred_region
          _
        $region24: #{tpu_custom_call.1} parent=11 // pred_fallthru
          _
        // Predicated region
        $region25: #{tpu_custom_call.1} parent=11 // pred_check
          %p333 = pneg %p157
        $region26: #{tpu_custom_call.1} parent=11 // pred_check_branch
          %335 = sbr.rel (%p333) target = $region28
        $region27: #{tpu_custom_call.1} parent=11 // pred_region
          _
        $region28: #{tpu_custom_call.1} parent=11 // pred_fallthru
          _
        // Predicated region
        $region29: #{tpu_custom_call.1} parent=11 // pred_check
          %p336 = pneg %p178
        $region30: #{tpu_custom_call.1} parent=11 // pred_check_branch
          %338 = sbr.rel (%p336) target = $region32
        $region31: #{tpu_custom_call.1} parent=11 // pred_region
          _
        $region32: #{tpu_custom_call.1} parent=11 // pred_fallthru
          _
        // Predicated region
        $region33: #{tpu_custom_call.1} parent=11 // pred_check
          %p339 = pneg %p199
        $region34: #{tpu_custom_call.1} parent=11 // pred_check_branch
          %341 = sbr.rel (%p339) target = $region36
        $region35: #{tpu_custom_call.1} parent=11 // pred_region
          _
        $region36: #{tpu_custom_call.1} parent=11 // pred_fallthru
          _
        // Predicated region
        $region37: #{tpu_custom_call.1} parent=11 // pred_check
          %p342 = pneg %p220
        $region38: #{tpu_custom_call.1} parent=11 // pred_check_branch
          %344 = sbr.rel (%p342) target = $region40
        $region39: #{tpu_custom_call.1} parent=11 // pred_region
          _
        $region40: #{tpu_custom_call.1} parent=11 // pred_fallthru
          _
        // Predicated region
        $region41: #{tpu_custom_call.1} parent=11 // pred_check
          %p345 = pneg %p241
        $region42: #{tpu_custom_call.1} parent=11 // pred_check_branch
          %347 = sbr.rel (%p345) target = $region44
        $region43: #{tpu_custom_call.1} parent=11 // pred_region
          _
        $region44: #{tpu_custom_call.1} parent=11 // pred_fallthru
          _
        // Predicated region
        $region45: #{tpu_custom_call.1} parent=11 // pred_check
          %p348 = pneg %p262
        $region46: #{tpu_custom_call.1} parent=11 // pred_check_branch
          %350 = sbr.rel (%p348) target = $region48
        $region47: #{tpu_custom_call.1} parent=11 // pred_region
          _
        $region48: #{tpu_custom_call.1} parent=11 // pred_fallthru
          _
        // Predicated region
        $region49: #{tpu_custom_call.1} parent=11 // pred_check
          %p351 = pneg %p283
        $region50: #{tpu_custom_call.1} parent=11 // pred_check_branch
          %353 = sbr.rel (%p351) target = $region52
        $region51: #{tpu_custom_call.1} parent=11 // pred_region
          _
        $region52: #{tpu_custom_call.1} parent=11 // pred_fallthru
          _
      $region12: #{tpu_custom_call.1} parent=5 // pred_fallthru
        _
      %p354 = scmp.lt.s32.totalorder %s21, 2
      // Predicated region
      $region53: #{tpu_custom_call.1} parent=5 // pred_check
        %p355 = pneg %p354
      $region54: #{tpu_custom_call.1} parent=5 // pred_check_branch
        %357 = sbr.rel (%p355) target = $region56
      $region55: #{tpu_custom_call.1} parent=5 // pred_region
        // Predicated region
        $region57: #{tpu_custom_call.1} parent=55 // pred_check
          %p358 = pneg %p41
        $region58: #{tpu_custom_call.1} parent=55 // pred_check_branch
          %360 = sbr.rel (%p358) target = $region60
        $region59: #{tpu_custom_call.1} parent=55 // pred_region
          %s361 = smul.u32 64, %s21
          %p362 = scmp.lt.s32.totalorder %s361, 127
          %s363 = scalar_select %p362, %s361, 127
          %s364 = smul.addr %s363, 8
          %s365 = scalar_lea.vmem %s0, %s364
          %s366 = smul.u32 64, %s21
        $region60: #{tpu_custom_call.1} parent=55 // pred_fallthru
          _
        // Predicated region
        $region61: #{tpu_custom_call.1} parent=55 // pred_check
          %p367 = pneg %p67
        $region62: #{tpu_custom_call.1} parent=55 // pred_check_branch
          %369 = sbr.rel (%p367) target = $region64
        $region63: #{tpu_custom_call.1} parent=55 // pred_region
          %s370 = smul.u32 64, %s21
          %p371 = scmp.lt.s32.totalorder %s370, 127
          %s372 = scalar_select %p371, %s370, 127
          %s373 = smul.addr %s372, 8
          %s374 = scalar_lea.vmem %s1, %s373
          %s375 = smul.u32 64, %s21
        $region64: #{tpu_custom_call.1} parent=55 // pred_fallthru
          _
      $region56: #{tpu_custom_call.1} parent=5 // pred_fallthru
        _
      %p376 = scmp.le.s32.totalorder 1, %s21
      %p377 = scmp.lt.s32.totalorder %s21, 3
      %p378 = pnand %p376, %p377
      %p379 = pneg %p378
      // Predicated region
      $region65: #{tpu_custom_call.1} parent=5 // pred_check
        _
      $region66: #{tpu_custom_call.1} parent=5 // pred_check_branch
        %381 = sbr.rel (%p378) target = $region68
      $region67: #{tpu_custom_call.1} parent=5 // pred_region
        %s382 = ssub.s32 %s21, 1
        %s383 = smul.u32 64, %s26
        %p384 = scmp.lt.s32.totalorder %s383, 127
        %s385 = scalar_select %p384, %s383, 127
        %s386 = smul.addr %s385, 8
        %s387 = scalar_lea.vmem %s0, %s386
        %p388 = pneg %p47
        %p389 = pneg %p44
        %s390 = smul.u32 64, %s26
        %p391 = scmp.lt.s32.totalorder %s390, 127
        %s392 = scalar_select %p391, %s390, 127
        %s393 = smul.addr %s392, 8
        %s394 = scalar_lea.vmem %s1, %s393
        %p395 = pneg %p73
        %p396 = pneg %p70
        %p397 = pneg %p94
        %p398 = pneg %p91
        %p399 = pneg %p115
        %p400 = pneg %p112
        %p401 = pneg %p136
        %p402 = pneg %p133
        %p403 = pneg %p157
        %p404 = pneg %p154
        %p405 = pneg %p178
        %p406 = pneg %p175
        %p407 = pneg %p199
        %p408 = pneg %p196
        %p409 = pneg %p220
        %p410 = pneg %p217
        %p411 = pneg %p241
        %p412 = pneg %p238
        %p413 = pneg %p262
        %p414 = pneg %p259
        %p415 = pneg %p283
        %p416 = pneg %p280
        %p417 = pneg %p309
        %p418 = pneg %p306
        %s419 = sand.u32 %s296, 1
        %s420 = scalar_lea.sflag [#allocation3], %s419
        %s421 = sand.u32 %s296, 1
        %s422 = smul.addr %s421, 512
        %s423 = scalar_lea.vmem [#allocation2], %s422
        %s424 = smul.u32 64, %s26
        %p425 = scmp.lt.s32.totalorder %s424, 127
        %s426 = scalar_select %p425, %s424, 127
        %s427 = smul.addr %s426, 8
        %s428 = scalar_lea.vmem %s0, %s427
        %s429 = smul.u32 64, %s26
        %s430 = smul.u32 64, %s26
        %p431 = scmp.lt.s32.totalorder %s430, 127
        %s432 = scalar_select %p431, %s430, 127
        %s433 = smul.addr %s432, 8
        %s434 = scalar_lea.vmem %s1, %s433
        %s435 = smul.u32 64, %s26
        %s436 = smul.u32 64, %s26
        %v437 = vld [vmem:[%s428] sm:$0xff]
        %v438 = vld [vmem:[%s428 + $0x8] sm:$0xff]
        %v439 = vld [vmem:[%s428 + $0x10] sm:$0xff]
        %v440 = vld [vmem:[%s428 + $0x18] sm:$0xff]
        %v441 = vld [vmem:[%s428 + $0x20] sm:$0xff]
        %v442 = vld [vmem:[%s428 + $0x28] sm:$0xff]
        %v443 = vld [vmem:[%s428 + $0x30] sm:$0xff]
        %v444 = vld [vmem:[%s428 + $0x38] sm:$0xff]
        %v445 = vld [vmem:[%s428 + $0x40] sm:$0xff]
        %v446 = vld [vmem:[%s428 + $0x48] sm:$0xff]
        %v447 = vld [vmem:[%s428 + $0x50] sm:$0xff]
        %v448 = vld [vmem:[%s428 + $0x58] sm:$0xff]
        %v449 = vld [vmem:[%s428 + $0x60] sm:$0xff]
        %v450 = vld [vmem:[%s428 + $0x68] sm:$0xff]
        %v451 = vld [vmem:[%s428 + $0x70] sm:$0xff]
        %v452 = vld [vmem:[%s428 + $0x78] sm:$0xff]
        %v453 = vld [vmem:[%s428 + $0x80] sm:$0xff]
        %v454 = vld [vmem:[%s428 + $0x88] sm:$0xff]
        %v455 = vld [vmem:[%s428 + $0x90] sm:$0xff]
        %v456 = vld [vmem:[%s428 + $0x98] sm:$0xff]
        %v457 = vld [vmem:[%s428 + $0xa0] sm:$0xff]
        %v458 = vld [vmem:[%s428 + $0xa8] sm:$0xff]
        %v459 = vld [vmem:[%s428 + $0xb0] sm:$0xff]
        %v460 = vld [vmem:[%s428 + $0xb8] sm:$0xff]
        %v461 = vld [vmem:[%s428 + $0xc0] sm:$0xff]
        %v462 = vld [vmem:[%s428 + $0xc8] sm:$0xff]
        %v463 = vld [vmem:[%s428 + $0xd0] sm:$0xff]
        %v464 = vld [vmem:[%s428 + $0xd8] sm:$0xff]
        %v465 = vld [vmem:[%s428 + $0xe0] sm:$0xff]
        %v466 = vld [vmem:[%s428 + $0xe8] sm:$0xff]
        %v467 = vld [vmem:[%s428 + $0xf0] sm:$0xff]
        %v468 = vld [vmem:[%s428 + $0xf8] sm:$0xff]
        %v469 = vld [vmem:[%s428 + $0x100] sm:$0xff]
        %v470 = vld [vmem:[%s428 + $0x108] sm:$0xff]
        %v471 = vld [vmem:[%s428 + $0x110] sm:$0xff]
        %v472 = vld [vmem:[%s428 + $0x118] sm:$0xff]
        %v473 = vld [vmem:[%s428 + $0x120] sm:$0xff]
        %v474 = vld [vmem:[%s428 + $0x128] sm:$0xff]
        %v475 = vld [vmem:[%s428 + $0x130] sm:$0xff]
        %v476 = vld [vmem:[%s428 + $0x138] sm:$0xff]
        %v477 = vld [vmem:[%s428 + $0x140] sm:$0xff]
        %v478 = vld [vmem:[%s428 + $0x148] sm:$0xff]
        %v479 = vld [vmem:[%s428 + $0x150] sm:$0xff]
        %v480 = vld [vmem:[%s428 + $0x158] sm:$0xff]
        %v481 = vld [vmem:[%s428 + $0x160] sm:$0xff]
        %v482 = vld [vmem:[%s428 + $0x168] sm:$0xff]
        %v483 = vld [vmem:[%s428 + $0x170] sm:$0xff]
        %v484 = vld [vmem:[%s428 + $0x178] sm:$0xff]
        %v485 = vld [vmem:[%s428 + $0x180] sm:$0xff]
        %v486 = vld [vmem:[%s428 + $0x188] sm:$0xff]
        %v487 = vld [vmem:[%s428 + $0x190] sm:$0xff]
        %v488 = vld [vmem:[%s428 + $0x198] sm:$0xff]
        %v489 = vld [vmem:[%s428 + $0x1a0] sm:$0xff]
        %v490 = vld [vmem:[%s428 + $0x1a8] sm:$0xff]
        %v491 = vld [vmem:[%s428 + $0x1b0] sm:$0xff]
        %v492 = vld [vmem:[%s428 + $0x1b8] sm:$0xff]
        %v493 = vld [vmem:[%s428 + $0x1c0] sm:$0xff]
        %v494 = vld [vmem:[%s428 + $0x1c8] sm:$0xff]
        %v495 = vld [vmem:[%s428 + $0x1d0] sm:$0xff]
        %v496 = vld [vmem:[%s428 + $0x1d8] sm:$0xff]
        %v497 = vld [vmem:[%s428 + $0x1e0] sm:$0xff]
        %v498 = vld [vmem:[%s428 + $0x1e8] sm:$0xff]
        %v499 = vld [vmem:[%s428 + $0x1f0] sm:$0xff]
        %v500 = vld [vmem:[%s428 + $0x1f8] sm:$0xff]
        %v501 = vld [vmem:[%s2] sm:$0x3]
        %v502 = vld [vmem:[%s3] sm:$0x1]
        %504 = vset.pattern.permute.xlu0 0
        %505 = vperm.xlu0 %504, %v437
        %v506 = vpop.permute.xlu0 %505
        %509 = vset.pattern.permute.xlu0 0
        %510 = vperm.xlu0 %509, %v438
        %v511 = vpop.permute.xlu0 %510
        %514 = vset.pattern.permute.xlu0 0
        %515 = vperm.xlu0 %514, %v439
        %v516 = vpop.permute.xlu0 %515
        %519 = vset.pattern.permute.xlu0 0
        %520 = vperm.xlu0 %519, %v440
        %v521 = vpop.permute.xlu0 %520
        %524 = vset.pattern.permute.xlu0 0
        %525 = vperm.xlu0 %524, %v441
        %v526 = vpop.permute.xlu0 %525
        %529 = vset.pattern.permute.xlu0 0
        %530 = vperm.xlu0 %529, %v442
        %v531 = vpop.permute.xlu0 %530
        %534 = vset.pattern.permute.xlu0 0
        %535 = vperm.xlu0 %534, %v443
        %v536 = vpop.permute.xlu0 %535
        %539 = vset.pattern.permute.xlu0 0
        %540 = vperm.xlu0 %539, %v444
        %v541 = vpop.permute.xlu0 %540
        %544 = vset.pattern.permute.xlu0 0
        %545 = vperm.xlu0 %544, %v445
        %v546 = vpop.permute.xlu0 %545
        %549 = vset.pattern.permute.xlu0 0
        %550 = vperm.xlu0 %549, %v446
        %v551 = vpop.permute.xlu0 %550
        %554 = vset.pattern.permute.xlu0 0
        %555 = vperm.xlu0 %554, %v447
        %v556 = vpop.permute.xlu0 %555
        %559 = vset.pattern.permute.xlu0 0
        %560 = vperm.xlu0 %559, %v448
        %v561 = vpop.permute.xlu0 %560
        %564 = vset.pattern.permute.xlu0 0
        %565 = vperm.xlu0 %564, %v449
        %v566 = vpop.permute.xlu0 %565
        %569 = vset.pattern.permute.xlu0 0
        %570 = vperm.xlu0 %569, %v450
        %v571 = vpop.permute.xlu0 %570
        %574 = vset.pattern.permute.xlu0 0
        %575 = vperm.xlu0 %574, %v451
        %v576 = vpop.permute.xlu0 %575
        %579 = vset.pattern.permute.xlu0 0
        %580 = vperm.xlu0 %579, %v452
        %v581 = vpop.permute.xlu0 %580
        %584 = vset.pattern.permute.xlu0 0
        %585 = vperm.xlu0 %584, %v453
        %v586 = vpop.permute.xlu0 %585
        %589 = vset.pattern.permute.xlu0 0
        %590 = vperm.xlu0 %589, %v454
        %v591 = vpop.permute.xlu0 %590
        %594 = vset.pattern.permute.xlu0 0
        %595 = vperm.xlu0 %594, %v455
        %v596 = vpop.permute.xlu0 %595
        %599 = vset.pattern.permute.xlu0 0
        %600 = vperm.xlu0 %599, %v456
        %v601 = vpop.permute.xlu0 %600
        %604 = vset.pattern.permute.xlu0 0
        %605 = vperm.xlu0 %604, %v457
        %v606 = vpop.permute.xlu0 %605
        %609 = vset.pattern.permute.xlu0 0
        %610 = vperm.xlu0 %609, %v458
        %v611 = vpop.permute.xlu0 %610
        %614 = vset.pattern.permute.xlu0 0
        %615 = vperm.xlu0 %614, %v459
        %v616 = vpop.permute.xlu0 %615
        %619 = vset.pattern.permute.xlu0 0
        %620 = vperm.xlu0 %619, %v460
        %v621 = vpop.permute.xlu0 %620
        %624 = vset.pattern.permute.xlu0 0
        %625 = vperm.xlu0 %624, %v461
        %v626 = vpop.permute.xlu0 %625
        %629 = vset.pattern.permute.xlu0 0
        %630 = vperm.xlu0 %629, %v462
        %v631 = vpop.permute.xlu0 %630
        %634 = vset.pattern.permute.xlu0 0
        %635 = vperm.xlu0 %634, %v463
        %v636 = vpop.permute.xlu0 %635
        %639 = vset.pattern.permute.xlu0 0
        %640 = vperm.xlu0 %639, %v464
        %v641 = vpop.permute.xlu0 %640
        %644 = vset.pattern.permute.xlu0 0
        %645 = vperm.xlu0 %644, %v465
        %v646 = vpop.permute.xlu0 %645
        %649 = vset.pattern.permute.xlu0 0
        %650 = vperm.xlu0 %649, %v466
        %v651 = vpop.permute.xlu0 %650
        %654 = vset.pattern.permute.xlu0 0
        %655 = vperm.xlu0 %654, %v467
        %v656 = vpop.permute.xlu0 %655
        %659 = vset.pattern.permute.xlu0 0
        %660 = vperm.xlu0 %659, %v468
        %v661 = vpop.permute.xlu0 %660
        %664 = vset.pattern.permute.xlu0 0
        %665 = vperm.xlu0 %664, %v469
        %v666 = vpop.permute.xlu0 %665
        %669 = vset.pattern.permute.xlu0 0
        %670 = vperm.xlu0 %669, %v470
        %v671 = vpop.permute.xlu0 %670
        %674 = vset.pattern.permute.xlu0 0
        %675 = vperm.xlu0 %674, %v471
        %v676 = vpop.permute.xlu0 %675
        %679 = vset.pattern.permute.xlu0 0
        %680 = vperm.xlu0 %679, %v472
        %v681 = vpop.permute.xlu0 %680
        %684 = vset.pattern.permute.xlu0 0
        %685 = vperm.xlu0 %684, %v473
        %v686 = vpop.permute.xlu0 %685
        %689 = vset.pattern.permute.xlu0 0
        %690 = vperm.xlu0 %689, %v474
        %v691 = vpop.permute.xlu0 %690
        %694 = vset.pattern.permute.xlu0 0
        %695 = vperm.xlu0 %694, %v475
        %v696 = vpop.permute.xlu0 %695
        %699 = vset.pattern.permute.xlu0 0
        %700 = vperm.xlu0 %699, %v476
        %v701 = vpop.permute.xlu0 %700
        %704 = vset.pattern.permute.xlu0 0
        %705 = vperm.xlu0 %704, %v477
        %v706 = vpop.permute.xlu0 %705
        %709 = vset.pattern.permute.xlu0 0
        %710 = vperm.xlu0 %709, %v478
        %v711 = vpop.permute.xlu0 %710
        %714 = vset.pattern.permute.xlu0 0
        %715 = vperm.xlu0 %714, %v479
        %v716 = vpop.permute.xlu0 %715
        %719 = vset.pattern.permute.xlu0 0
        %720 = vperm.xlu0 %719, %v480
        %v721 = vpop.permute.xlu0 %720
        %724 = vset.pattern.permute.xlu0 0
        %725 = vperm.xlu0 %724, %v481
        %v726 = vpop.permute.xlu0 %725
        %729 = vset.pattern.permute.xlu0 0
        %730 = vperm.xlu0 %729, %v482
        %v731 = vpop.permute.xlu0 %730
        %734 = vset.pattern.permute.xlu0 0
        %735 = vperm.xlu0 %734, %v483
        %v736 = vpop.permute.xlu0 %735
        %739 = vset.pattern.permute.xlu0 0
        %740 = vperm.xlu0 %739, %v484
        %v741 = vpop.permute.xlu0 %740
        %744 = vset.pattern.permute.xlu0 0
        %745 = vperm.xlu0 %744, %v485
        %v746 = vpop.permute.xlu0 %745
        %749 = vset.pattern.permute.xlu0 0
        %750 = vperm.xlu0 %749, %v486
        %v751 = vpop.permute.xlu0 %750
        %754 = vset.pattern.permute.xlu0 0
        %755 = vperm.xlu0 %754, %v487
        %v756 = vpop.permute.xlu0 %755
        %759 = vset.pattern.permute.xlu0 0
        %760 = vperm.xlu0 %759, %v488
        %v761 = vpop.permute.xlu0 %760
        %764 = vset.pattern.permute.xlu0 0
        %765 = vperm.xlu0 %764, %v489
        %v766 = vpop.permute.xlu0 %765
        %769 = vset.pattern.permute.xlu0 0
        %770 = vperm.xlu0 %769, %v490
        %v771 = vpop.permute.xlu0 %770
        %774 = vset.pattern.permute.xlu0 0
        %775 = vperm.xlu0 %774, %v491
        %v776 = vpop.permute.xlu0 %775
        %779 = vset.pattern.permute.xlu0 0
        %780 = vperm.xlu0 %779, %v492
        %v781 = vpop.permute.xlu0 %780
        %784 = vset.pattern.permute.xlu0 0
        %785 = vperm.xlu0 %784, %v493
        %v786 = vpop.permute.xlu0 %785
        %789 = vset.pattern.permute.xlu0 0
        %790 = vperm.xlu0 %789, %v494
        %v791 = vpop.permute.xlu0 %790
        %794 = vset.pattern.permute.xlu0 0
        %795 = vperm.xlu0 %794, %v495
        %v796 = vpop.permute.xlu0 %795
        %799 = vset.pattern.permute.xlu0 0
        %800 = vperm.xlu0 %799, %v496
        %v801 = vpop.permute.xlu0 %800
        %804 = vset.pattern.permute.xlu0 0
        %805 = vperm.xlu0 %804, %v497
        %v806 = vpop.permute.xlu0 %805
        %809 = vset.pattern.permute.xlu0 0
        %810 = vperm.xlu0 %809, %v498
        %v811 = vpop.permute.xlu0 %810
        %814 = vset.pattern.permute.xlu0 0
        %815 = vperm.xlu0 %814, %v499
        %v816 = vpop.permute.xlu0 %815
        %819 = vset.pattern.permute.xlu0 0
        %820 = vperm.xlu0 %819, %v500
        %v821 = vpop.permute.xlu0 %820
        %v823 = vlaneseq
        %v824 = vshrl.u32 %v823, 7
        %v825 = vsub.s32 0, %v824
        %v826 = vrot.slane %v501, %v825
        %v827 = vmul.f32 %v506, %v826
        %v828 = vmul.f32 %v511, %v826
        %v829 = vmul.f32 %v516, %v826
        %v830 = vmul.f32 %v521, %v826
        %v831 = vmul.f32 %v526, %v826
        %v832 = vmul.f32 %v531, %v826
        %v833 = vmul.f32 %v536, %v826
        %v834 = vmul.f32 %v541, %v826
        %v835 = vmul.f32 %v546, %v826
        %v836 = vmul.f32 %v551, %v826
        %v837 = vmul.f32 %v556, %v826
        %v838 = vmul.f32 %v561, %v826
        %v839 = vmul.f32 %v566, %v826
        %v840 = vmul.f32 %v571, %v826
        %v841 = vmul.f32 %v576, %v826
        %v842 = vmul.f32 %v581, %v826
        %v843 = vmul.f32 %v586, %v826
        %v844 = vmul.f32 %v591, %v826
        %v845 = vmul.f32 %v596, %v826
        %v846 = vmul.f32 %v601, %v826
        %v847 = vmul.f32 %v606, %v826
        %v848 = vmul.f32 %v611, %v826
        %v849 = vmul.f32 %v616, %v826
        %v850 = vmul.f32 %v621, %v826
        %v851 = vmul.f32 %v626, %v826
        %v852 = vmul.f32 %v631, %v826
        %v853 = vmul.f32 %v636, %v826
        %v854 = vmul.f32 %v641, %v826
        %v855 = vmul.f32 %v646, %v826
        %v856 = vmul.f32 %v651, %v826
        %v857 = vmul.f32 %v656, %v826
        %v858 = vmul.f32 %v661, %v826
        %v859 = vmul.f32 %v666, %v826
        %v860 = vmul.f32 %v671, %v826
        %v861 = vmul.f32 %v676, %v826
        %v862 = vmul.f32 %v681, %v826
        %v863 = vmul.f32 %v686, %v826
        %v864 = vmul.f32 %v691, %v826
        %v865 = vmul.f32 %v696, %v826
        %v866 = vmul.f32 %v701, %v826
        %v867 = vmul.f32 %v706, %v826
        %v868 = vmul.f32 %v711, %v826
        %v869 = vmul.f32 %v716, %v826
        %v870 = vmul.f32 %v721, %v826
        %v871 = vmul.f32 %v726, %v826
        %v872 = vmul.f32 %v731, %v826
        %v873 = vmul.f32 %v736, %v826
        %v874 = vmul.f32 %v741, %v826
        %v875 = vmul.f32 %v746, %v826
        %v876 = vmul.f32 %v751, %v826
        %v877 = vmul.f32 %v756, %v826
        %v878 = vmul.f32 %v761, %v826
        %v879 = vmul.f32 %v766, %v826
        %v880 = vmul.f32 %v771, %v826
        %v881 = vmul.f32 %v776, %v826
        %v882 = vmul.f32 %v781, %v826
        %v883 = vmul.f32 %v786, %v826
        %v884 = vmul.f32 %v791, %v826
        %v885 = vmul.f32 %v796, %v826
        %v886 = vmul.f32 %v801, %v826
        %v887 = vmul.f32 %v806, %v826
        %v888 = vmul.f32 %v811, %v826
        %v889 = vmul.f32 %v816, %v826
        %v890 = vmul.f32 %v821, %v826
        %v892 = vlaneseq
        %v893 = vshrl.u32 %v892, 7
        %v894 = vsub.s32 0, %v893
        %v895 = vrot.slane %v502, %v894
        %v897 = vadd.f32 %v827, %v895
        %v898 = vadd.f32 %v828, %v895
        %v899 = vadd.f32 %v829, %v895
        %v900 = vadd.f32 %v830, %v895
        %v901 = vadd.f32 %v831, %v895
        %v902 = vadd.f32 %v832, %v895
        %v903 = vadd.f32 %v833, %v895
        %v904 = vadd.f32 %v834, %v895
        %v905 = vadd.f32 %v835, %v895
        %v906 = vadd.f32 %v836, %v895
        %v907 = vadd.f32 %v837, %v895
        %v908 = vadd.f32 %v838, %v895
        %v909 = vadd.f32 %v839, %v895
        %v910 = vadd.f32 %v840, %v895
        %v911 = vadd.f32 %v841, %v895
        %v912 = vadd.f32 %v842, %v895
        %v913 = vadd.f32 %v843, %v895
        %v914 = vadd.f32 %v844, %v895
        %v915 = vadd.f32 %v845, %v895
        %v916 = vadd.f32 %v846, %v895
        %v917 = vadd.f32 %v847, %v895
        %v918 = vadd.f32 %v848, %v895
        %v919 = vadd.f32 %v849, %v895
        %v920 = vadd.f32 %v850, %v895
        %v921 = vadd.f32 %v851, %v895
        %v922 = vadd.f32 %v852, %v895
        %v923 = vadd.f32 %v853, %v895
        %v924 = vadd.f32 %v854, %v895
        %v925 = vadd.f32 %v855, %v895
        %v926 = vadd.f32 %v856, %v895
        %v927 = vadd.f32 %v857, %v895
        %v928 = vadd.f32 %v858, %v895
        %v929 = vadd.f32 %v859, %v895
        %v930 = vadd.f32 %v860, %v895
        %v931 = vadd.f32 %v861, %v895
        %v932 = vadd.f32 %v862, %v895
        %v933 = vadd.f32 %v863, %v895
        %v934 = vadd.f32 %v864, %v895
        %v935 = vadd.f32 %v865, %v895
        %v936 = vadd.f32 %v866, %v895
        %v937 = vadd.f32 %v867, %v895
        %v938 = vadd.f32 %v868, %v895
        %v939 = vadd.f32 %v869, %v895
        %v940 = vadd.f32 %v870, %v895
        %v941 = vadd.f32 %v871, %v895
        %v942 = vadd.f32 %v872, %v895
        %v943 = vadd.f32 %v873, %v895
        %v944 = vadd.f32 %v874, %v895
        %v945 = vadd.f32 %v875, %v895
        %v946 = vadd.f32 %v876, %v895
        %v947 = vadd.f32 %v877, %v895
        %v948 = vadd.f32 %v878, %v895
        %v949 = vadd.f32 %v879, %v895
        %v950 = vadd.f32 %v880, %v895
        %v951 = vadd.f32 %v881, %v895
        %v952 = vadd.f32 %v882, %v895
        %v953 = vadd.f32 %v883, %v895
        %v954 = vadd.f32 %v884, %v895
        %v955 = vadd.f32 %v885, %v895
        %v956 = vadd.f32 %v886, %v895
        %v957 = vadd.f32 %v887, %v895
        %v958 = vadd.f32 %v888, %v895
        %v959 = vadd.f32 %v889, %v895
        %v960 = vadd.f32 %v890, %v895
        %961 = vset.pattern.permute.xlu0 1
        %962 = vperm.xlu0 %961, %v437
        %v963 = vpop.permute.xlu0 %962
        %965 = vset.pattern.permute.xlu0 1
        %966 = vperm.xlu0 %965, %v438
        %v967 = vpop.permute.xlu0 %966
        %969 = vset.pattern.permute.xlu0 1
        %970 = vperm.xlu0 %969, %v439
        %v971 = vpop.permute.xlu0 %970
        %973 = vset.pattern.permute.xlu0 1
        %974 = vperm.xlu0 %973, %v440
        %v975 = vpop.permute.xlu0 %974
        %977 = vset.pattern.permute.xlu0 1
        %978 = vperm.xlu0 %977, %v441
        %v979 = vpop.permute.xlu0 %978
        %981 = vset.pattern.permute.xlu0 1
        %982 = vperm.xlu0 %981, %v442
        %v983 = vpop.permute.xlu0 %982
        %985 = vset.pattern.permute.xlu0 1
        %986 = vperm.xlu0 %985, %v443
        %v987 = vpop.permute.xlu0 %986
        %989 = vset.pattern.permute.xlu0 1
        %990 = vperm.xlu0 %989, %v444
        %v991 = vpop.permute.xlu0 %990
        %993 = vset.pattern.permute.xlu0 1
        %994 = vperm.xlu0 %993, %v445
        %v995 = vpop.permute.xlu0 %994
        %997 = vset.pattern.permute.xlu0 1
        %998 = vperm.xlu0 %997, %v446
        %v999 = vpop.permute.xlu0 %998
        %1001 = vset.pattern.permute.xlu0 1
        %1002 = vperm.xlu0 %1001, %v447
        %v1003 = vpop.permute.xlu0 %1002
        %1005 = vset.pattern.permute.xlu0 1
        %1006 = vperm.xlu0 %1005, %v448
        %v1007 = vpop.permute.xlu0 %1006
        %1009 = vset.pattern.permute.xlu0 1
        %1010 = vperm.xlu0 %1009, %v449
        %v1011 = vpop.permute.xlu0 %1010
        %1013 = vset.pattern.permute.xlu0 1
        %1014 = vperm.xlu0 %1013, %v450
        %v1015 = vpop.permute.xlu0 %1014
        %1017 = vset.pattern.permute.xlu0 1
        %1018 = vperm.xlu0 %1017, %v451
        %v1019 = vpop.permute.xlu0 %1018
        %1021 = vset.pattern.permute.xlu0 1
        %1022 = vperm.xlu0 %1021, %v452
        %v1023 = vpop.permute.xlu0 %1022
        %1025 = vset.pattern.permute.xlu0 1
        %1026 = vperm.xlu0 %1025, %v453
        %v1027 = vpop.permute.xlu0 %1026
        %1029 = vset.pattern.permute.xlu0 1
        %1030 = vperm.xlu0 %1029, %v454
        %v1031 = vpop.permute.xlu0 %1030
        %1033 = vset.pattern.permute.xlu0 1
        %1034 = vperm.xlu0 %1033, %v455
        %v1035 = vpop.permute.xlu0 %1034
        %1037 = vset.pattern.permute.xlu0 1
        %1038 = vperm.xlu0 %1037, %v456
        %v1039 = vpop.permute.xlu0 %1038
        %1041 = vset.pattern.permute.xlu0 1
        %1042 = vperm.xlu0 %1041, %v457
        %v1043 = vpop.permute.xlu0 %1042
        %1045 = vset.pattern.permute.xlu0 1
        %1046 = vperm.xlu0 %1045, %v458
        %v1047 = vpop.permute.xlu0 %1046
        %1049 = vset.pattern.permute.xlu0 1
        %1050 = vperm.xlu0 %1049, %v459
        %v1051 = vpop.permute.xlu0 %1050
        %1053 = vset.pattern.permute.xlu0 1
        %1054 = vperm.xlu0 %1053, %v460
        %v1055 = vpop.permute.xlu0 %1054
        %1057 = vset.pattern.permute.xlu0 1
        %1058 = vperm.xlu0 %1057, %v461
        %v1059 = vpop.permute.xlu0 %1058
        %1061 = vset.pattern.permute.xlu0 1
        %1062 = vperm.xlu0 %1061, %v462
        %v1063 = vpop.permute.xlu0 %1062
        %1065 = vset.pattern.permute.xlu0 1
        %1066 = vperm.xlu0 %1065, %v463
        %v1067 = vpop.permute.xlu0 %1066
        %1069 = vset.pattern.permute.xlu0 1
        %1070 = vperm.xlu0 %1069, %v464
        %v1071 = vpop.permute.xlu0 %1070
        %1073 = vset.pattern.permute.xlu0 1
        %1074 = vperm.xlu0 %1073, %v465
        %v1075 = vpop.permute.xlu0 %1074
        %1077 = vset.pattern.permute.xlu0 1
        %1078 = vperm.xlu0 %1077, %v466
        %v1079 = vpop.permute.xlu0 %1078
        %1081 = vset.pattern.permute.xlu0 1
        %1082 = vperm.xlu0 %1081, %v467
        %v1083 = vpop.permute.xlu0 %1082
        %1085 = vset.pattern.permute.xlu0 1
        %1086 = vperm.xlu0 %1085, %v468
        %v1087 = vpop.permute.xlu0 %1086
        %1089 = vset.pattern.permute.xlu0 1
        %1090 = vperm.xlu0 %1089, %v469
        %v1091 = vpop.permute.xlu0 %1090
        %1093 = vset.pattern.permute.xlu0 1
        %1094 = vperm.xlu0 %1093, %v470
        %v1095 = vpop.permute.xlu0 %1094
        %1097 = vset.pattern.permute.xlu0 1
        %1098 = vperm.xlu0 %1097, %v471
        %v1099 = vpop.permute.xlu0 %1098
        %1101 = vset.pattern.permute.xlu0 1
        %1102 = vperm.xlu0 %1101, %v472
        %v1103 = vpop.permute.xlu0 %1102
        %1105 = vset.pattern.permute.xlu0 1
        %1106 = vperm.xlu0 %1105, %v473
        %v1107 = vpop.permute.xlu0 %1106
        %1109 = vset.pattern.permute.xlu0 1
        %1110 = vperm.xlu0 %1109, %v474
        %v1111 = vpop.permute.xlu0 %1110
        %1113 = vset.pattern.permute.xlu0 1
        %1114 = vperm.xlu0 %1113, %v475
        %v1115 = vpop.permute.xlu0 %1114
        %1117 = vset.pattern.permute.xlu0 1
        %1118 = vperm.xlu0 %1117, %v476
        %v1119 = vpop.permute.xlu0 %1118
        %1121 = vset.pattern.permute.xlu0 1
        %1122 = vperm.xlu0 %1121, %v477
        %v1123 = vpop.permute.xlu0 %1122
        %1125 = vset.pattern.permute.xlu0 1
        %1126 = vperm.xlu0 %1125, %v478
        %v1127 = vpop.permute.xlu0 %1126
        %1129 = vset.pattern.permute.xlu0 1
        %1130 = vperm.xlu0 %1129, %v479
        %v1131 = vpop.permute.xlu0 %1130
        %1133 = vset.pattern.permute.xlu0 1
        %1134 = vperm.xlu0 %1133, %v480
        %v1135 = vpop.permute.xlu0 %1134
        %1137 = vset.pattern.permute.xlu0 1
        %1138 = vperm.xlu0 %1137, %v481
        %v1139 = vpop.permute.xlu0 %1138
        %1141 = vset.pattern.permute.xlu0 1
        %1142 = vperm.xlu0 %1141, %v482
        %v1143 = vpop.permute.xlu0 %1142
        %1145 = vset.pattern.permute.xlu0 1
        %1146 = vperm.xlu0 %1145, %v483
        %v1147 = vpop.permute.xlu0 %1146
        %1149 = vset.pattern.permute.xlu0 1
        %1150 = vperm.xlu0 %1149, %v484
        %v1151 = vpop.permute.xlu0 %1150
        %1153 = vset.pattern.permute.xlu0 1
        %1154 = vperm.xlu0 %1153, %v485
        %v1155 = vpop.permute.xlu0 %1154
        %1157 = vset.pattern.permute.xlu0 1
        %1158 = vperm.xlu0 %1157, %v486
        %v1159 = vpop.permute.xlu0 %1158
        %1161 = vset.pattern.permute.xlu0 1
        %1162 = vperm.xlu0 %1161, %v487
        %v1163 = vpop.permute.xlu0 %1162
        %1165 = vset.pattern.permute.xlu0 1
        %1166 = vperm.xlu0 %1165, %v488
        %v1167 = vpop.permute.xlu0 %1166
        %1169 = vset.pattern.permute.xlu0 1
        %1170 = vperm.xlu0 %1169, %v489
        %v1171 = vpop.permute.xlu0 %1170
        %1173 = vset.pattern.permute.xlu0 1
        %1174 = vperm.xlu0 %1173, %v490
        %v1175 = vpop.permute.xlu0 %1174
        %1177 = vset.pattern.permute.xlu0 1
        %1178 = vperm.xlu0 %1177, %v491
        %v1179 = vpop.permute.xlu0 %1178
        %1181 = vset.pattern.permute.xlu0 1
        %1182 = vperm.xlu0 %1181, %v492
        %v1183 = vpop.permute.xlu0 %1182
        %1185 = vset.pattern.permute.xlu0 1
        %1186 = vperm.xlu0 %1185, %v493
        %v1187 = vpop.permute.xlu0 %1186
        %1189 = vset.pattern.permute.xlu0 1
        %1190 = vperm.xlu0 %1189, %v494
        %v1191 = vpop.permute.xlu0 %1190
        %1193 = vset.pattern.permute.xlu0 1
        %1194 = vperm.xlu0 %1193, %v495
        %v1195 = vpop.permute.xlu0 %1194
        %1197 = vset.pattern.permute.xlu0 1
        %1198 = vperm.xlu0 %1197, %v496
        %v1199 = vpop.permute.xlu0 %1198
        %1201 = vset.pattern.permute.xlu0 1
        %1202 = vperm.xlu0 %1201, %v497
        %v1203 = vpop.permute.xlu0 %1202
        %1205 = vset.pattern.permute.xlu0 1
        %1206 = vperm.xlu0 %1205, %v498
        %v1207 = vpop.permute.xlu0 %1206
        %1209 = vset.pattern.permute.xlu0 1
        %1210 = vperm.xlu0 %1209, %v499
        %v1211 = vpop.permute.xlu0 %1210
        %1213 = vset.pattern.permute.xlu0 1
        %1214 = vperm.xlu0 %1213, %v500
        %v1215 = vpop.permute.xlu0 %1214
        %v1217 = vlaneseq
        %v1218 = vshrl.u32 %v1217, 7
        %v1219 = vsub.s32 1, %v1218
        %v1220 = vrot.slane %v501, %v1219
        %v1221 = vmul.f32 %v963, %v1220
        %v1222 = vmul.f32 %v967, %v1220
        %v1223 = vmul.f32 %v971, %v1220
        %v1224 = vmul.f32 %v975, %v1220
        %v1225 = vmul.f32 %v979, %v1220
        %v1226 = vmul.f32 %v983, %v1220
        %v1227 = vmul.f32 %v987, %v1220
        %v1228 = vmul.f32 %v991, %v1220
        %v1229 = vmul.f32 %v995, %v1220
        %v1230 = vmul.f32 %v999, %v1220
        %v1231 = vmul.f32 %v1003, %v1220
        %v1232 = vmul.f32 %v1007, %v1220
        %v1233 = vmul.f32 %v1011, %v1220
        %v1234 = vmul.f32 %v1015, %v1220
        %v1235 = vmul.f32 %v1019, %v1220
        %v1236 = vmul.f32 %v1023, %v1220
        %v1237 = vmul.f32 %v1027, %v1220
        %v1238 = vmul.f32 %v1031, %v1220
        %v1239 = vmul.f32 %v1035, %v1220
        %v1240 = vmul.f32 %v1039, %v1220
        %v1241 = vmul.f32 %v1043, %v1220
        %v1242 = vmul.f32 %v1047, %v1220
        %v1243 = vmul.f32 %v1051, %v1220
        %v1244 = vmul.f32 %v1055, %v1220
        %v1245 = vmul.f32 %v1059, %v1220
        %v1246 = vmul.f32 %v1063, %v1220
        %v1247 = vmul.f32 %v1067, %v1220
        %v1248 = vmul.f32 %v1071, %v1220
        %v1249 = vmul.f32 %v1075, %v1220
        %v1250 = vmul.f32 %v1079, %v1220
        %v1251 = vmul.f32 %v1083, %v1220
        %v1252 = vmul.f32 %v1087, %v1220
        %v1253 = vmul.f32 %v1091, %v1220
        %v1254 = vmul.f32 %v1095, %v1220
        %v1255 = vmul.f32 %v1099, %v1220
        %v1256 = vmul.f32 %v1103, %v1220
        %v1257 = vmul.f32 %v1107, %v1220
        %v1258 = vmul.f32 %v1111, %v1220
        %v1259 = vmul.f32 %v1115, %v1220
        %v1260 = vmul.f32 %v1119, %v1220
        %v1261 = vmul.f32 %v1123, %v1220
        %v1262 = vmul.f32 %v1127, %v1220
        %v1263 = vmul.f32 %v1131, %v1220
        %v1264 = vmul.f32 %v1135, %v1220
        %v1265 = vmul.f32 %v1139, %v1220
        %v1266 = vmul.f32 %v1143, %v1220
        %v1267 = vmul.f32 %v1147, %v1220
        %v1268 = vmul.f32 %v1151, %v1220
        %v1269 = vmul.f32 %v1155, %v1220
        %v1270 = vmul.f32 %v1159, %v1220
        %v1271 = vmul.f32 %v1163, %v1220
        %v1272 = vmul.f32 %v1167, %v1220
        %v1273 = vmul.f32 %v1171, %v1220
        %v1274 = vmul.f32 %v1175, %v1220
        %v1275 = vmul.f32 %v1179, %v1220
        %v1276 = vmul.f32 %v1183, %v1220
        %v1277 = vmul.f32 %v1187, %v1220
        %v1278 = vmul.f32 %v1191, %v1220
        %v1279 = vmul.f32 %v1195, %v1220
        %v1280 = vmul.f32 %v1199, %v1220
        %v1281 = vmul.f32 %v1203, %v1220
        %v1282 = vmul.f32 %v1207, %v1220
        %v1283 = vmul.f32 %v1211, %v1220
        %v1284 = vmul.f32 %v1215, %v1220
        %v1285 = vadd.f32 %v897, %v1221
        %v1286 = vadd.f32 %v898, %v1222
        %v1287 = vadd.f32 %v899, %v1223
        %v1288 = vadd.f32 %v900, %v1224
        %v1289 = vadd.f32 %v901, %v1225
        %v1290 = vadd.f32 %v902, %v1226
        %v1291 = vadd.f32 %v903, %v1227
        %v1292 = vadd.f32 %v904, %v1228
        %v1293 = vadd.f32 %v905, %v1229
        %v1294 = vadd.f32 %v906, %v1230
        %v1295 = vadd.f32 %v907, %v1231
        %v1296 = vadd.f32 %v908, %v1232
        %v1297 = vadd.f32 %v909, %v1233
        %v1298 = vadd.f32 %v910, %v1234
        %v1299 = vadd.f32 %v911, %v1235
        %v1300 = vadd.f32 %v912, %v1236
        %v1301 = vadd.f32 %v913, %v1237
        %v1302 = vadd.f32 %v914, %v1238
        %v1303 = vadd.f32 %v915, %v1239
        %v1304 = vadd.f32 %v916, %v1240
        %v1305 = vadd.f32 %v917, %v1241
        %v1306 = vadd.f32 %v918, %v1242
        %v1307 = vadd.f32 %v919, %v1243
        %v1308 = vadd.f32 %v920, %v1244
        %v1309 = vadd.f32 %v921, %v1245
        %v1310 = vadd.f32 %v922, %v1246
        %v1311 = vadd.f32 %v923, %v1247
        %v1312 = vadd.f32 %v924, %v1248
        %v1313 = vadd.f32 %v925, %v1249
        %v1314 = vadd.f32 %v926, %v1250
        %v1315 = vadd.f32 %v927, %v1251
        %v1316 = vadd.f32 %v928, %v1252
        %v1317 = vadd.f32 %v929, %v1253
        %v1318 = vadd.f32 %v930, %v1254
        %v1319 = vadd.f32 %v931, %v1255
        %v1320 = vadd.f32 %v932, %v1256
        %v1321 = vadd.f32 %v933, %v1257
        %v1322 = vadd.f32 %v934, %v1258
        %v1323 = vadd.f32 %v935, %v1259
        %v1324 = vadd.f32 %v936, %v1260
        %v1325 = vadd.f32 %v937, %v1261
        %v1326 = vadd.f32 %v938, %v1262
        %v1327 = vadd.f32 %v939, %v1263
        %v1328 = vadd.f32 %v940, %v1264
        %v1329 = vadd.f32 %v941, %v1265
        %v1330 = vadd.f32 %v942, %v1266
        %v1331 = vadd.f32 %v943, %v1267
        %v1332 = vadd.f32 %v944, %v1268
        %v1333 = vadd.f32 %v945, %v1269
        %v1334 = vadd.f32 %v946, %v1270
        %v1335 = vadd.f32 %v947, %v1271
        %v1336 = vadd.f32 %v948, %v1272
        %v1337 = vadd.f32 %v949, %v1273
        %v1338 = vadd.f32 %v950, %v1274
        %v1339 = vadd.f32 %v951, %v1275
        %v1340 = vadd.f32 %v952, %v1276
        %v1341 = vadd.f32 %v953, %v1277
        %v1342 = vadd.f32 %v954, %v1278
        %v1343 = vadd.f32 %v955, %v1279
        %v1344 = vadd.f32 %v956, %v1280
        %v1345 = vadd.f32 %v957, %v1281
        %v1346 = vadd.f32 %v958, %v1282
        %v1347 = vadd.f32 %v959, %v1283
        %v1348 = vadd.f32 %v960, %v1284
        %v1349 = vld [vmem:[%s434] sm:$0xff]
        %v1350 = vld [vmem:[%s434 + $0x8] sm:$0xff]
        %v1351 = vld [vmem:[%s434 + $0x10] sm:$0xff]
        %v1352 = vld [vmem:[%s434 + $0x18] sm:$0xff]
        %v1353 = vld [vmem:[%s434 + $0x20] sm:$0xff]
        %v1354 = vld [vmem:[%s434 + $0x28] sm:$0xff]
        %v1355 = vld [vmem:[%s434 + $0x30] sm:$0xff]
        %v1356 = vld [vmem:[%s434 + $0x38] sm:$0xff]
        %v1357 = vld [vmem:[%s434 + $0x40] sm:$0xff]
        %v1358 = vld [vmem:[%s434 + $0x48] sm:$0xff]
        %v1359 = vld [vmem:[%s434 + $0x50] sm:$0xff]
        %v1360 = vld [vmem:[%s434 + $0x58] sm:$0xff]
        %v1361 = vld [vmem:[%s434 + $0x60] sm:$0xff]
        %v1362 = vld [vmem:[%s434 + $0x68] sm:$0xff]
        %v1363 = vld [vmem:[%s434 + $0x70] sm:$0xff]
        %v1364 = vld [vmem:[%s434 + $0x78] sm:$0xff]
        %v1365 = vld [vmem:[%s434 + $0x80] sm:$0xff]
        %v1366 = vld [vmem:[%s434 + $0x88] sm:$0xff]
        %v1367 = vld [vmem:[%s434 + $0x90] sm:$0xff]
        %v1368 = vld [vmem:[%s434 + $0x98] sm:$0xff]
        %v1369 = vld [vmem:[%s434 + $0xa0] sm:$0xff]
        %v1370 = vld [vmem:[%s434 + $0xa8] sm:$0xff]
        %v1371 = vld [vmem:[%s434 + $0xb0] sm:$0xff]
        %v1372 = vld [vmem:[%s434 + $0xb8] sm:$0xff]
        %v1373 = vld [vmem:[%s434 + $0xc0] sm:$0xff]
        %v1374 = vld [vmem:[%s434 + $0xc8] sm:$0xff]
        %v1375 = vld [vmem:[%s434 + $0xd0] sm:$0xff]
        %v1376 = vld [vmem:[%s434 + $0xd8] sm:$0xff]
        %v1377 = vld [vmem:[%s434 + $0xe0] sm:$0xff]
        %v1378 = vld [vmem:[%s434 + $0xe8] sm:$0xff]
        %v1379 = vld [vmem:[%s434 + $0xf0] sm:$0xff]
        %v1380 = vld [vmem:[%s434 + $0xf8] sm:$0xff]
        %v1381 = vld [vmem:[%s434 + $0x100] sm:$0xff]
        %v1382 = vld [vmem:[%s434 + $0x108] sm:$0xff]
        %v1383 = vld [vmem:[%s434 + $0x110] sm:$0xff]
        %v1384 = vld [vmem:[%s434 + $0x118] sm:$0xff]
        %v1385 = vld [vmem:[%s434 + $0x120] sm:$0xff]
        %v1386 = vld [vmem:[%s434 + $0x128] sm:$0xff]
        %v1387 = vld [vmem:[%s434 + $0x130] sm:$0xff]
        %v1388 = vld [vmem:[%s434 + $0x138] sm:$0xff]
        %v1389 = vld [vmem:[%s434 + $0x140] sm:$0xff]
        %v1390 = vld [vmem:[%s434 + $0x148] sm:$0xff]
        %v1391 = vld [vmem:[%s434 + $0x150] sm:$0xff]
        %v1392 = vld [vmem:[%s434 + $0x158] sm:$0xff]
        %v1393 = vld [vmem:[%s434 + $0x160] sm:$0xff]
        %v1394 = vld [vmem:[%s434 + $0x168] sm:$0xff]
        %v1395 = vld [vmem:[%s434 + $0x170] sm:$0xff]
        %v1396 = vld [vmem:[%s434 + $0x178] sm:$0xff]
        %v1397 = vld [vmem:[%s434 + $0x180] sm:$0xff]
        %v1398 = vld [vmem:[%s434 + $0x188] sm:$0xff]
        %v1399 = vld [vmem:[%s434 + $0x190] sm:$0xff]
        %v1400 = vld [vmem:[%s434 + $0x198] sm:$0xff]
        %v1401 = vld [vmem:[%s434 + $0x1a0] sm:$0xff]
        %v1402 = vld [vmem:[%s434 + $0x1a8] sm:$0xff]
        %v1403 = vld [vmem:[%s434 + $0x1b0] sm:$0xff]
        %v1404 = vld [vmem:[%s434 + $0x1b8] sm:$0xff]
        %v1405 = vld [vmem:[%s434 + $0x1c0] sm:$0xff]
        %v1406 = vld [vmem:[%s434 + $0x1c8] sm:$0xff]
        %v1407 = vld [vmem:[%s434 + $0x1d0] sm:$0xff]
        %v1408 = vld [vmem:[%s434 + $0x1d8] sm:$0xff]
        %v1409 = vld [vmem:[%s434 + $0x1e0] sm:$0xff]
        %v1410 = vld [vmem:[%s434 + $0x1e8] sm:$0xff]
        %v1411 = vld [vmem:[%s434 + $0x1f0] sm:$0xff]
        %v1412 = vld [vmem:[%s434 + $0x1f8] sm:$0xff]
        %v1413 = vld [vmem:[%s4] sm:$0x3]
        %v1414 = vld [vmem:[%s5] sm:$0x1]
        %1416 = vset.pattern.permute.xlu0 0
        %1417 = vperm.xlu0 %1416, %v1349
        %v1418 = vpop.permute.xlu0 %1417
        %1421 = vset.pattern.permute.xlu0 0
        %1422 = vperm.xlu0 %1421, %v1350
        %v1423 = vpop.permute.xlu0 %1422
        %1426 = vset.pattern.permute.xlu0 0
        %1427 = vperm.xlu0 %1426, %v1351
        %v1428 = vpop.permute.xlu0 %1427
        %1431 = vset.pattern.permute.xlu0 0
        %1432 = vperm.xlu0 %1431, %v1352
        %v1433 = vpop.permute.xlu0 %1432
        %1436 = vset.pattern.permute.xlu0 0
        %1437 = vperm.xlu0 %1436, %v1353
        %v1438 = vpop.permute.xlu0 %1437
        %1441 = vset.pattern.permute.xlu0 0
        %1442 = vperm.xlu0 %1441, %v1354
        %v1443 = vpop.permute.xlu0 %1442
        %1446 = vset.pattern.permute.xlu0 0
        %1447 = vperm.xlu0 %1446, %v1355
        %v1448 = vpop.permute.xlu0 %1447
        %1451 = vset.pattern.permute.xlu0 0
        %1452 = vperm.xlu0 %1451, %v1356
        %v1453 = vpop.permute.xlu0 %1452
        %1456 = vset.pattern.permute.xlu0 0
        %1457 = vperm.xlu0 %1456, %v1357
        %v1458 = vpop.permute.xlu0 %1457
        %1461 = vset.pattern.permute.xlu0 0
        %1462 = vperm.xlu0 %1461, %v1358
        %v1463 = vpop.permute.xlu0 %1462
        %1466 = vset.pattern.permute.xlu0 0
        %1467 = vperm.xlu0 %1466, %v1359
        %v1468 = vpop.permute.xlu0 %1467
        %1471 = vset.pattern.permute.xlu0 0
        %1472 = vperm.xlu0 %1471, %v1360
        %v1473 = vpop.permute.xlu0 %1472
        %1476 = vset.pattern.permute.xlu0 0
        %1477 = vperm.xlu0 %1476, %v1361
        %v1478 = vpop.permute.xlu0 %1477
        %1481 = vset.pattern.permute.xlu0 0
        %1482 = vperm.xlu0 %1481, %v1362
        %v1483 = vpop.permute.xlu0 %1482
        %1486 = vset.pattern.permute.xlu0 0
        %1487 = vperm.xlu0 %1486, %v1363
        %v1488 = vpop.permute.xlu0 %1487
        %1491 = vset.pattern.permute.xlu0 0
        %1492 = vperm.xlu0 %1491, %v1364
        %v1493 = vpop.permute.xlu0 %1492
        %1496 = vset.pattern.permute.xlu0 0
        %1497 = vperm.xlu0 %1496, %v1365
        %v1498 = vpop.permute.xlu0 %1497
        %1501 = vset.pattern.permute.xlu0 0
        %1502 = vperm.xlu0 %1501, %v1366
        %v1503 = vpop.permute.xlu0 %1502
        %1506 = vset.pattern.permute.xlu0 0
        %1507 = vperm.xlu0 %1506, %v1367
        %v1508 = vpop.permute.xlu0 %1507
        %1511 = vset.pattern.permute.xlu0 0
        %1512 = vperm.xlu0 %1511, %v1368
        %v1513 = vpop.permute.xlu0 %1512
        %1516 = vset.pattern.permute.xlu0 0
        %1517 = vperm.xlu0 %1516, %v1369
        %v1518 = vpop.permute.xlu0 %1517
        %1521 = vset.pattern.permute.xlu0 0
        %1522 = vperm.xlu0 %1521, %v1370
        %v1523 = vpop.permute.xlu0 %1522
        %1526 = vset.pattern.permute.xlu0 0
        %1527 = vperm.xlu0 %1526, %v1371
        %v1528 = vpop.permute.xlu0 %1527
        %1531 = vset.pattern.permute.xlu0 0
        %1532 = vperm.xlu0 %1531, %v1372
        %v1533 = vpop.permute.xlu0 %1532
        %1536 = vset.pattern.permute.xlu0 0
        %1537 = vperm.xlu0 %1536, %v1373
        %v1538 = vpop.permute.xlu0 %1537
        %1541 = vset.pattern.permute.xlu0 0
        %1542 = vperm.xlu0 %1541, %v1374
        %v1543 = vpop.permute.xlu0 %1542
        %1546 = vset.pattern.permute.xlu0 0
        %1547 = vperm.xlu0 %1546, %v1375
        %v1548 = vpop.permute.xlu0 %1547
        %1551 = vset.pattern.permute.xlu0 0
        %1552 = vperm.xlu0 %1551, %v1376
        %v1553 = vpop.permute.xlu0 %1552
        %1556 = vset.pattern.permute.xlu0 0
        %1557 = vperm.xlu0 %1556, %v1377
        %v1558 = vpop.permute.xlu0 %1557
        %1561 = vset.pattern.permute.xlu0 0
        %1562 = vperm.xlu0 %1561, %v1378
        %v1563 = vpop.permute.xlu0 %1562
        %1566 = vset.pattern.permute.xlu0 0
        %1567 = vperm.xlu0 %1566, %v1379
        %v1568 = vpop.permute.xlu0 %1567
        %1571 = vset.pattern.permute.xlu0 0
        %1572 = vperm.xlu0 %1571, %v1380
        %v1573 = vpop.permute.xlu0 %1572
        %1576 = vset.pattern.permute.xlu0 0
        %1577 = vperm.xlu0 %1576, %v1381
        %v1578 = vpop.permute.xlu0 %1577
        %1581 = vset.pattern.permute.xlu0 0
        %1582 = vperm.xlu0 %1581, %v1382
        %v1583 = vpop.permute.xlu0 %1582
        %1586 = vset.pattern.permute.xlu0 0
        %1587 = vperm.xlu0 %1586, %v1383
        %v1588 = vpop.permute.xlu0 %1587
        %1591 = vset.pattern.permute.xlu0 0
        %1592 = vperm.xlu0 %1591, %v1384
        %v1593 = vpop.permute.xlu0 %1592
        %1596 = vset.pattern.permute.xlu0 0
        %1597 = vperm.xlu0 %1596, %v1385
        %v1598 = vpop.permute.xlu0 %1597
        %1601 = vset.pattern.permute.xlu0 0
        %1602 = vperm.xlu0 %1601, %v1386
        %v1603 = vpop.permute.xlu0 %1602
        %1606 = vset.pattern.permute.xlu0 0
        %1607 = vperm.xlu0 %1606, %v1387
        %v1608 = vpop.permute.xlu0 %1607
        %1611 = vset.pattern.permute.xlu0 0
        %1612 = vperm.xlu0 %1611, %v1388
        %v1613 = vpop.permute.xlu0 %1612
        %1616 = vset.pattern.permute.xlu0 0
        %1617 = vperm.xlu0 %1616, %v1389
        %v1618 = vpop.permute.xlu0 %1617
        %1621 = vset.pattern.permute.xlu0 0
        %1622 = vperm.xlu0 %1621, %v1390
        %v1623 = vpop.permute.xlu0 %1622
        %1626 = vset.pattern.permute.xlu0 0
        %1627 = vperm.xlu0 %1626, %v1391
        %v1628 = vpop.permute.xlu0 %1627
        %1631 = vset.pattern.permute.xlu0 0
        %1632 = vperm.xlu0 %1631, %v1392
        %v1633 = vpop.permute.xlu0 %1632
        %1636 = vset.pattern.permute.xlu0 0
        %1637 = vperm.xlu0 %1636, %v1393
        %v1638 = vpop.permute.xlu0 %1637
        %1641 = vset.pattern.permute.xlu0 0
        %1642 = vperm.xlu0 %1641, %v1394
        %v1643 = vpop.permute.xlu0 %1642
        %1646 = vset.pattern.permute.xlu0 0
        %1647 = vperm.xlu0 %1646, %v1395
        %v1648 = vpop.permute.xlu0 %1647
        %1651 = vset.pattern.permute.xlu0 0
        %1652 = vperm.xlu0 %1651, %v1396
        %v1653 = vpop.permute.xlu0 %1652
        %1656 = vset.pattern.permute.xlu0 0
        %1657 = vperm.xlu0 %1656, %v1397
        %v1658 = vpop.permute.xlu0 %1657
        %1661 = vset.pattern.permute.xlu0 0
        %1662 = vperm.xlu0 %1661, %v1398
        %v1663 = vpop.permute.xlu0 %1662
        %1666 = vset.pattern.permute.xlu0 0
        %1667 = vperm.xlu0 %1666, %v1399
        %v1668 = vpop.permute.xlu0 %1667
        %1671 = vset.pattern.permute.xlu0 0
        %1672 = vperm.xlu0 %1671, %v1400
        %v1673 = vpop.permute.xlu0 %1672
        %1676 = vset.pattern.permute.xlu0 0
        %1677 = vperm.xlu0 %1676, %v1401
        %v1678 = vpop.permute.xlu0 %1677
        %1681 = vset.pattern.permute.xlu0 0
        %1682 = vperm.xlu0 %1681, %v1402
        %v1683 = vpop.permute.xlu0 %1682
        %1686 = vset.pattern.permute.xlu0 0
        %1687 = vperm.xlu0 %1686, %v1403
        %v1688 = vpop.permute.xlu0 %1687
        %1691 = vset.pattern.permute.xlu0 0
        %1692 = vperm.xlu0 %1691, %v1404
        %v1693 = vpop.permute.xlu0 %1692
        %1696 = vset.pattern.permute.xlu0 0
        %1697 = vperm.xlu0 %1696, %v1405
        %v1698 = vpop.permute.xlu0 %1697
        %1701 = vset.pattern.permute.xlu0 0
        %1702 = vperm.xlu0 %1701, %v1406
        %v1703 = vpop.permute.xlu0 %1702
        %1706 = vset.pattern.permute.xlu0 0
        %1707 = vperm.xlu0 %1706, %v1407
        %v1708 = vpop.permute.xlu0 %1707
        %1711 = vset.pattern.permute.xlu0 0
        %1712 = vperm.xlu0 %1711, %v1408
        %v1713 = vpop.permute.xlu0 %1712
        %1716 = vset.pattern.permute.xlu0 0
        %1717 = vperm.xlu0 %1716, %v1409
        %v1718 = vpop.permute.xlu0 %1717
        %1721 = vset.pattern.permute.xlu0 0
        %1722 = vperm.xlu0 %1721, %v1410
        %v1723 = vpop.permute.xlu0 %1722
        %1726 = vset.pattern.permute.xlu0 0
        %1727 = vperm.xlu0 %1726, %v1411
        %v1728 = vpop.permute.xlu0 %1727
        %1731 = vset.pattern.permute.xlu0 0
        %1732 = vperm.xlu0 %1731, %v1412
        %v1733 = vpop.permute.xlu0 %1732
        %v1735 = vlaneseq
        %v1736 = vshrl.u32 %v1735, 7
        %v1737 = vsub.s32 0, %v1736
        %v1738 = vrot.slane %v1413, %v1737
        %v1739 = vmul.f32 %v1418, %v1738
        %v1740 = vmul.f32 %v1423, %v1738
        %v1741 = vmul.f32 %v1428, %v1738
        %v1742 = vmul.f32 %v1433, %v1738
        %v1743 = vmul.f32 %v1438, %v1738
        %v1744 = vmul.f32 %v1443, %v1738
        %v1745 = vmul.f32 %v1448, %v1738
        %v1746 = vmul.f32 %v1453, %v1738
        %v1747 = vmul.f32 %v1458, %v1738
        %v1748 = vmul.f32 %v1463, %v1738
        %v1749 = vmul.f32 %v1468, %v1738
        %v1750 = vmul.f32 %v1473, %v1738
        %v1751 = vmul.f32 %v1478, %v1738
        %v1752 = vmul.f32 %v1483, %v1738
        %v1753 = vmul.f32 %v1488, %v1738
        %v1754 = vmul.f32 %v1493, %v1738
        %v1755 = vmul.f32 %v1498, %v1738
        %v1756 = vmul.f32 %v1503, %v1738
        %v1757 = vmul.f32 %v1508, %v1738
        %v1758 = vmul.f32 %v1513, %v1738
        %v1759 = vmul.f32 %v1518, %v1738
        %v1760 = vmul.f32 %v1523, %v1738
        %v1761 = vmul.f32 %v1528, %v1738
        %v1762 = vmul.f32 %v1533, %v1738
        %v1763 = vmul.f32 %v1538, %v1738
        %v1764 = vmul.f32 %v1543, %v1738
        %v1765 = vmul.f32 %v1548, %v1738
        %v1766 = vmul.f32 %v1553, %v1738
        %v1767 = vmul.f32 %v1558, %v1738
        %v1768 = vmul.f32 %v1563, %v1738
        %v1769 = vmul.f32 %v1568, %v1738
        %v1770 = vmul.f32 %v1573, %v1738
        %v1771 = vmul.f32 %v1578, %v1738
        %v1772 = vmul.f32 %v1583, %v1738
        %v1773 = vmul.f32 %v1588, %v1738
        %v1774 = vmul.f32 %v1593, %v1738
        %v1775 = vmul.f32 %v1598, %v1738
        %v1776 = vmul.f32 %v1603, %v1738
        %v1777 = vmul.f32 %v1608, %v1738
        %v1778 = vmul.f32 %v1613, %v1738
        %v1779 = vmul.f32 %v1618, %v1738
        %v1780 = vmul.f32 %v1623, %v1738
        %v1781 = vmul.f32 %v1628, %v1738
        %v1782 = vmul.f32 %v1633, %v1738
        %v1783 = vmul.f32 %v1638, %v1738
        %v1784 = vmul.f32 %v1643, %v1738
        %v1785 = vmul.f32 %v1648, %v1738
        %v1786 = vmul.f32 %v1653, %v1738
        %v1787 = vmul.f32 %v1658, %v1738
        %v1788 = vmul.f32 %v1663, %v1738
        %v1789 = vmul.f32 %v1668, %v1738
        %v1790 = vmul.f32 %v1673, %v1738
        %v1791 = vmul.f32 %v1678, %v1738
        %v1792 = vmul.f32 %v1683, %v1738
        %v1793 = vmul.f32 %v1688, %v1738
        %v1794 = vmul.f32 %v1693, %v1738
        %v1795 = vmul.f32 %v1698, %v1738
        %v1796 = vmul.f32 %v1703, %v1738
        %v1797 = vmul.f32 %v1708, %v1738
        %v1798 = vmul.f32 %v1713, %v1738
        %v1799 = vmul.f32 %v1718, %v1738
        %v1800 = vmul.f32 %v1723, %v1738
        %v1801 = vmul.f32 %v1728, %v1738
        %v1802 = vmul.f32 %v1733, %v1738
        %v1804 = vlaneseq
        %v1805 = vshrl.u32 %v1804, 7
        %v1806 = vsub.s32 0, %v1805
        %v1807 = vrot.slane %v1414, %v1806
        %v1809 = vadd.f32 %v1739, %v1807
        %v1810 = vadd.f32 %v1740, %v1807
        %v1811 = vadd.f32 %v1741, %v1807
        %v1812 = vadd.f32 %v1742, %v1807
        %v1813 = vadd.f32 %v1743, %v1807
        %v1814 = vadd.f32 %v1744, %v1807
        %v1815 = vadd.f32 %v1745, %v1807
        %v1816 = vadd.f32 %v1746, %v1807
        %v1817 = vadd.f32 %v1747, %v1807
        %v1818 = vadd.f32 %v1748, %v1807
        %v1819 = vadd.f32 %v1749, %v1807
        %v1820 = vadd.f32 %v1750, %v1807
        %v1821 = vadd.f32 %v1751, %v1807
        %v1822 = vadd.f32 %v1752, %v1807
        %v1823 = vadd.f32 %v1753, %v1807
        %v1824 = vadd.f32 %v1754, %v1807
        %v1825 = vadd.f32 %v1755, %v1807
        %v1826 = vadd.f32 %v1756, %v1807
        %v1827 = vadd.f32 %v1757, %v1807
        %v1828 = vadd.f32 %v1758, %v1807
        %v1829 = vadd.f32 %v1759, %v1807
        %v1830 = vadd.f32 %v1760, %v1807
        %v1831 = vadd.f32 %v1761, %v1807
        %v1832 = vadd.f32 %v1762, %v1807
        %v1833 = vadd.f32 %v1763, %v1807
        %v1834 = vadd.f32 %v1764, %v1807
        %v1835 = vadd.f32 %v1765, %v1807
        %v1836 = vadd.f32 %v1766, %v1807
        %v1837 = vadd.f32 %v1767, %v1807
        %v1838 = vadd.f32 %v1768, %v1807
        %v1839 = vadd.f32 %v1769, %v1807
        %v1840 = vadd.f32 %v1770, %v1807
        %v1841 = vadd.f32 %v1771, %v1807
        %v1842 = vadd.f32 %v1772, %v1807
        %v1843 = vadd.f32 %v1773, %v1807
        %v1844 = vadd.f32 %v1774, %v1807
        %v1845 = vadd.f32 %v1775, %v1807
        %v1846 = vadd.f32 %v1776, %v1807
        %v1847 = vadd.f32 %v1777, %v1807
        %v1848 = vadd.f32 %v1778, %v1807
        %v1849 = vadd.f32 %v1779, %v1807
        %v1850 = vadd.f32 %v1780, %v1807
        %v1851 = vadd.f32 %v1781, %v1807
        %v1852 = vadd.f32 %v1782, %v1807
        %v1853 = vadd.f32 %v1783, %v1807
        %v1854 = vadd.f32 %v1784, %v1807
        %v1855 = vadd.f32 %v1785, %v1807
        %v1856 = vadd.f32 %v1786, %v1807
        %v1857 = vadd.f32 %v1787, %v1807
        %v1858 = vadd.f32 %v1788, %v1807
        %v1859 = vadd.f32 %v1789, %v1807
        %v1860 = vadd.f32 %v1790, %v1807
        %v1861 = vadd.f32 %v1791, %v1807
        %v1862 = vadd.f32 %v1792, %v1807
        %v1863 = vadd.f32 %v1793, %v1807
        %v1864 = vadd.f32 %v1794, %v1807
        %v1865 = vadd.f32 %v1795, %v1807
        %v1866 = vadd.f32 %v1796, %v1807
        %v1867 = vadd.f32 %v1797, %v1807
        %v1868 = vadd.f32 %v1798, %v1807
        %v1869 = vadd.f32 %v1799, %v1807
        %v1870 = vadd.f32 %v1800, %v1807
        %v1871 = vadd.f32 %v1801, %v1807
        %v1872 = vadd.f32 %v1802, %v1807
        %1873 = vset.pattern.permute.xlu0 1
        %1874 = vperm.xlu0 %1873, %v1349
        %v1875 = vpop.permute.xlu0 %1874
        %1877 = vset.pattern.permute.xlu0 1
        %1878 = vperm.xlu0 %1877, %v1350
        %v1879 = vpop.permute.xlu0 %1878
        %1881 = vset.pattern.permute.xlu0 1
        %1882 = vperm.xlu0 %1881, %v1351
        %v1883 = vpop.permute.xlu0 %1882
        %1885 = vset.pattern.permute.xlu0 1
        %1886 = vperm.xlu0 %1885, %v1352
        %v1887 = vpop.permute.xlu0 %1886
        %1889 = vset.pattern.permute.xlu0 1
        %1890 = vperm.xlu0 %1889, %v1353
        %v1891 = vpop.permute.xlu0 %1890
        %1893 = vset.pattern.permute.xlu0 1
        %1894 = vperm.xlu0 %1893, %v1354
        %v1895 = vpop.permute.xlu0 %1894
        %1897 = vset.pattern.permute.xlu0 1
        %1898 = vperm.xlu0 %1897, %v1355
        %v1899 = vpop.permute.xlu0 %1898
        %1901 = vset.pattern.permute.xlu0 1
        %1902 = vperm.xlu0 %1901, %v1356
        %v1903 = vpop.permute.xlu0 %1902
        %1905 = vset.pattern.permute.xlu0 1
        %1906 = vperm.xlu0 %1905, %v1357
        %v1907 = vpop.permute.xlu0 %1906
        %1909 = vset.pattern.permute.xlu0 1
        %1910 = vperm.xlu0 %1909, %v1358
        %v1911 = vpop.permute.xlu0 %1910
        %1913 = vset.pattern.permute.xlu0 1
        %1914 = vperm.xlu0 %1913, %v1359
        %v1915 = vpop.permute.xlu0 %1914
        %1917 = vset.pattern.permute.xlu0 1
        %1918 = vperm.xlu0 %1917, %v1360
        %v1919 = vpop.permute.xlu0 %1918
        %1921 = vset.pattern.permute.xlu0 1
        %1922 = vperm.xlu0 %1921, %v1361
        %v1923 = vpop.permute.xlu0 %1922
        %1925 = vset.pattern.permute.xlu0 1
        %1926 = vperm.xlu0 %1925, %v1362
        %v1927 = vpop.permute.xlu0 %1926
        %1929 = vset.pattern.permute.xlu0 1
        %1930 = vperm.xlu0 %1929, %v1363
        %v1931 = vpop.permute.xlu0 %1930
        %1933 = vset.pattern.permute.xlu0 1
        %1934 = vperm.xlu0 %1933, %v1364
        %v1935 = vpop.permute.xlu0 %1934
        %1937 = vset.pattern.permute.xlu0 1
        %1938 = vperm.xlu0 %1937, %v1365
        %v1939 = vpop.permute.xlu0 %1938
        %1941 = vset.pattern.permute.xlu0 1
        %1942 = vperm.xlu0 %1941, %v1366
        %v1943 = vpop.permute.xlu0 %1942
        %1945 = vset.pattern.permute.xlu0 1
        %1946 = vperm.xlu0 %1945, %v1367
        %v1947 = vpop.permute.xlu0 %1946
        %1949 = vset.pattern.permute.xlu0 1
        %1950 = vperm.xlu0 %1949, %v1368
        %v1951 = vpop.permute.xlu0 %1950
        %1953 = vset.pattern.permute.xlu0 1
        %1954 = vperm.xlu0 %1953, %v1369
        %v1955 = vpop.permute.xlu0 %1954
        %1957 = vset.pattern.permute.xlu0 1
        %1958 = vperm.xlu0 %1957, %v1370
        %v1959 = vpop.permute.xlu0 %1958
        %1961 = vset.pattern.permute.xlu0 1
        %1962 = vperm.xlu0 %1961, %v1371
        %v1963 = vpop.permute.xlu0 %1962
        %1965 = vset.pattern.permute.xlu0 1
        %1966 = vperm.xlu0 %1965, %v1372
        %v1967 = vpop.permute.xlu0 %1966
        %1969 = vset.pattern.permute.xlu0 1
        %1970 = vperm.xlu0 %1969, %v1373
        %v1971 = vpop.permute.xlu0 %1970
        %1973 = vset.pattern.permute.xlu0 1
        %1974 = vperm.xlu0 %1973, %v1374
        %v1975 = vpop.permute.xlu0 %1974
        %1977 = vset.pattern.permute.xlu0 1
        %1978 = vperm.xlu0 %1977, %v1375
        %v1979 = vpop.permute.xlu0 %1978
        %1981 = vset.pattern.permute.xlu0 1
        %1982 = vperm.xlu0 %1981, %v1376
        %v1983 = vpop.permute.xlu0 %1982
        %1985 = vset.pattern.permute.xlu0 1
        %1986 = vperm.xlu0 %1985, %v1377
        %v1987 = vpop.permute.xlu0 %1986
        %1989 = vset.pattern.permute.xlu0 1
        %1990 = vperm.xlu0 %1989, %v1378
        %v1991 = vpop.permute.xlu0 %1990
        %1993 = vset.pattern.permute.xlu0 1
        %1994 = vperm.xlu0 %1993, %v1379
        %v1995 = vpop.permute.xlu0 %1994
        %1997 = vset.pattern.permute.xlu0 1
        %1998 = vperm.xlu0 %1997, %v1380
        %v1999 = vpop.permute.xlu0 %1998
        %2001 = vset.pattern.permute.xlu0 1
        %2002 = vperm.xlu0 %2001, %v1381
        %v2003 = vpop.permute.xlu0 %2002
        %2005 = vset.pattern.permute.xlu0 1
        %2006 = vperm.xlu0 %2005, %v1382
        %v2007 = vpop.permute.xlu0 %2006
        %2009 = vset.pattern.permute.xlu0 1
        %2010 = vperm.xlu0 %2009, %v1383
        %v2011 = vpop.permute.xlu0 %2010
        %2013 = vset.pattern.permute.xlu0 1
        %2014 = vperm.xlu0 %2013, %v1384
        %v2015 = vpop.permute.xlu0 %2014
        %2017 = vset.pattern.permute.xlu0 1
        %2018 = vperm.xlu0 %2017, %v1385
        %v2019 = vpop.permute.xlu0 %2018
        %2021 = vset.pattern.permute.xlu0 1
        %2022 = vperm.xlu0 %2021, %v1386
        %v2023 = vpop.permute.xlu0 %2022
        %2025 = vset.pattern.permute.xlu0 1
        %2026 = vperm.xlu0 %2025, %v1387
        %v2027 = vpop.permute.xlu0 %2026
        %2029 = vset.pattern.permute.xlu0 1
        %2030 = vperm.xlu0 %2029, %v1388
        %v2031 = vpop.permute.xlu0 %2030
        %2033 = vset.pattern.permute.xlu0 1
        %2034 = vperm.xlu0 %2033, %v1389
        %v2035 = vpop.permute.xlu0 %2034
        %2037 = vset.pattern.permute.xlu0 1
        %2038 = vperm.xlu0 %2037, %v1390
        %v2039 = vpop.permute.xlu0 %2038
        %2041 = vset.pattern.permute.xlu0 1
        %2042 = vperm.xlu0 %2041, %v1391
        %v2043 = vpop.permute.xlu0 %2042
        %2045 = vset.pattern.permute.xlu0 1
        %2046 = vperm.xlu0 %2045, %v1392
        %v2047 = vpop.permute.xlu0 %2046
        %2049 = vset.pattern.permute.xlu0 1
        %2050 = vperm.xlu0 %2049, %v1393
        %v2051 = vpop.permute.xlu0 %2050
        %2053 = vset.pattern.permute.xlu0 1
        %2054 = vperm.xlu0 %2053, %v1394
        %v2055 = vpop.permute.xlu0 %2054
        %2057 = vset.pattern.permute.xlu0 1
        %2058 = vperm.xlu0 %2057, %v1395
        %v2059 = vpop.permute.xlu0 %2058
        %2061 = vset.pattern.permute.xlu0 1
        %2062 = vperm.xlu0 %2061, %v1396
        %v2063 = vpop.permute.xlu0 %2062
        %2065 = vset.pattern.permute.xlu0 1
        %2066 = vperm.xlu0 %2065, %v1397
        %v2067 = vpop.permute.xlu0 %2066
        %2069 = vset.pattern.permute.xlu0 1
        %2070 = vperm.xlu0 %2069, %v1398
        %v2071 = vpop.permute.xlu0 %2070
        %2073 = vset.pattern.permute.xlu0 1
        %2074 = vperm.xlu0 %2073, %v1399
        %v2075 = vpop.permute.xlu0 %2074
        %2077 = vset.pattern.permute.xlu0 1
        %2078 = vperm.xlu0 %2077, %v1400
        %v2079 = vpop.permute.xlu0 %2078
        %2081 = vset.pattern.permute.xlu0 1
        %2082 = vperm.xlu0 %2081, %v1401
        %v2083 = vpop.permute.xlu0 %2082
        %2085 = vset.pattern.permute.xlu0 1
        %2086 = vperm.xlu0 %2085, %v1402
        %v2087 = vpop.permute.xlu0 %2086
        %2089 = vset.pattern.permute.xlu0 1
        %2090 = vperm.xlu0 %2089, %v1403
        %v2091 = vpop.permute.xlu0 %2090
        %2093 = vset.pattern.permute.xlu0 1
        %2094 = vperm.xlu0 %2093, %v1404
        %v2095 = vpop.permute.xlu0 %2094
        %2097 = vset.pattern.permute.xlu0 1
        %2098 = vperm.xlu0 %2097, %v1405
        %v2099 = vpop.permute.xlu0 %2098
        %2101 = vset.pattern.permute.xlu0 1
        %2102 = vperm.xlu0 %2101, %v1406
        %v2103 = vpop.permute.xlu0 %2102
        %2105 = vset.pattern.permute.xlu0 1
        %2106 = vperm.xlu0 %2105, %v1407
        %v2107 = vpop.permute.xlu0 %2106
        %2109 = vset.pattern.permute.xlu0 1
        %2110 = vperm.xlu0 %2109, %v1408
        %v2111 = vpop.permute.xlu0 %2110
        %2113 = vset.pattern.permute.xlu0 1
        %2114 = vperm.xlu0 %2113, %v1409
        %v2115 = vpop.permute.xlu0 %2114
        %2117 = vset.pattern.permute.xlu0 1
        %2118 = vperm.xlu0 %2117, %v1410
        %v2119 = vpop.permute.xlu0 %2118
        %2121 = vset.pattern.permute.xlu0 1
        %2122 = vperm.xlu0 %2121, %v1411
        %v2123 = vpop.permute.xlu0 %2122
        %2125 = vset.pattern.permute.xlu0 1
        %2126 = vperm.xlu0 %2125, %v1412
        %v2127 = vpop.permute.xlu0 %2126
        %v2129 = vlaneseq
        %v2130 = vshrl.u32 %v2129, 7
        %v2131 = vsub.s32 1, %v2130
        %v2132 = vrot.slane %v1413, %v2131
        %v2133 = vmul.f32 %v1875, %v2132
        %v2134 = vmul.f32 %v1879, %v2132
        %v2135 = vmul.f32 %v1883, %v2132
        %v2136 = vmul.f32 %v1887, %v2132
        %v2137 = vmul.f32 %v1891, %v2132
        %v2138 = vmul.f32 %v1895, %v2132
        %v2139 = vmul.f32 %v1899, %v2132
        %v2140 = vmul.f32 %v1903, %v2132
        %v2141 = vmul.f32 %v1907, %v2132
        %v2142 = vmul.f32 %v1911, %v2132
        %v2143 = vmul.f32 %v1915, %v2132
        %v2144 = vmul.f32 %v1919, %v2132
        %v2145 = vmul.f32 %v1923, %v2132
        %v2146 = vmul.f32 %v1927, %v2132
        %v2147 = vmul.f32 %v1931, %v2132
        %v2148 = vmul.f32 %v1935, %v2132
        %v2149 = vmul.f32 %v1939, %v2132
        %v2150 = vmul.f32 %v1943, %v2132
        %v2151 = vmul.f32 %v1947, %v2132
        %v2152 = vmul.f32 %v1951, %v2132
        %v2153 = vmul.f32 %v1955, %v2132
        %v2154 = vmul.f32 %v1959, %v2132
        %v2155 = vmul.f32 %v1963, %v2132
        %v2156 = vmul.f32 %v1967, %v2132
        %v2157 = vmul.f32 %v1971, %v2132
        %v2158 = vmul.f32 %v1975, %v2132
        %v2159 = vmul.f32 %v1979, %v2132
        %v2160 = vmul.f32 %v1983, %v2132
        %v2161 = vmul.f32 %v1987, %v2132
        %v2162 = vmul.f32 %v1991, %v2132
        %v2163 = vmul.f32 %v1995, %v2132
        %v2164 = vmul.f32 %v1999, %v2132
        %v2165 = vmul.f32 %v2003, %v2132
        %v2166 = vmul.f32 %v2007, %v2132
        %v2167 = vmul.f32 %v2011, %v2132
        %v2168 = vmul.f32 %v2015, %v2132
        %v2169 = vmul.f32 %v2019, %v2132
        %v2170 = vmul.f32 %v2023, %v2132
        %v2171 = vmul.f32 %v2027, %v2132
        %v2172 = vmul.f32 %v2031, %v2132
        %v2173 = vmul.f32 %v2035, %v2132
        %v2174 = vmul.f32 %v2039, %v2132
        %v2175 = vmul.f32 %v2043, %v2132
        %v2176 = vmul.f32 %v2047, %v2132
        %v2177 = vmul.f32 %v2051, %v2132
        %v2178 = vmul.f32 %v2055, %v2132
        %v2179 = vmul.f32 %v2059, %v2132
        %v2180 = vmul.f32 %v2063, %v2132
        %v2181 = vmul.f32 %v2067, %v2132
        %v2182 = vmul.f32 %v2071, %v2132
        %v2183 = vmul.f32 %v2075, %v2132
        %v2184 = vmul.f32 %v2079, %v2132
        %v2185 = vmul.f32 %v2083, %v2132
        %v2186 = vmul.f32 %v2087, %v2132
        %v2187 = vmul.f32 %v2091, %v2132
        %v2188 = vmul.f32 %v2095, %v2132
        %v2189 = vmul.f32 %v2099, %v2132
        %v2190 = vmul.f32 %v2103, %v2132
        %v2191 = vmul.f32 %v2107, %v2132
        %v2192 = vmul.f32 %v2111, %v2132
        %v2193 = vmul.f32 %v2115, %v2132
        %v2194 = vmul.f32 %v2119, %v2132
        %v2195 = vmul.f32 %v2123, %v2132
        %v2196 = vmul.f32 %v2127, %v2132
        %v2197 = vadd.f32 %v1809, %v2133
        %v2198 = vadd.f32 %v1810, %v2134
        %v2199 = vadd.f32 %v1811, %v2135
        %v2200 = vadd.f32 %v1812, %v2136
        %v2201 = vadd.f32 %v1813, %v2137
        %v2202 = vadd.f32 %v1814, %v2138
        %v2203 = vadd.f32 %v1815, %v2139
        %v2204 = vadd.f32 %v1816, %v2140
        %v2205 = vadd.f32 %v1817, %v2141
        %v2206 = vadd.f32 %v1818, %v2142
        %v2207 = vadd.f32 %v1819, %v2143
        %v2208 = vadd.f32 %v1820, %v2144
        %v2209 = vadd.f32 %v1821, %v2145
        %v2210 = vadd.f32 %v1822, %v2146
        %v2211 = vadd.f32 %v1823, %v2147
        %v2212 = vadd.f32 %v1824, %v2148
        %v2213 = vadd.f32 %v1825, %v2149
        %v2214 = vadd.f32 %v1826, %v2150
        %v2215 = vadd.f32 %v1827, %v2151
        %v2216 = vadd.f32 %v1828, %v2152
        %v2217 = vadd.f32 %v1829, %v2153
        %v2218 = vadd.f32 %v1830, %v2154
        %v2219 = vadd.f32 %v1831, %v2155
        %v2220 = vadd.f32 %v1832, %v2156
        %v2221 = vadd.f32 %v1833, %v2157
        %v2222 = vadd.f32 %v1834, %v2158
        %v2223 = vadd.f32 %v1835, %v2159
        %v2224 = vadd.f32 %v1836, %v2160
        %v2225 = vadd.f32 %v1837, %v2161
        %v2226 = vadd.f32 %v1838, %v2162
        %v2227 = vadd.f32 %v1839, %v2163
        %v2228 = vadd.f32 %v1840, %v2164
        %v2229 = vadd.f32 %v1841, %v2165
        %v2230 = vadd.f32 %v1842, %v2166
        %v2231 = vadd.f32 %v1843, %v2167
        %v2232 = vadd.f32 %v1844, %v2168
        %v2233 = vadd.f32 %v1845, %v2169
        %v2234 = vadd.f32 %v1846, %v2170
        %v2235 = vadd.f32 %v1847, %v2171
        %v2236 = vadd.f32 %v1848, %v2172
        %v2237 = vadd.f32 %v1849, %v2173
        %v2238 = vadd.f32 %v1850, %v2174
        %v2239 = vadd.f32 %v1851, %v2175
        %v2240 = vadd.f32 %v1852, %v2176
        %v2241 = vadd.f32 %v1853, %v2177
        %v2242 = vadd.f32 %v1854, %v2178
        %v2243 = vadd.f32 %v1855, %v2179
        %v2244 = vadd.f32 %v1856, %v2180
        %v2245 = vadd.f32 %v1857, %v2181
        %v2246 = vadd.f32 %v1858, %v2182
        %v2247 = vadd.f32 %v1859, %v2183
        %v2248 = vadd.f32 %v1860, %v2184
        %v2249 = vadd.f32 %v1861, %v2185
        %v2250 = vadd.f32 %v1862, %v2186
        %v2251 = vadd.f32 %v1863, %v2187
        %v2252 = vadd.f32 %v1864, %v2188
        %v2253 = vadd.f32 %v1865, %v2189
        %v2254 = vadd.f32 %v1866, %v2190
        %v2255 = vadd.f32 %v1867, %v2191
        %v2256 = vadd.f32 %v1868, %v2192
        %v2257 = vadd.f32 %v1869, %v2193
        %v2258 = vadd.f32 %v1870, %v2194
        %v2259 = vadd.f32 %v1871, %v2195
        %v2260 = vadd.f32 %v1872, %v2196
        %v2261 = vld [vmem:[%s6] sm:$0xff]
        %v2262 = vld [vmem:[%s6 + $0x8] sm:$0xff]
        %v2263 = vld [vmem:[%s6 + $0x10] sm:$0xff]
        %v2264 = vld [vmem:[%s6 + $0x18] sm:$0xff]
        %v2265 = vld [vmem:[%s7] sm:$0x1]
        %v2267 = vlaneseq
        %v2268 = vshrl.u32 %v2267, 7
        %v2269 = vsub.s32 0, %v2268
        %v2270 = vrot.slane %v2265, %v2269
        %vm2272 = vcmask 261120
        %v2274 = vsel %vm2272, %v1285, 0
        %v2277 = vsel %vm2272, %v1286, 0
        %v2280 = vsel %vm2272, %v1287, 0
        %v2283 = vsel %vm2272, %v1288, 0
        %v2286 = vsel %vm2272, %v1289, 0
        %v2289 = vsel %vm2272, %v1290, 0
        %v2292 = vsel %vm2272, %v1291, 0
        %v2295 = vsel %vm2272, %v1292, 0
        %v2298 = vsel %vm2272, %v1293, 0
        %v2301 = vsel %vm2272, %v1294, 0
        %v2304 = vsel %vm2272, %v1295, 0
        %v2307 = vsel %vm2272, %v1296, 0
        %v2310 = vsel %vm2272, %v1297, 0
        %v2313 = vsel %vm2272, %v1298, 0
        %v2316 = vsel %vm2272, %v1299, 0
        %v2319 = vsel %vm2272, %v1300, 0
        %v2322 = vsel %vm2272, %v1301, 0
        %v2325 = vsel %vm2272, %v1302, 0
        %v2328 = vsel %vm2272, %v1303, 0
        %v2331 = vsel %vm2272, %v1304, 0
        %v2334 = vsel %vm2272, %v1305, 0
        %v2337 = vsel %vm2272, %v1306, 0
        %v2340 = vsel %vm2272, %v1307, 0
        %v2343 = vsel %vm2272, %v1308, 0
        %v2346 = vsel %vm2272, %v1309, 0
        %v2349 = vsel %vm2272, %v1310, 0
        %v2352 = vsel %vm2272, %v1311, 0
        %v2355 = vsel %vm2272, %v1312, 0
        %v2358 = vsel %vm2272, %v1313, 0
        %v2361 = vsel %vm2272, %v1314, 0
        %v2364 = vsel %vm2272, %v1315, 0
        %v2367 = vsel %vm2272, %v1316, 0
        %v2370 = vsel %vm2272, %v1317, 0
        %v2373 = vsel %vm2272, %v1318, 0
        %v2376 = vsel %vm2272, %v1319, 0
        %v2379 = vsel %vm2272, %v1320, 0
        %v2382 = vsel %vm2272, %v1321, 0
        %v2385 = vsel %vm2272, %v1322, 0
        %v2388 = vsel %vm2272, %v1323, 0
        %v2391 = vsel %vm2272, %v1324, 0
        %v2394 = vsel %vm2272, %v1325, 0
        %v2397 = vsel %vm2272, %v1326, 0
        %v2400 = vsel %vm2272, %v1327, 0
        %v2403 = vsel %vm2272, %v1328, 0
        %v2406 = vsel %vm2272, %v1329, 0
        %v2409 = vsel %vm2272, %v1330, 0
        %v2412 = vsel %vm2272, %v1331, 0
        %v2415 = vsel %vm2272, %v1332, 0
        %v2418 = vsel %vm2272, %v1333, 0
        %v2421 = vsel %vm2272, %v1334, 0
        %v2424 = vsel %vm2272, %v1335, 0
        %v2427 = vsel %vm2272, %v1336, 0
        %v2430 = vsel %vm2272, %v1337, 0
        %v2433 = vsel %vm2272, %v1338, 0
        %v2436 = vsel %vm2272, %v1339, 0
        %v2439 = vsel %vm2272, %v1340, 0
        %v2442 = vsel %vm2272, %v1341, 0
        %v2445 = vsel %vm2272, %v1342, 0
        %v2448 = vsel %vm2272, %v1343, 0
        %v2451 = vsel %vm2272, %v1344, 0
        %v2454 = vsel %vm2272, %v1345, 0
        %v2457 = vsel %vm2272, %v1346, 0
        %v2460 = vsel %vm2272, %v1347, 0
        %v2463 = vsel %vm2272, %v1348, 0
        %v2466 = vsel %vm2272, %v2197, 0
        %v2469 = vsel %vm2272, %v2198, 0
        %v2472 = vsel %vm2272, %v2199, 0
        %v2475 = vsel %vm2272, %v2200, 0
        %v2478 = vsel %vm2272, %v2201, 0
        %v2481 = vsel %vm2272, %v2202, 0
        %v2484 = vsel %vm2272, %v2203, 0
        %v2487 = vsel %vm2272, %v2204, 0
        %v2490 = vsel %vm2272, %v2205, 0
        %v2493 = vsel %vm2272, %v2206, 0
        %v2496 = vsel %vm2272, %v2207, 0
        %v2499 = vsel %vm2272, %v2208, 0
        %v2502 = vsel %vm2272, %v2209, 0
        %v2505 = vsel %vm2272, %v2210, 0
        %v2508 = vsel %vm2272, %v2211, 0
        %v2511 = vsel %vm2272, %v2212, 0
        %v2514 = vsel %vm2272, %v2213, 0
        %v2517 = vsel %vm2272, %v2214, 0
        %v2520 = vsel %vm2272, %v2215, 0
        %v2523 = vsel %vm2272, %v2216, 0
        %v2526 = vsel %vm2272, %v2217, 0
        %v2529 = vsel %vm2272, %v2218, 0
        %v2532 = vsel %vm2272, %v2219, 0
        %v2535 = vsel %vm2272, %v2220, 0
        %v2538 = vsel %vm2272, %v2221, 0
        %v2541 = vsel %vm2272, %v2222, 0
        %v2544 = vsel %vm2272, %v2223, 0
        %v2547 = vsel %vm2272, %v2224, 0
        %v2550 = vsel %vm2272, %v2225, 0
        %v2553 = vsel %vm2272, %v2226, 0
        %v2556 = vsel %vm2272, %v2227, 0
        %v2559 = vsel %vm2272, %v2228, 0
        %v2562 = vsel %vm2272, %v2229, 0
        %v2565 = vsel %vm2272, %v2230, 0
        %v2568 = vsel %vm2272, %v2231, 0
        %v2571 = vsel %vm2272, %v2232, 0
        %v2574 = vsel %vm2272, %v2233, 0
        %v2577 = vsel %vm2272, %v2234, 0
        %v2580 = vsel %vm2272, %v2235, 0
        %v2583 = vsel %vm2272, %v2236, 0
        %v2586 = vsel %vm2272, %v2237, 0
        %v2589 = vsel %vm2272, %v2238, 0
        %v2592 = vsel %vm2272, %v2239, 0
        %v2595 = vsel %vm2272, %v2240, 0
        %v2598 = vsel %vm2272, %v2241, 0
        %v2601 = vsel %vm2272, %v2242, 0
        %v2604 = vsel %vm2272, %v2243, 0
        %v2607 = vsel %vm2272, %v2244, 0
        %v2610 = vsel %vm2272, %v2245, 0
        %v2613 = vsel %vm2272, %v2246, 0
        %v2616 = vsel %vm2272, %v2247, 0
        %v2619 = vsel %vm2272, %v2248, 0
        %v2622 = vsel %vm2272, %v2249, 0
        %v2625 = vsel %vm2272, %v2250, 0
        %v2628 = vsel %vm2272, %v2251, 0
        %v2631 = vsel %vm2272, %v2252, 0
        %v2634 = vsel %vm2272, %v2253, 0
        %v2637 = vsel %vm2272, %v2254, 0
        %v2640 = vsel %vm2272, %v2255, 0
        %v2643 = vsel %vm2272, %v2256, 0
        %v2646 = vsel %vm2272, %v2257, 0
        %v2649 = vsel %vm2272, %v2258, 0
        %v2652 = vsel %vm2272, %v2259, 0
        %v2655 = vsel %vm2272, %v2260, 0
        %2657 = vmatprep.subr.mxu0 0.0
        %2658 = vmatpush1.msra.mxu0 %v2261
        %2659 = vmatprep.subr.mxu0 0.0
        %2660 = vmatpush1.msra.mxu0 %v2262
        %2661 = vmatprep.subr.mxu0 0.0
        %2662 = vmatpush1.msra.mxu0 %v2263
        %2663 = vmatprep.subr.mxu0 0.0
        %2664 = vmatpush1.msra.mxu0 %v2264
        %2665 = vmatprep.subr.mxu0 0.0
        %2666 = vmatpush1.msra.mxu0 0.0
        %2667 = vmatprep.subr.mxu0 0.0
        %2668 = vmatpush1.msra.mxu0 0.0
        %2669 = vmatprep.subr.mxu0 0.0
        %2670 = vmatpush1.msra.mxu0 0.0
        %2671 = vmatprep.subr.mxu0 0.0
        %2672 = vmatpush1.msra.mxu0 0.0
        %2673 = vmatprep.subr.mxu0 0.0
        %2674 = vmatpush1.msra.mxu0 0.0
        %2675 = vmatprep.subr.mxu0 0.0
        %2676 = vmatpush1.msra.mxu0 0.0
        %2677 = vmatprep.subr.mxu0 0.0
        %2678 = vmatpush1.msra.mxu0 0.0
        %2679 = vmatprep.subr.mxu0 0.0
        %2680 = vmatpush1.msra.mxu0 0.0
        %2681 = vmatprep.subr.mxu0 0.0
        %2682 = vmatpush1.msra.mxu0 0.0
        %2683 = vmatprep.subr.mxu0 0.0
        %2684 = vmatpush1.msra.mxu0 0.0
        %2685 = vmatprep.subr.mxu0 0.0
        %2686 = vmatpush1.msra.mxu0 0.0
        %2687 = vmatprep.subr.mxu0 0.0
        %2688 = vmatpush1.msra.mxu0 0.0
        %2689 = vmatprep.subr.mxu0 0.0
        %2690 = vmatpush1.msra.mxu0 0.0
        %2691 = vmatprep.subr.mxu0 0.0
        %2692 = vmatpush1.msra.mxu0 0.0
        %2693 = vmatprep.subr.mxu0 0.0
        %2694 = vmatpush1.msra.mxu0 0.0
        %2695 = vmatprep.subr.mxu0 0.0
        %2696 = vmatpush1.msra.mxu0 0.0
        %2697 = vmatprep.subr.mxu0 0.0
        %2698 = vmatpush1.msra.mxu0 0.0
        %2699 = vmatprep.subr.mxu0 0.0
        %2700 = vmatpush1.msra.mxu0 0.0
        %2701 = vmatprep.subr.mxu0 0.0
        %2702 = vmatpush1.msra.mxu0 0.0
        %2703 = vmatprep.subr.mxu0 0.0
        %2704 = vmatpush1.msra.mxu0 0.0
        %2705 = vmatprep.subr.mxu0 0.0
        %2706 = vmatpush1.msra.mxu0 0.0
        %2707 = vmatprep.subr.mxu0 0.0
        %2708 = vmatpush1.msra.mxu0 0.0
        %2709 = vmatprep.subr.mxu0 0.0
        %2710 = vmatpush1.msra.mxu0 0.0
        %2711 = vmatprep.subr.mxu0 0.0
        %2712 = vmatpush1.msra.mxu0 0.0
        %2713 = vmatprep.subr.mxu0 0.0
        %2714 = vmatpush1.msra.mxu0 0.0
        %2715 = vmatprep.subr.mxu0 0.0
        %2716 = vmatpush1.msra.mxu0 0.0
        %2717 = vmatprep.subr.mxu0 0.0
        %2718 = vmatpush1.msra.mxu0 0.0
        %2719 = vmatprep.subr.mxu0 0.0
        %2720 = vmatpush1.msra.mxu0 0.0
        %2721 = vmatprep.mubr.f32.mxu0 0.0
        %2722 = vmatmul.mubr.f32.gmra.mrb[0].mxu0 %v2274
        %v2723 = vpop.f32.mrb[0].mxu0
        %v2724 = vadd.f32 %v2270, %v2723
        %v2725 = vpop.f32.mrb[0].mxu0
        %2726 = vmatprep.mubr.f32.mxu0 0.0
        %2727 = vmatmul.mubr.f32.gmra.mrb[0].mxu0 %v2277
        %v2728 = vpop.f32.mrb[0].mxu0
        %v2729 = vadd.f32 %v2270, %v2728
        %v2730 = vpop.f32.mrb[0].mxu0
        %2731 = vmatprep.mubr.f32.mxu0 0.0
        %2732 = vmatmul.mubr.f32.gmra.mrb[0].mxu0 %v2280
        %v2733 = vpop.f32.mrb[0].mxu0
        %v2734 = vadd.f32 %v2270, %v2733
        %v2735 = vpop.f32.mrb[0].mxu0
        %2736 = vmatprep.mubr.f32.mxu0 0.0
        %2737 = vmatmul.mubr.f32.gmra.mrb[0].mxu0 %v2283
        %v2738 = vpop.f32.mrb[0].mxu0
        %v2739 = vadd.f32 %v2270, %v2738
        %v2740 = vpop.f32.mrb[0].mxu0
        %2741 = vmatprep.mubr.f32.mxu0 0.0
        %2742 = vmatmul.mubr.f32.gmra.mrb[0].mxu0 %v2286
        %v2743 = vpop.f32.mrb[0].mxu0
        %v2744 = vadd.f32 %v2270, %v2743
        %v2745 = vpop.f32.mrb[0].mxu0
        %2746 = vmatprep.mubr.f32.mxu0 0.0
        %2747 = vmatmul.mubr.f32.gmra.mrb[0].mxu0 %v2289
        %v2748 = vpop.f32.mrb[0].mxu0
        %v2749 = vadd.f32 %v2270, %v2748
        %v2750 = vpop.f32.mrb[0].mxu0
        %2751 = vmatprep.mubr.f32.mxu0 0.0
        %2752 = vmatmul.mubr.f32.gmra.mrb[0].mxu0 %v2292
        %v2753 = vpop.f32.mrb[0].mxu0
        %v2754 = vadd.f32 %v2270, %v2753
        %v2755 = vpop.f32.mrb[0].mxu0
        %2756 = vmatprep.mubr.f32.mxu0 0.0
        %2757 = vmatmul.mubr.f32.gmra.mrb[0].mxu0 %v2295
        %v2758 = vpop.f32.mrb[0].mxu0
        %v2759 = vadd.f32 %v2270, %v2758
        %v2760 = vpop.f32.mrb[0].mxu0
        %2761 = vmatprep.mubr.f32.mxu0 0.0
        %2762 = vmatmul.mubr.f32.gmra.mrb[0].mxu0 %v2298
        %v2763 = vpop.f32.mrb[0].mxu0
        %v2764 = vadd.f32 %v2270, %v2763
        %v2765 = vpop.f32.mrb[0].mxu0
        %2766 = vmatprep.mubr.f32.mxu0 0.0
        %2767 = vmatmul.mubr.f32.gmra.mrb[0].mxu0 %v2301
        %v2768 = vpop.f32.mrb[0].mxu0
        %v2769 = vadd.f32 %v2270, %v2768
        %v2770 = vpop.f32.mrb[0].mxu0
        %2771 = vmatprep.mubr.f32.mxu0 0.0
        %2772 = vmatmul.mubr.f32.gmra.mrb[0].mxu0 %v2304
        %v2773 = vpop.f32.mrb[0].mxu0
        %v2774 = vadd.f32 %v2270, %v2773
        %v2775 = vpop.f32.mrb[0].mxu0
        %2776 = vmatprep.mubr.f32.mxu0 0.0
        %2777 = vmatmul.mubr.f32.gmra.mrb[0].mxu0 %v2307
        %v2778 = vpop.f32.mrb[0].mxu0
        %v2779 = vadd.f32 %v2270, %v2778
        %v2780 = vpop.f32.mrb[0].mxu0
        %2781 = vmatprep.mubr.f32.mxu0 0.0
        %2782 = vmatmul.mubr.f32.gmra.mrb[0].mxu0 %v2310
        %v2783 = vpop.f32.mrb[0].mxu0
        %v2784 = vadd.f32 %v2270, %v2783
        %v2785 = vpop.f32.mrb[0].mxu0
        %2786 = vmatprep.mubr.f32.mxu0 0.0
        %2787 = vmatmul.mubr.f32.gmra.mrb[0].mxu0 %v2313
        %v2788 = vpop.f32.mrb[0].mxu0
        %v2789 = vadd.f32 %v2270, %v2788
        %v2790 = vpop.f32.mrb[0].mxu0
        %2791 = vmatprep.mubr.f32.mxu0 0.0
        %2792 = vmatmul.mubr.f32.gmra.mrb[0].mxu0 %v2316
        %v2793 = vpop.f32.mrb[0].mxu0
        %v2794 = vadd.f32 %v2270, %v2793
        %v2795 = vpop.f32.mrb[0].mxu0
        %2796 = vmatprep.mubr.f32.mxu0 0.0
        %2797 = vmatmul.mubr.f32.gmra.mrb[0].mxu0 %v2319
        %v2798 = vpop.f32.mrb[0].mxu0
        %v2799 = vadd.f32 %v2270, %v2798
        %v2800 = vpop.f32.mrb[0].mxu0
        %2801 = vmatprep.mubr.f32.mxu0 0.0
        %2802 = vmatmul.mubr.f32.gmra.mrb[0].mxu0 %v2322
        %v2803 = vpop.f32.mrb[0].mxu0
        %v2804 = vadd.f32 %v2270, %v2803
        %v2805 = vpop.f32.mrb[0].mxu0
        %2806 = vmatprep.mubr.f32.mxu0 0.0
        %2807 = vmatmul.mubr.f32.gmra.mrb[0].mxu0 %v2325
        %v2808 = vpop.f32.mrb[0].mxu0
        %v2809 = vadd.f32 %v2270, %v2808
        %v2810 = vpop.f32.mrb[0].mxu0
        %2811 = vmatprep.mubr.f32.mxu0 0.0
        %2812 = vmatmul.mubr.f32.gmra.mrb[0].mxu0 %v2328
        %v2813 = vpop.f32.mrb[0].mxu0
        %v2814 = vadd.f32 %v2270, %v2813
        %v2815 = vpop.f32.mrb[0].mxu0
        %2816 = vmatprep.mubr.f32.mxu0 0.0
        %2817 = vmatmul.mubr.f32.gmra.mrb[0].mxu0 %v2331
        %v2818 = vpop.f32.mrb[0].mxu0
        %v2819 = vadd.f32 %v2270, %v2818
        %v2820 = vpop.f32.mrb[0].mxu0
        %2821 = vmatprep.mubr.f32.mxu0 0.0
        %2822 = vmatmul.mubr.f32.gmra.mrb[0].mxu0 %v2334
        %v2823 = vpop.f32.mrb[0].mxu0
        %v2824 = vadd.f32 %v2270, %v2823
        %v2825 = vpop.f32.mrb[0].mxu0
        %2826 = vmatprep.mubr.f32.mxu0 0.0
        %2827 = vmatmul.mubr.f32.gmra.mrb[0].mxu0 %v2337
        %v2828 = vpop.f32.mrb[0].mxu0
        %v2829 = vadd.f32 %v2270, %v2828
        %v2830 = vpop.f32.mrb[0].mxu0
        %2831 = vmatprep.mubr.f32.mxu0 0.0
        %2832 = vmatmul.mubr.f32.gmra.mrb[0].mxu0 %v2340
        %v2833 = vpop.f32.mrb[0].mxu0
        %v2834 = vadd.f32 %v2270, %v2833
        %v2835 = vpop.f32.mrb[0].mxu0
        %2836 = vmatprep.mubr.f32.mxu0 0.0
        %2837 = vmatmul.mubr.f32.gmra.mrb[0].mxu0 %v2343
        %v2838 = vpop.f32.mrb[0].mxu0
        %v2839 = vadd.f32 %v2270, %v2838
        %v2840 = vpop.f32.mrb[0].mxu0
        %2841 = vmatprep.mubr.f32.mxu0 0.0
        %2842 = vmatmul.mubr.f32.gmra.mrb[0].mxu0 %v2346
        %v2843 = vpop.f32.mrb[0].mxu0
        %v2844 = vadd.f32 %v2270, %v2843
        %v2845 = vpop.f32.mrb[0].mxu0
        %2846 = vmatprep.mubr.f32.mxu0 0.0
        %2847 = vmatmul.mubr.f32.gmra.mrb[0].mxu0 %v2349
        %v2848 = vpop.f32.mrb[0].mxu0
        %v2849 = vadd.f32 %v2270, %v2848
        %v2850 = vpop.f32.mrb[0].mxu0
        %2851 = vmatprep.mubr.f32.mxu0 0.0
        %2852 = vmatmul.mubr.f32.gmra.mrb[0].mxu0 %v2352
        %v2853 = vpop.f32.mrb[0].mxu0
        %v2854 = vadd.f32 %v2270, %v2853
        %v2855 = vpop.f32.mrb[0].mxu0
        %2856 = vmatprep.mubr.f32.mxu0 0.0
        %2857 = vmatmul.mubr.f32.gmra.mrb[0].mxu0 %v2355
        %v2858 = vpop.f32.mrb[0].mxu0
        %v2859 = vadd.f32 %v2270, %v2858
        %v2860 = vpop.f32.mrb[0].mxu0
        %2861 = vmatprep.mubr.f32.mxu0 0.0
        %2862 = vmatmul.mubr.f32.gmra.mrb[0].mxu0 %v2358
        %v2863 = vpop.f32.mrb[0].mxu0
        %v2864 = vadd.f32 %v2270, %v2863
        %v2865 = vpop.f32.mrb[0].mxu0
        %2866 = vmatprep.mubr.f32.mxu0 0.0
        %2867 = vmatmul.mubr.f32.gmra.mrb[0].mxu0 %v2361
        %v2868 = vpop.f32.mrb[0].mxu0
        %v2869 = vadd.f32 %v2270, %v2868
        %v2870 = vpop.f32.mrb[0].mxu0
        %2871 = vmatprep.mubr.f32.mxu0 0.0
        %2872 = vmatmul.mubr.f32.gmra.mrb[0].mxu0 %v2364
        %v2873 = vpop.f32.mrb[0].mxu0
        %v2874 = vadd.f32 %v2270, %v2873
        %v2875 = vpop.f32.mrb[0].mxu0
        %2876 = vmatprep.mubr.f32.mxu0 0.0
        %2877 = vmatmul.mubr.f32.gmra.mrb[0].mxu0 %v2367
        %v2878 = vpop.f32.mrb[0].mxu0
        %v2879 = vadd.f32 %v2270, %v2878
        %v2880 = vpop.f32.mrb[0].mxu0
        %2881 = vmatprep.mubr.f32.mxu0 0.0
        %2882 = vmatmul.mubr.f32.gmra.mrb[0].mxu0 %v2370
        %v2883 = vpop.f32.mrb[0].mxu0
        %v2884 = vadd.f32 %v2270, %v2883
        %v2885 = vpop.f32.mrb[0].mxu0
        %2886 = vmatprep.mubr.f32.mxu0 0.0
        %2887 = vmatmul.mubr.f32.gmra.mrb[0].mxu0 %v2373
        %v2888 = vpop.f32.mrb[0].mxu0
        %v2889 = vadd.f32 %v2270, %v2888
        %v2890 = vpop.f32.mrb[0].mxu0
        %2891 = vmatprep.mubr.f32.mxu0 0.0
        %2892 = vmatmul.mubr.f32.gmra.mrb[0].mxu0 %v2376
        %v2893 = vpop.f32.mrb[0].mxu0
        %v2894 = vadd.f32 %v2270, %v2893
        %v2895 = vpop.f32.mrb[0].mxu0
        %2896 = vmatprep.mubr.f32.mxu0 0.0
        %2897 = vmatmul.mubr.f32.gmra.mrb[0].mxu0 %v2379
        %v2898 = vpop.f32.mrb[0].mxu0
        %v2899 = vadd.f32 %v2270, %v2898
        %v2900 = vpop.f32.mrb[0].mxu0
        %2901 = vmatprep.mubr.f32.mxu0 0.0
        %2902 = vmatmul.mubr.f32.gmra.mrb[0].mxu0 %v2382
        %v2903 = vpop.f32.mrb[0].mxu0
        %v2904 = vadd.f32 %v2270, %v2903
        %v2905 = vpop.f32.mrb[0].mxu0
        %2906 = vmatprep.mubr.f32.mxu0 0.0
        %2907 = vmatmul.mubr.f32.gmra.mrb[0].mxu0 %v2385
        %v2908 = vpop.f32.mrb[0].mxu0
        %v2909 = vadd.f32 %v2270, %v2908
        %v2910 = vpop.f32.mrb[0].mxu0
        %2911 = vmatprep.mubr.f32.mxu0 0.0
        %2912 = vmatmul.mubr.f32.gmra.mrb[0].mxu0 %v2388
        %v2913 = vpop.f32.mrb[0].mxu0
        %v2914 = vadd.f32 %v2270, %v2913
        %v2915 = vpop.f32.mrb[0].mxu0
        %2916 = vmatprep.mubr.f32.mxu0 0.0
        %2917 = vmatmul.mubr.f32.gmra.mrb[0].mxu0 %v2391
        %v2918 = vpop.f32.mrb[0].mxu0
        %v2919 = vadd.f32 %v2270, %v2918
        %v2920 = vpop.f32.mrb[0].mxu0
        %2921 = vmatprep.mubr.f32.mxu0 0.0
        %2922 = vmatmul.mubr.f32.gmra.mrb[0].mxu0 %v2394
        %v2923 = vpop.f32.mrb[0].mxu0
        %v2924 = vadd.f32 %v2270, %v2923
        %v2925 = vpop.f32.mrb[0].mxu0
        %2926 = vmatprep.mubr.f32.mxu0 0.0
        %2927 = vmatmul.mubr.f32.gmra.mrb[0].mxu0 %v2397
        %v2928 = vpop.f32.mrb[0].mxu0
        %v2929 = vadd.f32 %v2270, %v2928
        %v2930 = vpop.f32.mrb[0].mxu0
        %2931 = vmatprep.mubr.f32.mxu0 0.0
        %2932 = vmatmul.mubr.f32.gmra.mrb[0].mxu0 %v2400
        %v2933 = vpop.f32.mrb[0].mxu0
        %v2934 = vadd.f32 %v2270, %v2933
        %v2935 = vpop.f32.mrb[0].mxu0
        %2936 = vmatprep.mubr.f32.mxu0 0.0
        %2937 = vmatmul.mubr.f32.gmra.mrb[0].mxu0 %v2403
        %v2938 = vpop.f32.mrb[0].mxu0
        %v2939 = vadd.f32 %v2270, %v2938
        %v2940 = vpop.f32.mrb[0].mxu0
        %2941 = vmatprep.mubr.f32.mxu0 0.0
        %2942 = vmatmul.mubr.f32.gmra.mrb[0].mxu0 %v2406
        %v2943 = vpop.f32.mrb[0].mxu0
        %v2944 = vadd.f32 %v2270, %v2943
        %v2945 = vpop.f32.mrb[0].mxu0
        %2946 = vmatprep.mubr.f32.mxu0 0.0
        %2947 = vmatmul.mubr.f32.gmra.mrb[0].mxu0 %v2409
        %v2948 = vpop.f32.mrb[0].mxu0
        %v2949 = vadd.f32 %v2270, %v2948
        %v2950 = vpop.f32.mrb[0].mxu0
        %2951 = vmatprep.mubr.f32.mxu0 0.0
        %2952 = vmatmul.mubr.f32.gmra.mrb[0].mxu0 %v2412
        %v2953 = vpop.f32.mrb[0].mxu0
        %v2954 = vadd.f32 %v2270, %v2953
        %v2955 = vpop.f32.mrb[0].mxu0
        %2956 = vmatprep.mubr.f32.mxu0 0.0
        %2957 = vmatmul.mubr.f32.gmra.mrb[0].mxu0 %v2415
        %v2958 = vpop.f32.mrb[0].mxu0
        %v2959 = vadd.f32 %v2270, %v2958
        %v2960 = vpop.f32.mrb[0].mxu0
        %2961 = vmatprep.mubr.f32.mxu0 0.0
        %2962 = vmatmul.mubr.f32.gmra.mrb[0].mxu0 %v2418
        %v2963 = vpop.f32.mrb[0].mxu0
        %v2964 = vadd.f32 %v2270, %v2963
        %v2965 = vpop.f32.mrb[0].mxu0
        %2966 = vmatprep.mubr.f32.mxu0 0.0
        %2967 = vmatmul.mubr.f32.gmra.mrb[0].mxu0 %v2421
        %v2968 = vpop.f32.mrb[0].mxu0
        %v2969 = vadd.f32 %v2270, %v2968
        %v2970 = vpop.f32.mrb[0].mxu0
        %2971 = vmatprep.mubr.f32.mxu0 0.0
        %2972 = vmatmul.mubr.f32.gmra.mrb[0].mxu0 %v2424
        %v2973 = vpop.f32.mrb[0].mxu0
        %v2974 = vadd.f32 %v2270, %v2973
        %v2975 = vpop.f32.mrb[0].mxu0
        %2976 = vmatprep.mubr.f32.mxu0 0.0
        %2977 = vmatmul.mubr.f32.gmra.mrb[0].mxu0 %v2427
        %v2978 = vpop.f32.mrb[0].mxu0
        %v2979 = vadd.f32 %v2270, %v2978
        %v2980 = vpop.f32.mrb[0].mxu0
        %2981 = vmatprep.mubr.f32.mxu0 0.0
        %2982 = vmatmul.mubr.f32.gmra.mrb[0].mxu0 %v2430
        %v2983 = vpop.f32.mrb[0].mxu0
        %v2984 = vadd.f32 %v2270, %v2983
        %v2985 = vpop.f32.mrb[0].mxu0
        %2986 = vmatprep.mubr.f32.mxu0 0.0
        %2987 = vmatmul.mubr.f32.gmra.mrb[0].mxu0 %v2433
        %v2988 = vpop.f32.mrb[0].mxu0
        %v2989 = vadd.f32 %v2270, %v2988
        %v2990 = vpop.f32.mrb[0].mxu0
        %2991 = vmatprep.mubr.f32.mxu0 0.0
        %2992 = vmatmul.mubr.f32.gmra.mrb[0].mxu0 %v2436
        %v2993 = vpop.f32.mrb[0].mxu0
        %v2994 = vadd.f32 %v2270, %v2993
        %v2995 = vpop.f32.mrb[0].mxu0
        %2996 = vmatprep.mubr.f32.mxu0 0.0
        %2997 = vmatmul.mubr.f32.gmra.mrb[0].mxu0 %v2439
        %v2998 = vpop.f32.mrb[0].mxu0
        %v2999 = vadd.f32 %v2270, %v2998
        %v3000 = vpop.f32.mrb[0].mxu0
        %3001 = vmatprep.mubr.f32.mxu0 0.0
        %3002 = vmatmul.mubr.f32.gmra.mrb[0].mxu0 %v2442
        %v3003 = vpop.f32.mrb[0].mxu0
        %v3004 = vadd.f32 %v2270, %v3003
        %v3005 = vpop.f32.mrb[0].mxu0
        %3006 = vmatprep.mubr.f32.mxu0 0.0
        %3007 = vmatmul.mubr.f32.gmra.mrb[0].mxu0 %v2445
        %v3008 = vpop.f32.mrb[0].mxu0
        %v3009 = vadd.f32 %v2270, %v3008
        %v3010 = vpop.f32.mrb[0].mxu0
        %3011 = vmatprep.mubr.f32.mxu0 0.0
        %3012 = vmatmul.mubr.f32.gmra.mrb[0].mxu0 %v2448
        %v3013 = vpop.f32.mrb[0].mxu0
        %v3014 = vadd.f32 %v2270, %v3013
        %v3015 = vpop.f32.mrb[0].mxu0
        %3016 = vmatprep.mubr.f32.mxu0 0.0
        %3017 = vmatmul.mubr.f32.gmra.mrb[0].mxu0 %v2451
        %v3018 = vpop.f32.mrb[0].mxu0
        %v3019 = vadd.f32 %v2270, %v3018
        %v3020 = vpop.f32.mrb[0].mxu0
        %3021 = vmatprep.mubr.f32.mxu0 0.0
        %3022 = vmatmul.mubr.f32.gmra.mrb[0].mxu0 %v2454
        %v3023 = vpop.f32.mrb[0].mxu0
        %v3024 = vadd.f32 %v2270, %v3023
        %v3025 = vpop.f32.mrb[0].mxu0
        %3026 = vmatprep.mubr.f32.mxu0 0.0
        %3027 = vmatmul.mubr.f32.gmra.mrb[0].mxu0 %v2457
        %v3028 = vpop.f32.mrb[0].mxu0
        %v3029 = vadd.f32 %v2270, %v3028
        %v3030 = vpop.f32.mrb[0].mxu0
        %3031 = vmatprep.mubr.f32.mxu0 0.0
        %3032 = vmatmul.mubr.f32.gmra.mrb[0].mxu0 %v2460
        %v3033 = vpop.f32.mrb[0].mxu0
        %v3034 = vadd.f32 %v2270, %v3033
        %v3035 = vpop.f32.mrb[0].mxu0
        %3036 = vmatprep.mubr.f32.mxu0 0.0
        %3037 = vmatmul.mubr.f32.gmra.mrb[0].mxu0 %v2463
        %v3038 = vpop.f32.mrb[0].mxu0
        %v3039 = vadd.f32 %v2270, %v3038
        %v3040 = vpop.f32.mrb[0].mxu0
        %3041 = vmatprep.mubr.f32.mxu0 0.0
        %3042 = vmatmul.mubr.f32.gmra.mrb[0].mxu0 %v2466
        %v3043 = vpop.f32.mrb[0].mxu0
        %v3044 = vadd.f32 %v2270, %v3043
        %v3045 = vpop.f32.mrb[0].mxu0
        %3046 = vmatprep.mubr.f32.mxu0 0.0
        %3047 = vmatmul.mubr.f32.gmra.mrb[0].mxu0 %v2469
        %v3048 = vpop.f32.mrb[0].mxu0
        %v3049 = vadd.f32 %v2270, %v3048
        %v3050 = vpop.f32.mrb[0].mxu0
        %3051 = vmatprep.mubr.f32.mxu0 0.0
        %3052 = vmatmul.mubr.f32.gmra.mrb[0].mxu0 %v2472
        %v3053 = vpop.f32.mrb[0].mxu0
        %v3054 = vadd.f32 %v2270, %v3053
        %v3055 = vpop.f32.mrb[0].mxu0
        %3056 = vmatprep.mubr.f32.mxu0 0.0
        %3057 = vmatmul.mubr.f32.gmra.mrb[0].mxu0 %v2475
        %v3058 = vpop.f32.mrb[0].mxu0
        %v3059 = vadd.f32 %v2270, %v3058
        %v3060 = vpop.f32.mrb[0].mxu0
        %3061 = vmatprep.mubr.f32.mxu0 0.0
        %3062 = vmatmul.mubr.f32.gmra.mrb[0].mxu0 %v2478
        %v3063 = vpop.f32.mrb[0].mxu0
        %v3064 = vadd.f32 %v2270, %v3063
        %v3065 = vpop.f32.mrb[0].mxu0
        %3066 = vmatprep.mubr.f32.mxu0 0.0
        %3067 = vmatmul.mubr.f32.gmra.mrb[0].mxu0 %v2481
        %v3068 = vpop.f32.mrb[0].mxu0
        %v3069 = vadd.f32 %v2270, %v3068
        %v3070 = vpop.f32.mrb[0].mxu0
        %3071 = vmatprep.mubr.f32.mxu0 0.0
        %3072 = vmatmul.mubr.f32.gmra.mrb[0].mxu0 %v2484
        %v3073 = vpop.f32.mrb[0].mxu0
        %v3074 = vadd.f32 %v2270, %v3073
        %v3075 = vpop.f32.mrb[0].mxu0
        %3076 = vmatprep.mubr.f32.mxu0 0.0
        %3077 = vmatmul.mubr.f32.gmra.mrb[0].mxu0 %v2487
        %v3078 = vpop.f32.mrb[0].mxu0
        %v3079 = vadd.f32 %v2270, %v3078
        %v3080 = vpop.f32.mrb[0].mxu0
        %3081 = vmatprep.mubr.f32.mxu0 0.0
        %3082 = vmatmul.mubr.f32.gmra.mrb[0].mxu0 %v2490
        %v3083 = vpop.f32.mrb[0].mxu0
        %v3084 = vadd.f32 %v2270, %v3083
        %v3085 = vpop.f32.mrb[0].mxu0
        %3086 = vmatprep.mubr.f32.mxu0 0.0
        %3087 = vmatmul.mubr.f32.gmra.mrb[0].mxu0 %v2493
        %v3088 = vpop.f32.mrb[0].mxu0
        %v3089 = vadd.f32 %v2270, %v3088
        %v3090 = vpop.f32.mrb[0].mxu0
        %3091 = vmatprep.mubr.f32.mxu0 0.0
        %3092 = vmatmul.mubr.f32.gmra.mrb[0].mxu0 %v2496
        %v3093 = vpop.f32.mrb[0].mxu0
        %v3094 = vadd.f32 %v2270, %v3093
        %v3095 = vpop.f32.mrb[0].mxu0
        %3096 = vmatprep.mubr.f32.mxu0 0.0
        %3097 = vmatmul.mubr.f32.gmra.mrb[0].mxu0 %v2499
        %v3098 = vpop.f32.mrb[0].mxu0
        %v3099 = vadd.f32 %v2270, %v3098
        %v3100 = vpop.f32.mrb[0].mxu0
        %3101 = vmatprep.mubr.f32.mxu0 0.0
        %3102 = vmatmul.mubr.f32.gmra.mrb[0].mxu0 %v2502
        %v3103 = vpop.f32.mrb[0].mxu0
        %v3104 = vadd.f32 %v2270, %v3103
        %v3105 = vpop.f32.mrb[0].mxu0
        %3106 = vmatprep.mubr.f32.mxu0 0.0
        %3107 = vmatmul.mubr.f32.gmra.mrb[0].mxu0 %v2505
        %v3108 = vpop.f32.mrb[0].mxu0
        %v3109 = vadd.f32 %v2270, %v3108
        %v3110 = vpop.f32.mrb[0].mxu0
        %3111 = vmatprep.mubr.f32.mxu0 0.0
        %3112 = vmatmul.mubr.f32.gmra.mrb[0].mxu0 %v2508
        %v3113 = vpop.f32.mrb[0].mxu0
        %v3114 = vadd.f32 %v2270, %v3113
        %v3115 = vpop.f32.mrb[0].mxu0
        %3116 = vmatprep.mubr.f32.mxu0 0.0
        %3117 = vmatmul.mubr.f32.gmra.mrb[0].mxu0 %v2511
        %v3118 = vpop.f32.mrb[0].mxu0
        %v3119 = vadd.f32 %v2270, %v3118
        %v3120 = vpop.f32.mrb[0].mxu0
        %3121 = vmatprep.mubr.f32.mxu0 0.0
        %3122 = vmatmul.mubr.f32.gmra.mrb[0].mxu0 %v2514
        %v3123 = vpop.f32.mrb[0].mxu0
        %v3124 = vadd.f32 %v2270, %v3123
        %v3125 = vpop.f32.mrb[0].mxu0
        %3126 = vmatprep.mubr.f32.mxu0 0.0
        %3127 = vmatmul.mubr.f32.gmra.mrb[0].mxu0 %v2517
        %v3128 = vpop.f32.mrb[0].mxu0
        %v3129 = vadd.f32 %v2270, %v3128
        %v3130 = vpop.f32.mrb[0].mxu0
        %3131 = vmatprep.mubr.f32.mxu0 0.0
        %3132 = vmatmul.mubr.f32.gmra.mrb[0].mxu0 %v2520
        %v3133 = vpop.f32.mrb[0].mxu0
        %v3134 = vadd.f32 %v2270, %v3133
        %v3135 = vpop.f32.mrb[0].mxu0
        %3136 = vmatprep.mubr.f32.mxu0 0.0
        %3137 = vmatmul.mubr.f32.gmra.mrb[0].mxu0 %v2523
        %v3138 = vpop.f32.mrb[0].mxu0
        %v3139 = vadd.f32 %v2270, %v3138
        %v3140 = vpop.f32.mrb[0].mxu0
        %3141 = vmatprep.mubr.f32.mxu0 0.0
        %3142 = vmatmul.mubr.f32.gmra.mrb[0].mxu0 %v2526
        %v3143 = vpop.f32.mrb[0].mxu0
        %v3144 = vadd.f32 %v2270, %v3143
        %v3145 = vpop.f32.mrb[0].mxu0
        %3146 = vmatprep.mubr.f32.mxu0 0.0
        %3147 = vmatmul.mubr.f32.gmra.mrb[0].mxu0 %v2529
        %v3148 = vpop.f32.mrb[0].mxu0
        %v3149 = vadd.f32 %v2270, %v3148
        %v3150 = vpop.f32.mrb[0].mxu0
        %3151 = vmatprep.mubr.f32.mxu0 0.0
        %3152 = vmatmul.mubr.f32.gmra.mrb[0].mxu0 %v2532
        %v3153 = vpop.f32.mrb[0].mxu0
        %v3154 = vadd.f32 %v2270, %v3153
        %v3155 = vpop.f32.mrb[0].mxu0
        %3156 = vmatprep.mubr.f32.mxu0 0.0
        %3157 = vmatmul.mubr.f32.gmra.mrb[0].mxu0 %v2535
        %v3158 = vpop.f32.mrb[0].mxu0
        %v3159 = vadd.f32 %v2270, %v3158
        %v3160 = vpop.f32.mrb[0].mxu0
        %3161 = vmatprep.mubr.f32.mxu0 0.0
        %3162 = vmatmul.mubr.f32.gmra.mrb[0].mxu0 %v2538
        %v3163 = vpop.f32.mrb[0].mxu0
        %v3164 = vadd.f32 %v2270, %v3163
        %v3165 = vpop.f32.mrb[0].mxu0
        %3166 = vmatprep.mubr.f32.mxu0 0.0
        %3167 = vmatmul.mubr.f32.gmra.mrb[0].mxu0 %v2541
        %v3168 = vpop.f32.mrb[0].mxu0
        %v3169 = vadd.f32 %v2270, %v3168
        %v3170 = vpop.f32.mrb[0].mxu0
        %3171 = vmatprep.mubr.f32.mxu0 0.0
        %3172 = vmatmul.mubr.f32.gmra.mrb[0].mxu0 %v2544
        %v3173 = vpop.f32.mrb[0].mxu0
        %v3174 = vadd.f32 %v2270, %v3173
        %v3175 = vpop.f32.mrb[0].mxu0
        %3176 = vmatprep.mubr.f32.mxu0 0.0
        %3177 = vmatmul.mubr.f32.gmra.mrb[0].mxu0 %v2547
        %v3178 = vpop.f32.mrb[0].mxu0
        %v3179 = vadd.f32 %v2270, %v3178
        %v3180 = vpop.f32.mrb[0].mxu0
        %3181 = vmatprep.mubr.f32.mxu0 0.0
        %3182 = vmatmul.mubr.f32.gmra.mrb[0].mxu0 %v2550
        %v3183 = vpop.f32.mrb[0].mxu0
        %v3184 = vadd.f32 %v2270, %v3183
        %v3185 = vpop.f32.mrb[0].mxu0
        %3186 = vmatprep.mubr.f32.mxu0 0.0
        %3187 = vmatmul.mubr.f32.gmra.mrb[0].mxu0 %v2553
        %v3188 = vpop.f32.mrb[0].mxu0
        %v3189 = vadd.f32 %v2270, %v3188
        %v3190 = vpop.f32.mrb[0].mxu0
        %3191 = vmatprep.mubr.f32.mxu0 0.0
        %3192 = vmatmul.mubr.f32.gmra.mrb[0].mxu0 %v2556
        %v3193 = vpop.f32.mrb[0].mxu0
        %v3194 = vadd.f32 %v2270, %v3193
        %v3195 = vpop.f32.mrb[0].mxu0
        %3196 = vmatprep.mubr.f32.mxu0 0.0
        %3197 = vmatmul.mubr.f32.gmra.mrb[0].mxu0 %v2559
        %v3198 = vpop.f32.mrb[0].mxu0
        %v3199 = vadd.f32 %v2270, %v3198
        %v3200 = vpop.f32.mrb[0].mxu0
        %3201 = vmatprep.mubr.f32.mxu0 0.0
        %3202 = vmatmul.mubr.f32.gmra.mrb[0].mxu0 %v2562
        %v3203 = vpop.f32.mrb[0].mxu0
        %v3204 = vadd.f32 %v2270, %v3203
        %v3205 = vpop.f32.mrb[0].mxu0
        %3206 = vmatprep.mubr.f32.mxu0 0.0
        %3207 = vmatmul.mubr.f32.gmra.mrb[0].mxu0 %v2565
        %v3208 = vpop.f32.mrb[0].mxu0
        %v3209 = vadd.f32 %v2270, %v3208
        %v3210 = vpop.f32.mrb[0].mxu0
        %3211 = vmatprep.mubr.f32.mxu0 0.0
        %3212 = vmatmul.mubr.f32.gmra.mrb[0].mxu0 %v2568
        %v3213 = vpop.f32.mrb[0].mxu0
        %v3214 = vadd.f32 %v2270, %v3213
        %v3215 = vpop.f32.mrb[0].mxu0
        %3216 = vmatprep.mubr.f32.mxu0 0.0
        %3217 = vmatmul.mubr.f32.gmra.mrb[0].mxu0 %v2571
        %v3218 = vpop.f32.mrb[0].mxu0
        %v3219 = vadd.f32 %v2270, %v3218
        %v3220 = vpop.f32.mrb[0].mxu0
        %3221 = vmatprep.mubr.f32.mxu0 0.0
        %3222 = vmatmul.mubr.f32.gmra.mrb[0].mxu0 %v2574
        %v3223 = vpop.f32.mrb[0].mxu0
        %v3224 = vadd.f32 %v2270, %v3223
        %v3225 = vpop.f32.mrb[0].mxu0
        %3226 = vmatprep.mubr.f32.mxu0 0.0
        %3227 = vmatmul.mubr.f32.gmra.mrb[0].mxu0 %v2577
        %v3228 = vpop.f32.mrb[0].mxu0
        %v3229 = vadd.f32 %v2270, %v3228
        %v3230 = vpop.f32.mrb[0].mxu0
        %3231 = vmatprep.mubr.f32.mxu0 0.0
        %3232 = vmatmul.mubr.f32.gmra.mrb[0].mxu0 %v2580
        %v3233 = vpop.f32.mrb[0].mxu0
        %v3234 = vadd.f32 %v2270, %v3233
        %v3235 = vpop.f32.mrb[0].mxu0
        %3236 = vmatprep.mubr.f32.mxu0 0.0
        %3237 = vmatmul.mubr.f32.gmra.mrb[0].mxu0 %v2583
        %v3238 = vpop.f32.mrb[0].mxu0
        %v3239 = vadd.f32 %v2270, %v3238
        %v3240 = vpop.f32.mrb[0].mxu0
        %3241 = vmatprep.mubr.f32.mxu0 0.0
        %3242 = vmatmul.mubr.f32.gmra.mrb[0].mxu0 %v2586
        %v3243 = vpop.f32.mrb[0].mxu0
        %v3244 = vadd.f32 %v2270, %v3243
        %v3245 = vpop.f32.mrb[0].mxu0
        %3246 = vmatprep.mubr.f32.mxu0 0.0
        %3247 = vmatmul.mubr.f32.gmra.mrb[0].mxu0 %v2589
        %v3248 = vpop.f32.mrb[0].mxu0
        %v3249 = vadd.f32 %v2270, %v3248
        %v3250 = vpop.f32.mrb[0].mxu0
        %3251 = vmatprep.mubr.f32.mxu0 0.0
        %3252 = vmatmul.mubr.f32.gmra.mrb[0].mxu0 %v2592
        %v3253 = vpop.f32.mrb[0].mxu0
        %v3254 = vadd.f32 %v2270, %v3253
        %v3255 = vpop.f32.mrb[0].mxu0
        %3256 = vmatprep.mubr.f32.mxu0 0.0
        %3257 = vmatmul.mubr.f32.gmra.mrb[0].mxu0 %v2595
        %v3258 = vpop.f32.mrb[0].mxu0
        %v3259 = vadd.f32 %v2270, %v3258
        %v3260 = vpop.f32.mrb[0].mxu0
        %3261 = vmatprep.mubr.f32.mxu0 0.0
        %3262 = vmatmul.mubr.f32.gmra.mrb[0].mxu0 %v2598
        %v3263 = vpop.f32.mrb[0].mxu0
        %v3264 = vadd.f32 %v2270, %v3263
        %v3265 = vpop.f32.mrb[0].mxu0
        %3266 = vmatprep.mubr.f32.mxu0 0.0
        %3267 = vmatmul.mubr.f32.gmra.mrb[0].mxu0 %v2601
        %v3268 = vpop.f32.mrb[0].mxu0
        %v3269 = vadd.f32 %v2270, %v3268
        %v3270 = vpop.f32.mrb[0].mxu0
        %3271 = vmatprep.mubr.f32.mxu0 0.0
        %3272 = vmatmul.mubr.f32.gmra.mrb[0].mxu0 %v2604
        %v3273 = vpop.f32.mrb[0].mxu0
        %v3274 = vadd.f32 %v2270, %v3273
        %v3275 = vpop.f32.mrb[0].mxu0
        %3276 = vmatprep.mubr.f32.mxu0 0.0
        %3277 = vmatmul.mubr.f32.gmra.mrb[0].mxu0 %v2607
        %v3278 = vpop.f32.mrb[0].mxu0
        %v3279 = vadd.f32 %v2270, %v3278
        %v3280 = vpop.f32.mrb[0].mxu0
        %3281 = vmatprep.mubr.f32.mxu0 0.0
        %3282 = vmatmul.mubr.f32.gmra.mrb[0].mxu0 %v2610
        %v3283 = vpop.f32.mrb[0].mxu0
        %v3284 = vadd.f32 %v2270, %v3283
        %v3285 = vpop.f32.mrb[0].mxu0
        %3286 = vmatprep.mubr.f32.mxu0 0.0
        %3287 = vmatmul.mubr.f32.gmra.mrb[0].mxu0 %v2613
        %v3288 = vpop.f32.mrb[0].mxu0
        %v3289 = vadd.f32 %v2270, %v3288
        %v3290 = vpop.f32.mrb[0].mxu0
        %3291 = vmatprep.mubr.f32.mxu0 0.0
        %3292 = vmatmul.mubr.f32.gmra.mrb[0].mxu0 %v2616
        %v3293 = vpop.f32.mrb[0].mxu0
        %v3294 = vadd.f32 %v2270, %v3293
        %v3295 = vpop.f32.mrb[0].mxu0
        %3296 = vmatprep.mubr.f32.mxu0 0.0
        %3297 = vmatmul.mubr.f32.gmra.mrb[0].mxu0 %v2619
        %v3298 = vpop.f32.mrb[0].mxu0
        %v3299 = vadd.f32 %v2270, %v3298
        %v3300 = vpop.f32.mrb[0].mxu0
        %3301 = vmatprep.mubr.f32.mxu0 0.0
        %3302 = vmatmul.mubr.f32.gmra.mrb[0].mxu0 %v2622
        %v3303 = vpop.f32.mrb[0].mxu0
        %v3304 = vadd.f32 %v2270, %v3303
        %v3305 = vpop.f32.mrb[0].mxu0
        %3306 = vmatprep.mubr.f32.mxu0 0.0
        %3307 = vmatmul.mubr.f32.gmra.mrb[0].mxu0 %v2625
        %v3308 = vpop.f32.mrb[0].mxu0
        %v3309 = vadd.f32 %v2270, %v3308
        %v3310 = vpop.f32.mrb[0].mxu0
        %3311 = vmatprep.mubr.f32.mxu0 0.0
        %3312 = vmatmul.mubr.f32.gmra.mrb[0].mxu0 %v2628
        %v3313 = vpop.f32.mrb[0].mxu0
        %v3314 = vadd.f32 %v2270, %v3313
        %v3315 = vpop.f32.mrb[0].mxu0
        %3316 = vmatprep.mubr.f32.mxu0 0.0
        %3317 = vmatmul.mubr.f32.gmra.mrb[0].mxu0 %v2631
        %v3318 = vpop.f32.mrb[0].mxu0
        %v3319 = vadd.f32 %v2270, %v3318
        %v3320 = vpop.f32.mrb[0].mxu0
        %3321 = vmatprep.mubr.f32.mxu0 0.0
        %3322 = vmatmul.mubr.f32.gmra.mrb[0].mxu0 %v2634
        %v3323 = vpop.f32.mrb[0].mxu0
        %v3324 = vadd.f32 %v2270, %v3323
        %v3325 = vpop.f32.mrb[0].mxu0
        %3326 = vmatprep.mubr.f32.mxu0 0.0
        %3327 = vmatmul.mubr.f32.gmra.mrb[0].mxu0 %v2637
        %v3328 = vpop.f32.mrb[0].mxu0
        %v3329 = vadd.f32 %v2270, %v3328
        %v3330 = vpop.f32.mrb[0].mxu0
        %3331 = vmatprep.mubr.f32.mxu0 0.0
        %3332 = vmatmul.mubr.f32.gmra.mrb[0].mxu0 %v2640
        %v3333 = vpop.f32.mrb[0].mxu0
        %v3334 = vadd.f32 %v2270, %v3333
        %v3335 = vpop.f32.mrb[0].mxu0
        %3336 = vmatprep.mubr.f32.mxu0 0.0
        %3337 = vmatmul.mubr.f32.gmra.mrb[0].mxu0 %v2643
        %v3338 = vpop.f32.mrb[0].mxu0
        %v3339 = vadd.f32 %v2270, %v3338
        %v3340 = vpop.f32.mrb[0].mxu0
        %3341 = vmatprep.mubr.f32.mxu0 0.0
        %3342 = vmatmul.mubr.f32.gmra.mrb[0].mxu0 %v2646
        %v3343 = vpop.f32.mrb[0].mxu0
        %v3344 = vadd.f32 %v2270, %v3343
        %v3345 = vpop.f32.mrb[0].mxu0
        %3346 = vmatprep.mubr.f32.mxu0 0.0
        %3347 = vmatmul.mubr.f32.gmra.mrb[0].mxu0 %v2649
        %v3348 = vpop.f32.mrb[0].mxu0
        %v3349 = vadd.f32 %v2270, %v3348
        %v3350 = vpop.f32.mrb[0].mxu0
        %3351 = vmatprep.mubr.f32.mxu0 0.0
        %3352 = vmatmul.mubr.f32.gmra.mrb[0].mxu0 %v2652
        %v3353 = vpop.f32.mrb[0].mxu0
        %v3354 = vadd.f32 %v2270, %v3353
        %v3355 = vpop.f32.mrb[0].mxu0
        %3356 = vmatprep.mubr.f32.mxu0 0.0
        %3357 = vmatmul.mubr.f32.gmra.mrb[0].mxu0 %v2655
        %v3358 = vpop.f32.mrb[0].mxu0
        %v3359 = vadd.f32 %v2270, %v3358
        %v3360 = vpop.f32.mrb[0].mxu0
        %3361 = vdwg.mxu0
        %v3362 = vmax.f32 %v2724, 0.0
        %v3363 = vmax.f32 %v2729, 0.0
        %v3364 = vmax.f32 %v2734, 0.0
        %v3365 = vmax.f32 %v2739, 0.0
        %v3366 = vmax.f32 %v2744, 0.0
        %v3367 = vmax.f32 %v2749, 0.0
        %v3368 = vmax.f32 %v2754, 0.0
        %v3369 = vmax.f32 %v2759, 0.0
        %v3370 = vmax.f32 %v2764, 0.0
        %v3371 = vmax.f32 %v2769, 0.0
        %v3372 = vmax.f32 %v2774, 0.0
        %v3373 = vmax.f32 %v2779, 0.0
        %v3374 = vmax.f32 %v2784, 0.0
        %v3375 = vmax.f32 %v2789, 0.0
        %v3376 = vmax.f32 %v2794, 0.0
        %v3377 = vmax.f32 %v2799, 0.0
        %v3378 = vmax.f32 %v2804, 0.0
        %v3379 = vmax.f32 %v2809, 0.0
        %v3380 = vmax.f32 %v2814, 0.0
        %v3381 = vmax.f32 %v2819, 0.0
        %v3382 = vmax.f32 %v2824, 0.0
        %v3383 = vmax.f32 %v2829, 0.0
        %v3384 = vmax.f32 %v2834, 0.0
        %v3385 = vmax.f32 %v2839, 0.0
        %v3386 = vmax.f32 %v2844, 0.0
        %v3387 = vmax.f32 %v2849, 0.0
        %v3388 = vmax.f32 %v2854, 0.0
        %v3389 = vmax.f32 %v2859, 0.0
        %v3390 = vmax.f32 %v2864, 0.0
        %v3391 = vmax.f32 %v2869, 0.0
        %v3392 = vmax.f32 %v2874, 0.0
        %v3393 = vmax.f32 %v2879, 0.0
        %v3394 = vmax.f32 %v2884, 0.0
        %v3395 = vmax.f32 %v2889, 0.0
        %v3396 = vmax.f32 %v2894, 0.0
        %v3397 = vmax.f32 %v2899, 0.0
        %v3398 = vmax.f32 %v2904, 0.0
        %v3399 = vmax.f32 %v2909, 0.0
        %v3400 = vmax.f32 %v2914, 0.0
        %v3401 = vmax.f32 %v2919, 0.0
        %v3402 = vmax.f32 %v2924, 0.0
        %v3403 = vmax.f32 %v2929, 0.0
        %v3404 = vmax.f32 %v2934, 0.0
        %v3405 = vmax.f32 %v2939, 0.0
        %v3406 = vmax.f32 %v2944, 0.0
        %v3407 = vmax.f32 %v2949, 0.0
        %v3408 = vmax.f32 %v2954, 0.0
        %v3409 = vmax.f32 %v2959, 0.0
        %v3410 = vmax.f32 %v2964, 0.0
        %v3411 = vmax.f32 %v2969, 0.0
        %v3412 = vmax.f32 %v2974, 0.0
        %v3413 = vmax.f32 %v2979, 0.0
        %v3414 = vmax.f32 %v2984, 0.0
        %v3415 = vmax.f32 %v2989, 0.0
        %v3416 = vmax.f32 %v2994, 0.0
        %v3417 = vmax.f32 %v2999, 0.0
        %v3418 = vmax.f32 %v3004, 0.0
        %v3419 = vmax.f32 %v3009, 0.0
        %v3420 = vmax.f32 %v3014, 0.0
        %v3421 = vmax.f32 %v3019, 0.0
        %v3422 = vmax.f32 %v3024, 0.0
        %v3423 = vmax.f32 %v3029, 0.0
        %v3424 = vmax.f32 %v3034, 0.0
        %v3425 = vmax.f32 %v3039, 0.0
        %v3426 = vmax.f32 %v3044, 0.0
        %v3427 = vmax.f32 %v3049, 0.0
        %v3428 = vmax.f32 %v3054, 0.0
        %v3429 = vmax.f32 %v3059, 0.0
        %v3430 = vmax.f32 %v3064, 0.0
        %v3431 = vmax.f32 %v3069, 0.0
        %v3432 = vmax.f32 %v3074, 0.0
        %v3433 = vmax.f32 %v3079, 0.0
        %v3434 = vmax.f32 %v3084, 0.0
        %v3435 = vmax.f32 %v3089, 0.0
        %v3436 = vmax.f32 %v3094, 0.0
        %v3437 = vmax.f32 %v3099, 0.0
        %v3438 = vmax.f32 %v3104, 0.0
        %v3439 = vmax.f32 %v3109, 0.0
        %v3440 = vmax.f32 %v3114, 0.0
        %v3441 = vmax.f32 %v3119, 0.0
        %v3442 = vmax.f32 %v3124, 0.0
        %v3443 = vmax.f32 %v3129, 0.0
        %v3444 = vmax.f32 %v3134, 0.0
        %v3445 = vmax.f32 %v3139, 0.0
        %v3446 = vmax.f32 %v3144, 0.0
        %v3447 = vmax.f32 %v3149, 0.0
        %v3448 = vmax.f32 %v3154, 0.0
        %v3449 = vmax.f32 %v3159, 0.0
        %v3450 = vmax.f32 %v3164, 0.0
        %v3451 = vmax.f32 %v3169, 0.0
        %v3452 = vmax.f32 %v3174, 0.0
        %v3453 = vmax.f32 %v3179, 0.0
        %v3454 = vmax.f32 %v3184, 0.0
        %v3455 = vmax.f32 %v3189, 0.0
        %v3456 = vmax.f32 %v3194, 0.0
        %v3457 = vmax.f32 %v3199, 0.0
        %v3458 = vmax.f32 %v3204, 0.0
        %v3459 = vmax.f32 %v3209, 0.0
        %v3460 = vmax.f32 %v3214, 0.0
        %v3461 = vmax.f32 %v3219, 0.0
        %v3462 = vmax.f32 %v3224, 0.0
        %v3463 = vmax.f32 %v3229, 0.0
        %v3464 = vmax.f32 %v3234, 0.0
        %v3465 = vmax.f32 %v3239, 0.0
        %v3466 = vmax.f32 %v3244, 0.0
        %v3467 = vmax.f32 %v3249, 0.0
        %v3468 = vmax.f32 %v3254, 0.0
        %v3469 = vmax.f32 %v3259, 0.0
        %v3470 = vmax.f32 %v3264, 0.0
        %v3471 = vmax.f32 %v3269, 0.0
        %v3472 = vmax.f32 %v3274, 0.0
        %v3473 = vmax.f32 %v3279, 0.0
        %v3474 = vmax.f32 %v3284, 0.0
        %v3475 = vmax.f32 %v3289, 0.0
        %v3476 = vmax.f32 %v3294, 0.0
        %v3477 = vmax.f32 %v3299, 0.0
        %v3478 = vmax.f32 %v3304, 0.0
        %v3479 = vmax.f32 %v3309, 0.0
        %v3480 = vmax.f32 %v3314, 0.0
        %v3481 = vmax.f32 %v3319, 0.0
        %v3482 = vmax.f32 %v3324, 0.0
        %v3483 = vmax.f32 %v3329, 0.0
        %v3484 = vmax.f32 %v3334, 0.0
        %v3485 = vmax.f32 %v3339, 0.0
        %v3486 = vmax.f32 %v3344, 0.0
        %v3487 = vmax.f32 %v3349, 0.0
        %v3488 = vmax.f32 %v3354, 0.0
        %v3489 = vmax.f32 %v3359, 0.0
        %s3490 = scalar_lea.vmem %s6, 32
        %v3491 = vld [vmem:[%s3490] sm:$0xff]
        %v3492 = vld [vmem:[%s3490 + $0x8] sm:$0xff]
        %v3493 = vld [vmem:[%s3490 + $0x10] sm:$0xff]
        %v3494 = vld [vmem:[%s3490 + $0x18] sm:$0xff]
        %s3495 = scalar_lea.vmem %s7, 1
        %v3496 = vld [vmem:[%s3495] sm:$0x1]
        %v3498 = vlaneseq
        %v3499 = vshrl.u32 %v3498, 7
        %v3500 = vsub.s32 0, %v3499
        %v3501 = vrot.slane %v3496, %v3500
        %v3504 = vsel %vm2272, %v3362, 0
        %v3507 = vsel %vm2272, %v3363, 0
        %v3510 = vsel %vm2272, %v3364, 0
        %v3513 = vsel %vm2272, %v3365, 0
        %v3516 = vsel %vm2272, %v3366, 0
        %v3519 = vsel %vm2272, %v3367, 0
        %v3522 = vsel %vm2272, %v3368, 0
        %v3525 = vsel %vm2272, %v3369, 0
        %v3528 = vsel %vm2272, %v3370, 0
        %v3531 = vsel %vm2272, %v3371, 0
        %v3534 = vsel %vm2272, %v3372, 0
        %v3537 = vsel %vm2272, %v3373, 0
        %v3540 = vsel %vm2272, %v3374, 0
        %v3543 = vsel %vm2272, %v3375, 0
        %v3546 = vsel %vm2272, %v3376, 0
        %v3549 = vsel %vm2272, %v3377, 0
        %v3552 = vsel %vm2272, %v3378, 0
        %v3555 = vsel %vm2272, %v3379, 0
        %v3558 = vsel %vm2272, %v3380, 0
        %v3561 = vsel %vm2272, %v3381, 0
        %v3564 = vsel %vm2272, %v3382, 0
        %v3567 = vsel %vm2272, %v3383, 0
        %v3570 = vsel %vm2272, %v3384, 0
        %v3573 = vsel %vm2272, %v3385, 0
        %v3576 = vsel %vm2272, %v3386, 0
        %v3579 = vsel %vm2272, %v3387, 0
        %v3582 = vsel %vm2272, %v3388, 0
        %v3585 = vsel %vm2272, %v3389, 0
        %v3588 = vsel %vm2272, %v3390, 0
        %v3591 = vsel %vm2272, %v3391, 0
        %v3594 = vsel %vm2272, %v3392, 0
        %v3597 = vsel %vm2272, %v3393, 0
        %v3600 = vsel %vm2272, %v3394, 0
        %v3603 = vsel %vm2272, %v3395, 0
        %v3606 = vsel %vm2272, %v3396, 0
        %v3609 = vsel %vm2272, %v3397, 0
        %v3612 = vsel %vm2272, %v3398, 0
        %v3615 = vsel %vm2272, %v3399, 0
        %v3618 = vsel %vm2272, %v3400, 0
        %v3621 = vsel %vm2272, %v3401, 0
        %v3624 = vsel %vm2272, %v3402, 0
        %v3627 = vsel %vm2272, %v3403, 0
        %v3630 = vsel %vm2272, %v3404, 0
        %v3633 = vsel %vm2272, %v3405, 0
        %v3636 = vsel %vm2272, %v3406, 0
        %v3639 = vsel %vm2272, %v3407, 0
        %v3642 = vsel %vm2272, %v3408, 0
        %v3645 = vsel %vm2272, %v3409, 0
        %v3648 = vsel %vm2272, %v3410, 0
        %v3651 = vsel %vm2272, %v3411, 0
        %v3654 = vsel %vm2272, %v3412, 0
        %v3657 = vsel %vm2272, %v3413, 0
        %v3660 = vsel %vm2272, %v3414, 0
        %v3663 = vsel %vm2272, %v3415, 0
        %v3666 = vsel %vm2272, %v3416, 0
        %v3669 = vsel %vm2272, %v3417, 0
        %v3672 = vsel %vm2272, %v3418, 0
        %v3675 = vsel %vm2272, %v3419, 0
        %v3678 = vsel %vm2272, %v3420, 0
        %v3681 = vsel %vm2272, %v3421, 0
        %v3684 = vsel %vm2272, %v3422, 0
        %v3687 = vsel %vm2272, %v3423, 0
        %v3690 = vsel %vm2272, %v3424, 0
        %v3693 = vsel %vm2272, %v3425, 0
        %v3696 = vsel %vm2272, %v3426, 0
        %v3699 = vsel %vm2272, %v3427, 0
        %v3702 = vsel %vm2272, %v3428, 0
        %v3705 = vsel %vm2272, %v3429, 0
        %v3708 = vsel %vm2272, %v3430, 0
        %v3711 = vsel %vm2272, %v3431, 0
        %v3714 = vsel %vm2272, %v3432, 0
        %v3717 = vsel %vm2272, %v3433, 0
        %v3720 = vsel %vm2272, %v3434, 0
        %v3723 = vsel %vm2272, %v3435, 0
        %v3726 = vsel %vm2272, %v3436, 0
        %v3729 = vsel %vm2272, %v3437, 0
        %v3732 = vsel %vm2272, %v3438, 0
        %v3735 = vsel %vm2272, %v3439, 0
        %v3738 = vsel %vm2272, %v3440, 0
        %v3741 = vsel %vm2272, %v3441, 0
        %v3744 = vsel %vm2272, %v3442, 0
        %v3747 = vsel %vm2272, %v3443, 0
        %v3750 = vsel %vm2272, %v3444, 0
        %v3753 = vsel %vm2272, %v3445, 0
        %v3756 = vsel %vm2272, %v3446, 0
        %v3759 = vsel %vm2272, %v3447, 0
        %v3762 = vsel %vm2272, %v3448, 0
        %v3765 = vsel %vm2272, %v3449, 0
        %v3768 = vsel %vm2272, %v3450, 0
        %v3771 = vsel %vm2272, %v3451, 0
        %v3774 = vsel %vm2272, %v3452, 0
        %v3777 = vsel %vm2272, %v3453, 0
        %v3780 = vsel %vm2272, %v3454, 0
        %v3783 = vsel %vm2272, %v3455, 0
        %v3786 = vsel %vm2272, %v3456, 0
        %v3789 = vsel %vm2272, %v3457, 0
        %v3792 = vsel %vm2272, %v3458, 0
        %v3795 = vsel %vm2272, %v3459, 0
        %v3798 = vsel %vm2272, %v3460, 0
        %v3801 = vsel %vm2272, %v3461, 0
        %v3804 = vsel %vm2272, %v3462, 0
        %v3807 = vsel %vm2272, %v3463, 0
        %v3810 = vsel %vm2272, %v3464, 0
        %v3813 = vsel %vm2272, %v3465, 0
        %v3816 = vsel %vm2272, %v3466, 0
        %v3819 = vsel %vm2272, %v3467, 0
        %v3822 = vsel %vm2272, %v3468, 0
        %v3825 = vsel %vm2272, %v3469, 0
        %v3828 = vsel %vm2272, %v3470, 0
        %v3831 = vsel %vm2272, %v3471, 0
        %v3834 = vsel %vm2272, %v3472, 0
        %v3837 = vsel %vm2272, %v3473, 0
        %v3840 = vsel %vm2272, %v3474, 0
        %v3843 = vsel %vm2272, %v3475, 0
        %v3846 = vsel %vm2272, %v3476, 0
        %v3849 = vsel %vm2272, %v3477, 0
        %v3852 = vsel %vm2272, %v3478, 0
        %v3855 = vsel %vm2272, %v3479, 0
        %v3858 = vsel %vm2272, %v3480, 0
        %v3861 = vsel %vm2272, %v3481, 0
        %v3864 = vsel %vm2272, %v3482, 0
        %v3867 = vsel %vm2272, %v3483, 0
        %v3870 = vsel %vm2272, %v3484, 0
        %v3873 = vsel %vm2272, %v3485, 0
        %v3876 = vsel %vm2272, %v3486, 0
        %v3879 = vsel %vm2272, %v3487, 0
        %v3882 = vsel %vm2272, %v3488, 0
        %v3885 = vsel %vm2272, %v3489, 0
        %3887 = vmatprep.subr.mxu0 0.0
        %3888 = vmatpush1.msra.mxu0 %v3491
        %3889 = vmatprep.subr.mxu0 0.0
        %3890 = vmatpush1.msra.mxu0 %v3492
        %3891 = vmatprep.subr.mxu0 0.0
        %3892 = vmatpush1.msra.mxu0 %v3493
        %3893 = vmatprep.subr.mxu0 0.0
        %3894 = vmatpush1.msra.mxu0 %v3494
        %3895 = vmatprep.subr.mxu0 0.0
        %3896 = vmatpush1.msra.mxu0 0.0
        %3897 = vmatprep.subr.mxu0 0.0
        %3898 = vmatpush1.msra.mxu0 0.0
        %3899 = vmatprep.subr.mxu0 0.0
        %3900 = vmatpush1.msra.mxu0 0.0
        %3901 = vmatprep.subr.mxu0 0.0
        %3902 = vmatpush1.msra.mxu0 0.0
        %3903 = vmatprep.subr.mxu0 0.0
        %3904 = vmatpush1.msra.mxu0 0.0
        %3905 = vmatprep.subr.mxu0 0.0
        %3906 = vmatpush1.msra.mxu0 0.0
        %3907 = vmatprep.subr.mxu0 0.0
        %3908 = vmatpush1.msra.mxu0 0.0
        %3909 = vmatprep.subr.mxu0 0.0
        %3910 = vmatpush1.msra.mxu0 0.0
        %3911 = vmatprep.subr.mxu0 0.0
        %3912 = vmatpush1.msra.mxu0 0.0
        %3913 = vmatprep.subr.mxu0 0.0
        %3914 = vmatpush1.msra.mxu0 0.0
        %3915 = vmatprep.subr.mxu0 0.0
        %3916 = vmatpush1.msra.mxu0 0.0
        %3917 = vmatprep.subr.mxu0 0.0
        %3918 = vmatpush1.msra.mxu0 0.0
        %3919 = vmatprep.subr.mxu0 0.0
        %3920 = vmatpush1.msra.mxu0 0.0
        %3921 = vmatprep.subr.mxu0 0.0
        %3922 = vmatpush1.msra.mxu0 0.0
        %3923 = vmatprep.subr.mxu0 0.0
        %3924 = vmatpush1.msra.mxu0 0.0
        %3925 = vmatprep.subr.mxu0 0.0
        %3926 = vmatpush1.msra.mxu0 0.0
        %3927 = vmatprep.subr.mxu0 0.0
        %3928 = vmatpush1.msra.mxu0 0.0
        %3929 = vmatprep.subr.mxu0 0.0
        %3930 = vmatpush1.msra.mxu0 0.0
        %3931 = vmatprep.subr.mxu0 0.0
        %3932 = vmatpush1.msra.mxu0 0.0
        %3933 = vmatprep.subr.mxu0 0.0
        %3934 = vmatpush1.msra.mxu0 0.0
        %3935 = vmatprep.subr.mxu0 0.0
        %3936 = vmatpush1.msra.mxu0 0.0
        %3937 = vmatprep.subr.mxu0 0.0
        %3938 = vmatpush1.msra.mxu0 0.0
        %3939 = vmatprep.subr.mxu0 0.0
        %3940 = vmatpush1.msra.mxu0 0.0
        %3941 = vmatprep.subr.mxu0 0.0
        %3942 = vmatpush1.msra.mxu0 0.0
        %3943 = vmatprep.subr.mxu0 0.0
        %3944 = vmatpush1.msra.mxu0 0.0
        %3945 = vmatprep.subr.mxu0 0.0
        %3946 = vmatpush1.msra.mxu0 0.0
        %3947 = vmatprep.subr.mxu0 0.0
        %3948 = vmatpush1.msra.mxu0 0.0
        %3949 = vmatprep.subr.mxu0 0.0
        %3950 = vmatpush1.msra.mxu0 0.0
        %3951 = vmatprep.mubr.f32.mxu0 0.0
        %3952 = vmatmul.mubr.f32.gmra.mrb[0].mxu0 %v3504
        %v3953 = vpop.f32.mrb[0].mxu0
        %v3954 = vadd.f32 %v3501, %v3953
        %v3955 = vpop.f32.mrb[0].mxu0
        %3956 = vmatprep.mubr.f32.mxu0 0.0
        %3957 = vmatmul.mubr.f32.gmra.mrb[0].mxu0 %v3507
        %v3958 = vpop.f32.mrb[0].mxu0
        %v3959 = vadd.f32 %v3501, %v3958
        %v3960 = vpop.f32.mrb[0].mxu0
        %3961 = vmatprep.mubr.f32.mxu0 0.0
        %3962 = vmatmul.mubr.f32.gmra.mrb[0].mxu0 %v3510
        %v3963 = vpop.f32.mrb[0].mxu0
        %v3964 = vadd.f32 %v3501, %v3963
        %v3965 = vpop.f32.mrb[0].mxu0
        %3966 = vmatprep.mubr.f32.mxu0 0.0
        %3967 = vmatmul.mubr.f32.gmra.mrb[0].mxu0 %v3513
        %v3968 = vpop.f32.mrb[0].mxu0
        %v3969 = vadd.f32 %v3501, %v3968
        %v3970 = vpop.f32.mrb[0].mxu0
        %3971 = vmatprep.mubr.f32.mxu0 0.0
        %3972 = vmatmul.mubr.f32.gmra.mrb[0].mxu0 %v3516
        %v3973 = vpop.f32.mrb[0].mxu0
        %v3974 = vadd.f32 %v3501, %v3973
        %v3975 = vpop.f32.mrb[0].mxu0
        %3976 = vmatprep.mubr.f32.mxu0 0.0
        %3977 = vmatmul.mubr.f32.gmra.mrb[0].mxu0 %v3519
        %v3978 = vpop.f32.mrb[0].mxu0
        %v3979 = vadd.f32 %v3501, %v3978
        %v3980 = vpop.f32.mrb[0].mxu0
        %3981 = vmatprep.mubr.f32.mxu0 0.0
        %3982 = vmatmul.mubr.f32.gmra.mrb[0].mxu0 %v3522
        %v3983 = vpop.f32.mrb[0].mxu0
        %v3984 = vadd.f32 %v3501, %v3983
        %v3985 = vpop.f32.mrb[0].mxu0
        %3986 = vmatprep.mubr.f32.mxu0 0.0
        %3987 = vmatmul.mubr.f32.gmra.mrb[0].mxu0 %v3525
        %v3988 = vpop.f32.mrb[0].mxu0
        %v3989 = vadd.f32 %v3501, %v3988
        %v3990 = vpop.f32.mrb[0].mxu0
        %3991 = vmatprep.mubr.f32.mxu0 0.0
        %3992 = vmatmul.mubr.f32.gmra.mrb[0].mxu0 %v3528
        %v3993 = vpop.f32.mrb[0].mxu0
        %v3994 = vadd.f32 %v3501, %v3993
        %v3995 = vpop.f32.mrb[0].mxu0
        %3996 = vmatprep.mubr.f32.mxu0 0.0
        %3997 = vmatmul.mubr.f32.gmra.mrb[0].mxu0 %v3531
        %v3998 = vpop.f32.mrb[0].mxu0
        %v3999 = vadd.f32 %v3501, %v3998
        %v4000 = vpop.f32.mrb[0].mxu0
        %4001 = vmatprep.mubr.f32.mxu0 0.0
        %4002 = vmatmul.mubr.f32.gmra.mrb[0].mxu0 %v3534
        %v4003 = vpop.f32.mrb[0].mxu0
        %v4004 = vadd.f32 %v3501, %v4003
        %v4005 = vpop.f32.mrb[0].mxu0
        %4006 = vmatprep.mubr.f32.mxu0 0.0
        %4007 = vmatmul.mubr.f32.gmra.mrb[0].mxu0 %v3537
        %v4008 = vpop.f32.mrb[0].mxu0
        %v4009 = vadd.f32 %v3501, %v4008
        %v4010 = vpop.f32.mrb[0].mxu0
        %4011 = vmatprep.mubr.f32.mxu0 0.0
        %4012 = vmatmul.mubr.f32.gmra.mrb[0].mxu0 %v3540
        %v4013 = vpop.f32.mrb[0].mxu0
        %v4014 = vadd.f32 %v3501, %v4013
        %v4015 = vpop.f32.mrb[0].mxu0
        %4016 = vmatprep.mubr.f32.mxu0 0.0
        %4017 = vmatmul.mubr.f32.gmra.mrb[0].mxu0 %v3543
        %v4018 = vpop.f32.mrb[0].mxu0
        %v4019 = vadd.f32 %v3501, %v4018
        %v4020 = vpop.f32.mrb[0].mxu0
        %4021 = vmatprep.mubr.f32.mxu0 0.0
        %4022 = vmatmul.mubr.f32.gmra.mrb[0].mxu0 %v3546
        %v4023 = vpop.f32.mrb[0].mxu0
        %v4024 = vadd.f32 %v3501, %v4023
        %v4025 = vpop.f32.mrb[0].mxu0
        %4026 = vmatprep.mubr.f32.mxu0 0.0
        %4027 = vmatmul.mubr.f32.gmra.mrb[0].mxu0 %v3549
        %v4028 = vpop.f32.mrb[0].mxu0
        %v4029 = vadd.f32 %v3501, %v4028
        %v4030 = vpop.f32.mrb[0].mxu0
        %4031 = vmatprep.mubr.f32.mxu0 0.0
        %4032 = vmatmul.mubr.f32.gmra.mrb[0].mxu0 %v3552
        %v4033 = vpop.f32.mrb[0].mxu0
        %v4034 = vadd.f32 %v3501, %v4033
        %v4035 = vpop.f32.mrb[0].mxu0
        %4036 = vmatprep.mubr.f32.mxu0 0.0
        %4037 = vmatmul.mubr.f32.gmra.mrb[0].mxu0 %v3555
        %v4038 = vpop.f32.mrb[0].mxu0
        %v4039 = vadd.f32 %v3501, %v4038
        %v4040 = vpop.f32.mrb[0].mxu0
        %4041 = vmatprep.mubr.f32.mxu0 0.0
        %4042 = vmatmul.mubr.f32.gmra.mrb[0].mxu0 %v3558
        %v4043 = vpop.f32.mrb[0].mxu0
        %v4044 = vadd.f32 %v3501, %v4043
        %v4045 = vpop.f32.mrb[0].mxu0
        %4046 = vmatprep.mubr.f32.mxu0 0.0
        %4047 = vmatmul.mubr.f32.gmra.mrb[0].mxu0 %v3561
        %v4048 = vpop.f32.mrb[0].mxu0
        %v4049 = vadd.f32 %v3501, %v4048
        %v4050 = vpop.f32.mrb[0].mxu0
        %4051 = vmatprep.mubr.f32.mxu0 0.0
        %4052 = vmatmul.mubr.f32.gmra.mrb[0].mxu0 %v3564
        %v4053 = vpop.f32.mrb[0].mxu0
        %v4054 = vadd.f32 %v3501, %v4053
        %v4055 = vpop.f32.mrb[0].mxu0
        %4056 = vmatprep.mubr.f32.mxu0 0.0
        %4057 = vmatmul.mubr.f32.gmra.mrb[0].mxu0 %v3567
        %v4058 = vpop.f32.mrb[0].mxu0
        %v4059 = vadd.f32 %v3501, %v4058
        %v4060 = vpop.f32.mrb[0].mxu0
        %4061 = vmatprep.mubr.f32.mxu0 0.0
        %4062 = vmatmul.mubr.f32.gmra.mrb[0].mxu0 %v3570
        %v4063 = vpop.f32.mrb[0].mxu0
        %v4064 = vadd.f32 %v3501, %v4063
        %v4065 = vpop.f32.mrb[0].mxu0
        %4066 = vmatprep.mubr.f32.mxu0 0.0
        %4067 = vmatmul.mubr.f32.gmra.mrb[0].mxu0 %v3573
        %v4068 = vpop.f32.mrb[0].mxu0
        %v4069 = vadd.f32 %v3501, %v4068
        %v4070 = vpop.f32.mrb[0].mxu0
        %4071 = vmatprep.mubr.f32.mxu0 0.0
        %4072 = vmatmul.mubr.f32.gmra.mrb[0].mxu0 %v3576
        %v4073 = vpop.f32.mrb[0].mxu0
        %v4074 = vadd.f32 %v3501, %v4073
        %v4075 = vpop.f32.mrb[0].mxu0
        %4076 = vmatprep.mubr.f32.mxu0 0.0
        %4077 = vmatmul.mubr.f32.gmra.mrb[0].mxu0 %v3579
        %v4078 = vpop.f32.mrb[0].mxu0
        %v4079 = vadd.f32 %v3501, %v4078
        %v4080 = vpop.f32.mrb[0].mxu0
        %4081 = vmatprep.mubr.f32.mxu0 0.0
        %4082 = vmatmul.mubr.f32.gmra.mrb[0].mxu0 %v3582
        %v4083 = vpop.f32.mrb[0].mxu0
        %v4084 = vadd.f32 %v3501, %v4083
        %v4085 = vpop.f32.mrb[0].mxu0
        %4086 = vmatprep.mubr.f32.mxu0 0.0
        %4087 = vmatmul.mubr.f32.gmra.mrb[0].mxu0 %v3585
        %v4088 = vpop.f32.mrb[0].mxu0
        %v4089 = vadd.f32 %v3501, %v4088
        %v4090 = vpop.f32.mrb[0].mxu0
        %4091 = vmatprep.mubr.f32.mxu0 0.0
        %4092 = vmatmul.mubr.f32.gmra.mrb[0].mxu0 %v3588
        %v4093 = vpop.f32.mrb[0].mxu0
        %v4094 = vadd.f32 %v3501, %v4093
        %v4095 = vpop.f32.mrb[0].mxu0
        %4096 = vmatprep.mubr.f32.mxu0 0.0
        %4097 = vmatmul.mubr.f32.gmra.mrb[0].mxu0 %v3591
        %v4098 = vpop.f32.mrb[0].mxu0
        %v4099 = vadd.f32 %v3501, %v4098
        %v4100 = vpop.f32.mrb[0].mxu0
        %4101 = vmatprep.mubr.f32.mxu0 0.0
        %4102 = vmatmul.mubr.f32.gmra.mrb[0].mxu0 %v3594
        %v4103 = vpop.f32.mrb[0].mxu0
        %v4104 = vadd.f32 %v3501, %v4103
        %v4105 = vpop.f32.mrb[0].mxu0
        %4106 = vmatprep.mubr.f32.mxu0 0.0
        %4107 = vmatmul.mubr.f32.gmra.mrb[0].mxu0 %v3597
        %v4108 = vpop.f32.mrb[0].mxu0
        %v4109 = vadd.f32 %v3501, %v4108
        %v4110 = vpop.f32.mrb[0].mxu0
        %4111 = vmatprep.mubr.f32.mxu0 0.0
        %4112 = vmatmul.mubr.f32.gmra.mrb[0].mxu0 %v3600
        %v4113 = vpop.f32.mrb[0].mxu0
        %v4114 = vadd.f32 %v3501, %v4113
        %v4115 = vpop.f32.mrb[0].mxu0
        %4116 = vmatprep.mubr.f32.mxu0 0.0
        %4117 = vmatmul.mubr.f32.gmra.mrb[0].mxu0 %v3603
        %v4118 = vpop.f32.mrb[0].mxu0
        %v4119 = vadd.f32 %v3501, %v4118
        %v4120 = vpop.f32.mrb[0].mxu0
        %4121 = vmatprep.mubr.f32.mxu0 0.0
        %4122 = vmatmul.mubr.f32.gmra.mrb[0].mxu0 %v3606
        %v4123 = vpop.f32.mrb[0].mxu0
        %v4124 = vadd.f32 %v3501, %v4123
        %v4125 = vpop.f32.mrb[0].mxu0
        %4126 = vmatprep.mubr.f32.mxu0 0.0
        %4127 = vmatmul.mubr.f32.gmra.mrb[0].mxu0 %v3609
        %v4128 = vpop.f32.mrb[0].mxu0
        %v4129 = vadd.f32 %v3501, %v4128
        %v4130 = vpop.f32.mrb[0].mxu0
        %4131 = vmatprep.mubr.f32.mxu0 0.0
        %4132 = vmatmul.mubr.f32.gmra.mrb[0].mxu0 %v3612
        %v4133 = vpop.f32.mrb[0].mxu0
        %v4134 = vadd.f32 %v3501, %v4133
        %v4135 = vpop.f32.mrb[0].mxu0
        %4136 = vmatprep.mubr.f32.mxu0 0.0
        %4137 = vmatmul.mubr.f32.gmra.mrb[0].mxu0 %v3615
        %v4138 = vpop.f32.mrb[0].mxu0
        %v4139 = vadd.f32 %v3501, %v4138
        %v4140 = vpop.f32.mrb[0].mxu0
        %4141 = vmatprep.mubr.f32.mxu0 0.0
        %4142 = vmatmul.mubr.f32.gmra.mrb[0].mxu0 %v3618
        %v4143 = vpop.f32.mrb[0].mxu0
        %v4144 = vadd.f32 %v3501, %v4143
        %v4145 = vpop.f32.mrb[0].mxu0
        %4146 = vmatprep.mubr.f32.mxu0 0.0
        %4147 = vmatmul.mubr.f32.gmra.mrb[0].mxu0 %v3621
        %v4148 = vpop.f32.mrb[0].mxu0
        %v4149 = vadd.f32 %v3501, %v4148
        %v4150 = vpop.f32.mrb[0].mxu0
        %4151 = vmatprep.mubr.f32.mxu0 0.0
        %4152 = vmatmul.mubr.f32.gmra.mrb[0].mxu0 %v3624
        %v4153 = vpop.f32.mrb[0].mxu0
        %v4154 = vadd.f32 %v3501, %v4153
        %v4155 = vpop.f32.mrb[0].mxu0
        %4156 = vmatprep.mubr.f32.mxu0 0.0
        %4157 = vmatmul.mubr.f32.gmra.mrb[0].mxu0 %v3627
        %v4158 = vpop.f32.mrb[0].mxu0
        %v4159 = vadd.f32 %v3501, %v4158
        %v4160 = vpop.f32.mrb[0].mxu0
        %4161 = vmatprep.mubr.f32.mxu0 0.0
        %4162 = vmatmul.mubr.f32.gmra.mrb[0].mxu0 %v3630
        %v4163 = vpop.f32.mrb[0].mxu0
        %v4164 = vadd.f32 %v3501, %v4163
        %v4165 = vpop.f32.mrb[0].mxu0
        %4166 = vmatprep.mubr.f32.mxu0 0.0
        %4167 = vmatmul.mubr.f32.gmra.mrb[0].mxu0 %v3633
        %v4168 = vpop.f32.mrb[0].mxu0
        %v4169 = vadd.f32 %v3501, %v4168
        %v4170 = vpop.f32.mrb[0].mxu0
        %4171 = vmatprep.mubr.f32.mxu0 0.0
        %4172 = vmatmul.mubr.f32.gmra.mrb[0].mxu0 %v3636
        %v4173 = vpop.f32.mrb[0].mxu0
        %v4174 = vadd.f32 %v3501, %v4173
        %v4175 = vpop.f32.mrb[0].mxu0
        %4176 = vmatprep.mubr.f32.mxu0 0.0
        %4177 = vmatmul.mubr.f32.gmra.mrb[0].mxu0 %v3639
        %v4178 = vpop.f32.mrb[0].mxu0
        %v4179 = vadd.f32 %v3501, %v4178
        %v4180 = vpop.f32.mrb[0].mxu0
        %4181 = vmatprep.mubr.f32.mxu0 0.0
        %4182 = vmatmul.mubr.f32.gmra.mrb[0].mxu0 %v3642
        %v4183 = vpop.f32.mrb[0].mxu0
        %v4184 = vadd.f32 %v3501, %v4183
        %v4185 = vpop.f32.mrb[0].mxu0
        %4186 = vmatprep.mubr.f32.mxu0 0.0
        %4187 = vmatmul.mubr.f32.gmra.mrb[0].mxu0 %v3645
        %v4188 = vpop.f32.mrb[0].mxu0
        %v4189 = vadd.f32 %v3501, %v4188
        %v4190 = vpop.f32.mrb[0].mxu0
        %4191 = vmatprep.mubr.f32.mxu0 0.0
        %4192 = vmatmul.mubr.f32.gmra.mrb[0].mxu0 %v3648
        %v4193 = vpop.f32.mrb[0].mxu0
        %v4194 = vadd.f32 %v3501, %v4193
        %v4195 = vpop.f32.mrb[0].mxu0
        %4196 = vmatprep.mubr.f32.mxu0 0.0
        %4197 = vmatmul.mubr.f32.gmra.mrb[0].mxu0 %v3651
        %v4198 = vpop.f32.mrb[0].mxu0
        %v4199 = vadd.f32 %v3501, %v4198
        %v4200 = vpop.f32.mrb[0].mxu0
        %4201 = vmatprep.mubr.f32.mxu0 0.0
        %4202 = vmatmul.mubr.f32.gmra.mrb[0].mxu0 %v3654
        %v4203 = vpop.f32.mrb[0].mxu0
        %v4204 = vadd.f32 %v3501, %v4203
        %v4205 = vpop.f32.mrb[0].mxu0
        %4206 = vmatprep.mubr.f32.mxu0 0.0
        %4207 = vmatmul.mubr.f32.gmra.mrb[0].mxu0 %v3657
        %v4208 = vpop.f32.mrb[0].mxu0
        %v4209 = vadd.f32 %v3501, %v4208
        %v4210 = vpop.f32.mrb[0].mxu0
        %4211 = vmatprep.mubr.f32.mxu0 0.0
        %4212 = vmatmul.mubr.f32.gmra.mrb[0].mxu0 %v3660
        %v4213 = vpop.f32.mrb[0].mxu0
        %v4214 = vadd.f32 %v3501, %v4213
        %v4215 = vpop.f32.mrb[0].mxu0
        %4216 = vmatprep.mubr.f32.mxu0 0.0
        %4217 = vmatmul.mubr.f32.gmra.mrb[0].mxu0 %v3663
        %v4218 = vpop.f32.mrb[0].mxu0
        %v4219 = vadd.f32 %v3501, %v4218
        %v4220 = vpop.f32.mrb[0].mxu0
        %4221 = vmatprep.mubr.f32.mxu0 0.0
        %4222 = vmatmul.mubr.f32.gmra.mrb[0].mxu0 %v3666
        %v4223 = vpop.f32.mrb[0].mxu0
        %v4224 = vadd.f32 %v3501, %v4223
        %v4225 = vpop.f32.mrb[0].mxu0
        %4226 = vmatprep.mubr.f32.mxu0 0.0
        %4227 = vmatmul.mubr.f32.gmra.mrb[0].mxu0 %v3669
        %v4228 = vpop.f32.mrb[0].mxu0
        %v4229 = vadd.f32 %v3501, %v4228
        %v4230 = vpop.f32.mrb[0].mxu0
        %4231 = vmatprep.mubr.f32.mxu0 0.0
        %4232 = vmatmul.mubr.f32.gmra.mrb[0].mxu0 %v3672
        %v4233 = vpop.f32.mrb[0].mxu0
        %v4234 = vadd.f32 %v3501, %v4233
        %v4235 = vpop.f32.mrb[0].mxu0
        %4236 = vmatprep.mubr.f32.mxu0 0.0
        %4237 = vmatmul.mubr.f32.gmra.mrb[0].mxu0 %v3675
        %v4238 = vpop.f32.mrb[0].mxu0
        %v4239 = vadd.f32 %v3501, %v4238
        %v4240 = vpop.f32.mrb[0].mxu0
        %4241 = vmatprep.mubr.f32.mxu0 0.0
        %4242 = vmatmul.mubr.f32.gmra.mrb[0].mxu0 %v3678
        %v4243 = vpop.f32.mrb[0].mxu0
        %v4244 = vadd.f32 %v3501, %v4243
        %v4245 = vpop.f32.mrb[0].mxu0
        %4246 = vmatprep.mubr.f32.mxu0 0.0
        %4247 = vmatmul.mubr.f32.gmra.mrb[0].mxu0 %v3681
        %v4248 = vpop.f32.mrb[0].mxu0
        %v4249 = vadd.f32 %v3501, %v4248
        %v4250 = vpop.f32.mrb[0].mxu0
        %4251 = vmatprep.mubr.f32.mxu0 0.0
        %4252 = vmatmul.mubr.f32.gmra.mrb[0].mxu0 %v3684
        %v4253 = vpop.f32.mrb[0].mxu0
        %v4254 = vadd.f32 %v3501, %v4253
        %v4255 = vpop.f32.mrb[0].mxu0
        %4256 = vmatprep.mubr.f32.mxu0 0.0
        %4257 = vmatmul.mubr.f32.gmra.mrb[0].mxu0 %v3687
        %v4258 = vpop.f32.mrb[0].mxu0
        %v4259 = vadd.f32 %v3501, %v4258
        %v4260 = vpop.f32.mrb[0].mxu0
        %4261 = vmatprep.mubr.f32.mxu0 0.0
        %4262 = vmatmul.mubr.f32.gmra.mrb[0].mxu0 %v3690
        %v4263 = vpop.f32.mrb[0].mxu0
        %v4264 = vadd.f32 %v3501, %v4263
        %v4265 = vpop.f32.mrb[0].mxu0
        %4266 = vmatprep.mubr.f32.mxu0 0.0
        %4267 = vmatmul.mubr.f32.gmra.mrb[0].mxu0 %v3693
        %v4268 = vpop.f32.mrb[0].mxu0
        %v4269 = vadd.f32 %v3501, %v4268
        %v4270 = vpop.f32.mrb[0].mxu0
        %4271 = vmatprep.mubr.f32.mxu0 0.0
        %4272 = vmatmul.mubr.f32.gmra.mrb[0].mxu0 %v3696
        %v4273 = vpop.f32.mrb[0].mxu0
        %v4274 = vadd.f32 %v3501, %v4273
        %v4275 = vpop.f32.mrb[0].mxu0
        %4276 = vmatprep.mubr.f32.mxu0 0.0
        %4277 = vmatmul.mubr.f32.gmra.mrb[0].mxu0 %v3699
        %v4278 = vpop.f32.mrb[0].mxu0
        %v4279 = vadd.f32 %v3501, %v4278
        %v4280 = vpop.f32.mrb[0].mxu0
        %4281 = vmatprep.mubr.f32.mxu0 0.0
        %4282 = vmatmul.mubr.f32.gmra.mrb[0].mxu0 %v3702
        %v4283 = vpop.f32.mrb[0].mxu0
        %v4284 = vadd.f32 %v3501, %v4283
        %v4285 = vpop.f32.mrb[0].mxu0
        %4286 = vmatprep.mubr.f32.mxu0 0.0
        %4287 = vmatmul.mubr.f32.gmra.mrb[0].mxu0 %v3705
        %v4288 = vpop.f32.mrb[0].mxu0
        %v4289 = vadd.f32 %v3501, %v4288
        %v4290 = vpop.f32.mrb[0].mxu0
        %4291 = vmatprep.mubr.f32.mxu0 0.0
        %4292 = vmatmul.mubr.f32.gmra.mrb[0].mxu0 %v3708
        %v4293 = vpop.f32.mrb[0].mxu0
        %v4294 = vadd.f32 %v3501, %v4293
        %v4295 = vpop.f32.mrb[0].mxu0
        %4296 = vmatprep.mubr.f32.mxu0 0.0
        %4297 = vmatmul.mubr.f32.gmra.mrb[0].mxu0 %v3711
        %v4298 = vpop.f32.mrb[0].mxu0
        %v4299 = vadd.f32 %v3501, %v4298
        %v4300 = vpop.f32.mrb[0].mxu0
        %4301 = vmatprep.mubr.f32.mxu0 0.0
        %4302 = vmatmul.mubr.f32.gmra.mrb[0].mxu0 %v3714
        %v4303 = vpop.f32.mrb[0].mxu0
        %v4304 = vadd.f32 %v3501, %v4303
        %v4305 = vpop.f32.mrb[0].mxu0
        %4306 = vmatprep.mubr.f32.mxu0 0.0
        %4307 = vmatmul.mubr.f32.gmra.mrb[0].mxu0 %v3717
        %v4308 = vpop.f32.mrb[0].mxu0
        %v4309 = vadd.f32 %v3501, %v4308
        %v4310 = vpop.f32.mrb[0].mxu0
        %4311 = vmatprep.mubr.f32.mxu0 0.0
        %4312 = vmatmul.mubr.f32.gmra.mrb[0].mxu0 %v3720
        %v4313 = vpop.f32.mrb[0].mxu0
        %v4314 = vadd.f32 %v3501, %v4313
        %v4315 = vpop.f32.mrb[0].mxu0
        %4316 = vmatprep.mubr.f32.mxu0 0.0
        %4317 = vmatmul.mubr.f32.gmra.mrb[0].mxu0 %v3723
        %v4318 = vpop.f32.mrb[0].mxu0
        %v4319 = vadd.f32 %v3501, %v4318
        %v4320 = vpop.f32.mrb[0].mxu0
        %4321 = vmatprep.mubr.f32.mxu0 0.0
        %4322 = vmatmul.mubr.f32.gmra.mrb[0].mxu0 %v3726
        %v4323 = vpop.f32.mrb[0].mxu0
        %v4324 = vadd.f32 %v3501, %v4323
        %v4325 = vpop.f32.mrb[0].mxu0
        %4326 = vmatprep.mubr.f32.mxu0 0.0
        %4327 = vmatmul.mubr.f32.gmra.mrb[0].mxu0 %v3729
        %v4328 = vpop.f32.mrb[0].mxu0
        %v4329 = vadd.f32 %v3501, %v4328
        %v4330 = vpop.f32.mrb[0].mxu0
        %4331 = vmatprep.mubr.f32.mxu0 0.0
        %4332 = vmatmul.mubr.f32.gmra.mrb[0].mxu0 %v3732
        %v4333 = vpop.f32.mrb[0].mxu0
        %v4334 = vadd.f32 %v3501, %v4333
        %v4335 = vpop.f32.mrb[0].mxu0
        %4336 = vmatprep.mubr.f32.mxu0 0.0
        %4337 = vmatmul.mubr.f32.gmra.mrb[0].mxu0 %v3735
        %v4338 = vpop.f32.mrb[0].mxu0
        %v4339 = vadd.f32 %v3501, %v4338
        %v4340 = vpop.f32.mrb[0].mxu0
        %4341 = vmatprep.mubr.f32.mxu0 0.0
        %4342 = vmatmul.mubr.f32.gmra.mrb[0].mxu0 %v3738
        %v4343 = vpop.f32.mrb[0].mxu0
        %v4344 = vadd.f32 %v3501, %v4343
        %v4345 = vpop.f32.mrb[0].mxu0
        %4346 = vmatprep.mubr.f32.mxu0 0.0
        %4347 = vmatmul.mubr.f32.gmra.mrb[0].mxu0 %v3741
        %v4348 = vpop.f32.mrb[0].mxu0
        %v4349 = vadd.f32 %v3501, %v4348
        %v4350 = vpop.f32.mrb[0].mxu0
        %4351 = vmatprep.mubr.f32.mxu0 0.0
        %4352 = vmatmul.mubr.f32.gmra.mrb[0].mxu0 %v3744
        %v4353 = vpop.f32.mrb[0].mxu0
        %v4354 = vadd.f32 %v3501, %v4353
        %v4355 = vpop.f32.mrb[0].mxu0
        %4356 = vmatprep.mubr.f32.mxu0 0.0
        %4357 = vmatmul.mubr.f32.gmra.mrb[0].mxu0 %v3747
        %v4358 = vpop.f32.mrb[0].mxu0
        %v4359 = vadd.f32 %v3501, %v4358
        %v4360 = vpop.f32.mrb[0].mxu0
        %4361 = vmatprep.mubr.f32.mxu0 0.0
        %4362 = vmatmul.mubr.f32.gmra.mrb[0].mxu0 %v3750
        %v4363 = vpop.f32.mrb[0].mxu0
        %v4364 = vadd.f32 %v3501, %v4363
        %v4365 = vpop.f32.mrb[0].mxu0
        %4366 = vmatprep.mubr.f32.mxu0 0.0
        %4367 = vmatmul.mubr.f32.gmra.mrb[0].mxu0 %v3753
        %v4368 = vpop.f32.mrb[0].mxu0
        %v4369 = vadd.f32 %v3501, %v4368
        %v4370 = vpop.f32.mrb[0].mxu0
        %4371 = vmatprep.mubr.f32.mxu0 0.0
        %4372 = vmatmul.mubr.f32.gmra.mrb[0].mxu0 %v3756
        %v4373 = vpop.f32.mrb[0].mxu0
        %v4374 = vadd.f32 %v3501, %v4373
        %v4375 = vpop.f32.mrb[0].mxu0
        %4376 = vmatprep.mubr.f32.mxu0 0.0
        %4377 = vmatmul.mubr.f32.gmra.mrb[0].mxu0 %v3759
        %v4378 = vpop.f32.mrb[0].mxu0
        %v4379 = vadd.f32 %v3501, %v4378
        %v4380 = vpop.f32.mrb[0].mxu0
        %4381 = vmatprep.mubr.f32.mxu0 0.0
        %4382 = vmatmul.mubr.f32.gmra.mrb[0].mxu0 %v3762
        %v4383 = vpop.f32.mrb[0].mxu0
        %v4384 = vadd.f32 %v3501, %v4383
        %v4385 = vpop.f32.mrb[0].mxu0
        %4386 = vmatprep.mubr.f32.mxu0 0.0
        %4387 = vmatmul.mubr.f32.gmra.mrb[0].mxu0 %v3765
        %v4388 = vpop.f32.mrb[0].mxu0
        %v4389 = vadd.f32 %v3501, %v4388
        %v4390 = vpop.f32.mrb[0].mxu0
        %4391 = vmatprep.mubr.f32.mxu0 0.0
        %4392 = vmatmul.mubr.f32.gmra.mrb[0].mxu0 %v3768
        %v4393 = vpop.f32.mrb[0].mxu0
        %v4394 = vadd.f32 %v3501, %v4393
        %v4395 = vpop.f32.mrb[0].mxu0
        %4396 = vmatprep.mubr.f32.mxu0 0.0
        %4397 = vmatmul.mubr.f32.gmra.mrb[0].mxu0 %v3771
        %v4398 = vpop.f32.mrb[0].mxu0
        %v4399 = vadd.f32 %v3501, %v4398
        %v4400 = vpop.f32.mrb[0].mxu0
        %4401 = vmatprep.mubr.f32.mxu0 0.0
        %4402 = vmatmul.mubr.f32.gmra.mrb[0].mxu0 %v3774
        %v4403 = vpop.f32.mrb[0].mxu0
        %v4404 = vadd.f32 %v3501, %v4403
        %v4405 = vpop.f32.mrb[0].mxu0
        %4406 = vmatprep.mubr.f32.mxu0 0.0
        %4407 = vmatmul.mubr.f32.gmra.mrb[0].mxu0 %v3777
        %v4408 = vpop.f32.mrb[0].mxu0
        %v4409 = vadd.f32 %v3501, %v4408
        %v4410 = vpop.f32.mrb[0].mxu0
        %4411 = vmatprep.mubr.f32.mxu0 0.0
        %4412 = vmatmul.mubr.f32.gmra.mrb[0].mxu0 %v3780
        %v4413 = vpop.f32.mrb[0].mxu0
        %v4414 = vadd.f32 %v3501, %v4413
        %v4415 = vpop.f32.mrb[0].mxu0
        %4416 = vmatprep.mubr.f32.mxu0 0.0
        %4417 = vmatmul.mubr.f32.gmra.mrb[0].mxu0 %v3783
        %v4418 = vpop.f32.mrb[0].mxu0
        %v4419 = vadd.f32 %v3501, %v4418
        %v4420 = vpop.f32.mrb[0].mxu0
        %4421 = vmatprep.mubr.f32.mxu0 0.0
        %4422 = vmatmul.mubr.f32.gmra.mrb[0].mxu0 %v3786
        %v4423 = vpop.f32.mrb[0].mxu0
        %v4424 = vadd.f32 %v3501, %v4423
        %v4425 = vpop.f32.mrb[0].mxu0
        %4426 = vmatprep.mubr.f32.mxu0 0.0
        %4427 = vmatmul.mubr.f32.gmra.mrb[0].mxu0 %v3789
        %v4428 = vpop.f32.mrb[0].mxu0
        %v4429 = vadd.f32 %v3501, %v4428
        %v4430 = vpop.f32.mrb[0].mxu0
        %4431 = vmatprep.mubr.f32.mxu0 0.0
        %4432 = vmatmul.mubr.f32.gmra.mrb[0].mxu0 %v3792
        %v4433 = vpop.f32.mrb[0].mxu0
        %v4434 = vadd.f32 %v3501, %v4433
        %v4435 = vpop.f32.mrb[0].mxu0
        %4436 = vmatprep.mubr.f32.mxu0 0.0
        %4437 = vmatmul.mubr.f32.gmra.mrb[0].mxu0 %v3795
        %v4438 = vpop.f32.mrb[0].mxu0
        %v4439 = vadd.f32 %v3501, %v4438
        %v4440 = vpop.f32.mrb[0].mxu0
        %4441 = vmatprep.mubr.f32.mxu0 0.0
        %4442 = vmatmul.mubr.f32.gmra.mrb[0].mxu0 %v3798
        %v4443 = vpop.f32.mrb[0].mxu0
        %v4444 = vadd.f32 %v3501, %v4443
        %v4445 = vpop.f32.mrb[0].mxu0
        %4446 = vmatprep.mubr.f32.mxu0 0.0
        %4447 = vmatmul.mubr.f32.gmra.mrb[0].mxu0 %v3801
        %v4448 = vpop.f32.mrb[0].mxu0
        %v4449 = vadd.f32 %v3501, %v4448
        %v4450 = vpop.f32.mrb[0].mxu0
        %4451 = vmatprep.mubr.f32.mxu0 0.0
        %4452 = vmatmul.mubr.f32.gmra.mrb[0].mxu0 %v3804
        %v4453 = vpop.f32.mrb[0].mxu0
        %v4454 = vadd.f32 %v3501, %v4453
        %v4455 = vpop.f32.mrb[0].mxu0
        %4456 = vmatprep.mubr.f32.mxu0 0.0
        %4457 = vmatmul.mubr.f32.gmra.mrb[0].mxu0 %v3807
        %v4458 = vpop.f32.mrb[0].mxu0
        %v4459 = vadd.f32 %v3501, %v4458
        %v4460 = vpop.f32.mrb[0].mxu0
        %4461 = vmatprep.mubr.f32.mxu0 0.0
        %4462 = vmatmul.mubr.f32.gmra.mrb[0].mxu0 %v3810
        %v4463 = vpop.f32.mrb[0].mxu0
        %v4464 = vadd.f32 %v3501, %v4463
        %v4465 = vpop.f32.mrb[0].mxu0
        %4466 = vmatprep.mubr.f32.mxu0 0.0
        %4467 = vmatmul.mubr.f32.gmra.mrb[0].mxu0 %v3813
        %v4468 = vpop.f32.mrb[0].mxu0
        %v4469 = vadd.f32 %v3501, %v4468
        %v4470 = vpop.f32.mrb[0].mxu0
        %4471 = vmatprep.mubr.f32.mxu0 0.0
        %4472 = vmatmul.mubr.f32.gmra.mrb[0].mxu0 %v3816
        %v4473 = vpop.f32.mrb[0].mxu0
        %v4474 = vadd.f32 %v3501, %v4473
        %v4475 = vpop.f32.mrb[0].mxu0
        %4476 = vmatprep.mubr.f32.mxu0 0.0
        %4477 = vmatmul.mubr.f32.gmra.mrb[0].mxu0 %v3819
        %v4478 = vpop.f32.mrb[0].mxu0
        %v4479 = vadd.f32 %v3501, %v4478
        %v4480 = vpop.f32.mrb[0].mxu0
        %4481 = vmatprep.mubr.f32.mxu0 0.0
        %4482 = vmatmul.mubr.f32.gmra.mrb[0].mxu0 %v3822
        %v4483 = vpop.f32.mrb[0].mxu0
        %v4484 = vadd.f32 %v3501, %v4483
        %v4485 = vpop.f32.mrb[0].mxu0
        %4486 = vmatprep.mubr.f32.mxu0 0.0
        %4487 = vmatmul.mubr.f32.gmra.mrb[0].mxu0 %v3825
        %v4488 = vpop.f32.mrb[0].mxu0
        %v4489 = vadd.f32 %v3501, %v4488
        %v4490 = vpop.f32.mrb[0].mxu0
        %4491 = vmatprep.mubr.f32.mxu0 0.0
        %4492 = vmatmul.mubr.f32.gmra.mrb[0].mxu0 %v3828
        %v4493 = vpop.f32.mrb[0].mxu0
        %v4494 = vadd.f32 %v3501, %v4493
        %v4495 = vpop.f32.mrb[0].mxu0
        %4496 = vmatprep.mubr.f32.mxu0 0.0
        %4497 = vmatmul.mubr.f32.gmra.mrb[0].mxu0 %v3831
        %v4498 = vpop.f32.mrb[0].mxu0
        %v4499 = vadd.f32 %v3501, %v4498
        %v4500 = vpop.f32.mrb[0].mxu0
        %4501 = vmatprep.mubr.f32.mxu0 0.0
        %4502 = vmatmul.mubr.f32.gmra.mrb[0].mxu0 %v3834
        %v4503 = vpop.f32.mrb[0].mxu0
        %v4504 = vadd.f32 %v3501, %v4503
        %v4505 = vpop.f32.mrb[0].mxu0
        %4506 = vmatprep.mubr.f32.mxu0 0.0
        %4507 = vmatmul.mubr.f32.gmra.mrb[0].mxu0 %v3837
        %v4508 = vpop.f32.mrb[0].mxu0
        %v4509 = vadd.f32 %v3501, %v4508
        %v4510 = vpop.f32.mrb[0].mxu0
        %4511 = vmatprep.mubr.f32.mxu0 0.0
        %4512 = vmatmul.mubr.f32.gmra.mrb[0].mxu0 %v3840
        %v4513 = vpop.f32.mrb[0].mxu0
        %v4514 = vadd.f32 %v3501, %v4513
        %v4515 = vpop.f32.mrb[0].mxu0
        %4516 = vmatprep.mubr.f32.mxu0 0.0
        %4517 = vmatmul.mubr.f32.gmra.mrb[0].mxu0 %v3843
        %v4518 = vpop.f32.mrb[0].mxu0
        %v4519 = vadd.f32 %v3501, %v4518
        %v4520 = vpop.f32.mrb[0].mxu0
        %4521 = vmatprep.mubr.f32.mxu0 0.0
        %4522 = vmatmul.mubr.f32.gmra.mrb[0].mxu0 %v3846
        %v4523 = vpop.f32.mrb[0].mxu0
        %v4524 = vadd.f32 %v3501, %v4523
        %v4525 = vpop.f32.mrb[0].mxu0
        %4526 = vmatprep.mubr.f32.mxu0 0.0
        %4527 = vmatmul.mubr.f32.gmra.mrb[0].mxu0 %v3849
        %v4528 = vpop.f32.mrb[0].mxu0
        %v4529 = vadd.f32 %v3501, %v4528
        %v4530 = vpop.f32.mrb[0].mxu0
        %4531 = vmatprep.mubr.f32.mxu0 0.0
        %4532 = vmatmul.mubr.f32.gmra.mrb[0].mxu0 %v3852
        %v4533 = vpop.f32.mrb[0].mxu0
        %v4534 = vadd.f32 %v3501, %v4533
        %v4535 = vpop.f32.mrb[0].mxu0
        %4536 = vmatprep.mubr.f32.mxu0 0.0
        %4537 = vmatmul.mubr.f32.gmra.mrb[0].mxu0 %v3855
        %v4538 = vpop.f32.mrb[0].mxu0
        %v4539 = vadd.f32 %v3501, %v4538
        %v4540 = vpop.f32.mrb[0].mxu0
        %4541 = vmatprep.mubr.f32.mxu0 0.0
        %4542 = vmatmul.mubr.f32.gmra.mrb[0].mxu0 %v3858
        %v4543 = vpop.f32.mrb[0].mxu0
        %v4544 = vadd.f32 %v3501, %v4543
        %v4545 = vpop.f32.mrb[0].mxu0
        %4546 = vmatprep.mubr.f32.mxu0 0.0
        %4547 = vmatmul.mubr.f32.gmra.mrb[0].mxu0 %v3861
        %v4548 = vpop.f32.mrb[0].mxu0
        %v4549 = vadd.f32 %v3501, %v4548
        %v4550 = vpop.f32.mrb[0].mxu0
        %4551 = vmatprep.mubr.f32.mxu0 0.0
        %4552 = vmatmul.mubr.f32.gmra.mrb[0].mxu0 %v3864
        %v4553 = vpop.f32.mrb[0].mxu0
        %v4554 = vadd.f32 %v3501, %v4553
        %v4555 = vpop.f32.mrb[0].mxu0
        %4556 = vmatprep.mubr.f32.mxu0 0.0
        %4557 = vmatmul.mubr.f32.gmra.mrb[0].mxu0 %v3867
        %v4558 = vpop.f32.mrb[0].mxu0
        %v4559 = vadd.f32 %v3501, %v4558
        %v4560 = vpop.f32.mrb[0].mxu0
        %4561 = vmatprep.mubr.f32.mxu0 0.0
        %4562 = vmatmul.mubr.f32.gmra.mrb[0].mxu0 %v3870
        %v4563 = vpop.f32.mrb[0].mxu0
        %v4564 = vadd.f32 %v3501, %v4563
        %v4565 = vpop.f32.mrb[0].mxu0
        %4566 = vmatprep.mubr.f32.mxu0 0.0
        %4567 = vmatmul.mubr.f32.gmra.mrb[0].mxu0 %v3873
        %v4568 = vpop.f32.mrb[0].mxu0
        %v4569 = vadd.f32 %v3501, %v4568
        %v4570 = vpop.f32.mrb[0].mxu0
        %4571 = vmatprep.mubr.f32.mxu0 0.0
        %4572 = vmatmul.mubr.f32.gmra.mrb[0].mxu0 %v3876
        %v4573 = vpop.f32.mrb[0].mxu0
        %v4574 = vadd.f32 %v3501, %v4573
        %v4575 = vpop.f32.mrb[0].mxu0
        %4576 = vmatprep.mubr.f32.mxu0 0.0
        %4577 = vmatmul.mubr.f32.gmra.mrb[0].mxu0 %v3879
        %v4578 = vpop.f32.mrb[0].mxu0
        %v4579 = vadd.f32 %v3501, %v4578
        %v4580 = vpop.f32.mrb[0].mxu0
        %4581 = vmatprep.mubr.f32.mxu0 0.0
        %4582 = vmatmul.mubr.f32.gmra.mrb[0].mxu0 %v3882
        %v4583 = vpop.f32.mrb[0].mxu0
        %v4584 = vadd.f32 %v3501, %v4583
        %v4585 = vpop.f32.mrb[0].mxu0
        %4586 = vmatprep.mubr.f32.mxu0 0.0
        %4587 = vmatmul.mubr.f32.gmra.mrb[0].mxu0 %v3885
        %v4588 = vpop.f32.mrb[0].mxu0
        %v4589 = vadd.f32 %v3501, %v4588
        %v4590 = vpop.f32.mrb[0].mxu0
        %4591 = vdwg.mxu0
        %v4592 = vmax.f32 %v3954, 0.0
        %v4593 = vmax.f32 %v3959, 0.0
        %v4594 = vmax.f32 %v3964, 0.0
        %v4595 = vmax.f32 %v3969, 0.0
        %v4596 = vmax.f32 %v3974, 0.0
        %v4597 = vmax.f32 %v3979, 0.0
        %v4598 = vmax.f32 %v3984, 0.0
        %v4599 = vmax.f32 %v3989, 0.0
        %v4600 = vmax.f32 %v3994, 0.0
        %v4601 = vmax.f32 %v3999, 0.0
        %v4602 = vmax.f32 %v4004, 0.0
        %v4603 = vmax.f32 %v4009, 0.0
        %v4604 = vmax.f32 %v4014, 0.0
        %v4605 = vmax.f32 %v4019, 0.0
        %v4606 = vmax.f32 %v4024, 0.0
        %v4607 = vmax.f32 %v4029, 0.0
        %v4608 = vmax.f32 %v4034, 0.0
        %v4609 = vmax.f32 %v4039, 0.0
        %v4610 = vmax.f32 %v4044, 0.0
        %v4611 = vmax.f32 %v4049, 0.0
        %v4612 = vmax.f32 %v4054, 0.0
        %v4613 = vmax.f32 %v4059, 0.0
        %v4614 = vmax.f32 %v4064, 0.0
        %v4615 = vmax.f32 %v4069, 0.0
        %v4616 = vmax.f32 %v4074, 0.0
        %v4617 = vmax.f32 %v4079, 0.0
        %v4618 = vmax.f32 %v4084, 0.0
        %v4619 = vmax.f32 %v4089, 0.0
        %v4620 = vmax.f32 %v4094, 0.0
        %v4621 = vmax.f32 %v4099, 0.0
        %v4622 = vmax.f32 %v4104, 0.0
        %v4623 = vmax.f32 %v4109, 0.0
        %v4624 = vmax.f32 %v4114, 0.0
        %v4625 = vmax.f32 %v4119, 0.0
        %v4626 = vmax.f32 %v4124, 0.0
        %v4627 = vmax.f32 %v4129, 0.0
        %v4628 = vmax.f32 %v4134, 0.0
        %v4629 = vmax.f32 %v4139, 0.0
        %v4630 = vmax.f32 %v4144, 0.0
        %v4631 = vmax.f32 %v4149, 0.0
        %v4632 = vmax.f32 %v4154, 0.0
        %v4633 = vmax.f32 %v4159, 0.0
        %v4634 = vmax.f32 %v4164, 0.0
        %v4635 = vmax.f32 %v4169, 0.0
        %v4636 = vmax.f32 %v4174, 0.0
        %v4637 = vmax.f32 %v4179, 0.0
        %v4638 = vmax.f32 %v4184, 0.0
        %v4639 = vmax.f32 %v4189, 0.0
        %v4640 = vmax.f32 %v4194, 0.0
        %v4641 = vmax.f32 %v4199, 0.0
        %v4642 = vmax.f32 %v4204, 0.0
        %v4643 = vmax.f32 %v4209, 0.0
        %v4644 = vmax.f32 %v4214, 0.0
        %v4645 = vmax.f32 %v4219, 0.0
        %v4646 = vmax.f32 %v4224, 0.0
        %v4647 = vmax.f32 %v4229, 0.0
        %v4648 = vmax.f32 %v4234, 0.0
        %v4649 = vmax.f32 %v4239, 0.0
        %v4650 = vmax.f32 %v4244, 0.0
        %v4651 = vmax.f32 %v4249, 0.0
        %v4652 = vmax.f32 %v4254, 0.0
        %v4653 = vmax.f32 %v4259, 0.0
        %v4654 = vmax.f32 %v4264, 0.0
        %v4655 = vmax.f32 %v4269, 0.0
        %v4656 = vmax.f32 %v4274, 0.0
        %v4657 = vmax.f32 %v4279, 0.0
        %v4658 = vmax.f32 %v4284, 0.0
        %v4659 = vmax.f32 %v4289, 0.0
        %v4660 = vmax.f32 %v4294, 0.0
        %v4661 = vmax.f32 %v4299, 0.0
        %v4662 = vmax.f32 %v4304, 0.0
        %v4663 = vmax.f32 %v4309, 0.0
        %v4664 = vmax.f32 %v4314, 0.0
        %v4665 = vmax.f32 %v4319, 0.0
        %v4666 = vmax.f32 %v4324, 0.0
        %v4667 = vmax.f32 %v4329, 0.0
        %v4668 = vmax.f32 %v4334, 0.0
        %v4669 = vmax.f32 %v4339, 0.0
        %v4670 = vmax.f32 %v4344, 0.0
        %v4671 = vmax.f32 %v4349, 0.0
        %v4672 = vmax.f32 %v4354, 0.0
        %v4673 = vmax.f32 %v4359, 0.0
        %v4674 = vmax.f32 %v4364, 0.0
        %v4675 = vmax.f32 %v4369, 0.0
        %v4676 = vmax.f32 %v4374, 0.0
        %v4677 = vmax.f32 %v4379, 0.0
        %v4678 = vmax.f32 %v4384, 0.0
        %v4679 = vmax.f32 %v4389, 0.0
        %v4680 = vmax.f32 %v4394, 0.0
        %v4681 = vmax.f32 %v4399, 0.0
        %v4682 = vmax.f32 %v4404, 0.0
        %v4683 = vmax.f32 %v4409, 0.0
        %v4684 = vmax.f32 %v4414, 0.0
        %v4685 = vmax.f32 %v4419, 0.0
        %v4686 = vmax.f32 %v4424, 0.0
        %v4687 = vmax.f32 %v4429, 0.0
        %v4688 = vmax.f32 %v4434, 0.0
        %v4689 = vmax.f32 %v4439, 0.0
        %v4690 = vmax.f32 %v4444, 0.0
        %v4691 = vmax.f32 %v4449, 0.0
        %v4692 = vmax.f32 %v4454, 0.0
        %v4693 = vmax.f32 %v4459, 0.0
        %v4694 = vmax.f32 %v4464, 0.0
        %v4695 = vmax.f32 %v4469, 0.0
        %v4696 = vmax.f32 %v4474, 0.0
        %v4697 = vmax.f32 %v4479, 0.0
        %v4698 = vmax.f32 %v4484, 0.0
        %v4699 = vmax.f32 %v4489, 0.0
        %v4700 = vmax.f32 %v4494, 0.0
        %v4701 = vmax.f32 %v4499, 0.0
        %v4702 = vmax.f32 %v4504, 0.0
        %v4703 = vmax.f32 %v4509, 0.0
        %v4704 = vmax.f32 %v4514, 0.0
        %v4705 = vmax.f32 %v4519, 0.0
        %v4706 = vmax.f32 %v4524, 0.0
        %v4707 = vmax.f32 %v4529, 0.0
        %v4708 = vmax.f32 %v4534, 0.0
        %v4709 = vmax.f32 %v4539, 0.0
        %v4710 = vmax.f32 %v4544, 0.0
        %v4711 = vmax.f32 %v4549, 0.0
        %v4712 = vmax.f32 %v4554, 0.0
        %v4713 = vmax.f32 %v4559, 0.0
        %v4714 = vmax.f32 %v4564, 0.0
        %v4715 = vmax.f32 %v4569, 0.0
        %v4716 = vmax.f32 %v4574, 0.0
        %v4717 = vmax.f32 %v4579, 0.0
        %v4718 = vmax.f32 %v4584, 0.0
        %v4719 = vmax.f32 %v4589, 0.0
        %v4720 = vmul.f32 %v4592, %v4656
        %v4721 = vmul.f32 %v4593, %v4657
        %v4722 = vmul.f32 %v4594, %v4658
        %v4723 = vmul.f32 %v4595, %v4659
        %v4724 = vmul.f32 %v4596, %v4660
        %v4725 = vmul.f32 %v4597, %v4661
        %v4726 = vmul.f32 %v4598, %v4662
        %v4727 = vmul.f32 %v4599, %v4663
        %v4728 = vmul.f32 %v4600, %v4664
        %v4729 = vmul.f32 %v4601, %v4665
        %v4730 = vmul.f32 %v4602, %v4666
        %v4731 = vmul.f32 %v4603, %v4667
        %v4732 = vmul.f32 %v4604, %v4668
        %v4733 = vmul.f32 %v4605, %v4669
        %v4734 = vmul.f32 %v4606, %v4670
        %v4735 = vmul.f32 %v4607, %v4671
        %v4736 = vmul.f32 %v4608, %v4672
        %v4737 = vmul.f32 %v4609, %v4673
        %v4738 = vmul.f32 %v4610, %v4674
        %v4739 = vmul.f32 %v4611, %v4675
        %v4740 = vmul.f32 %v4612, %v4676
        %v4741 = vmul.f32 %v4613, %v4677
        %v4742 = vmul.f32 %v4614, %v4678
        %v4743 = vmul.f32 %v4615, %v4679
        %v4744 = vmul.f32 %v4616, %v4680
        %v4745 = vmul.f32 %v4617, %v4681
        %v4746 = vmul.f32 %v4618, %v4682
        %v4747 = vmul.f32 %v4619, %v4683
        %v4748 = vmul.f32 %v4620, %v4684
        %v4749 = vmul.f32 %v4621, %v4685
        %v4750 = vmul.f32 %v4622, %v4686
        %v4751 = vmul.f32 %v4623, %v4687
        %v4752 = vmul.f32 %v4624, %v4688
        %v4753 = vmul.f32 %v4625, %v4689
        %v4754 = vmul.f32 %v4626, %v4690
        %v4755 = vmul.f32 %v4627, %v4691
        %v4756 = vmul.f32 %v4628, %v4692
        %v4757 = vmul.f32 %v4629, %v4693
        %v4758 = vmul.f32 %v4630, %v4694
        %v4759 = vmul.f32 %v4631, %v4695
        %v4760 = vmul.f32 %v4632, %v4696
        %v4761 = vmul.f32 %v4633, %v4697
        %v4762 = vmul.f32 %v4634, %v4698
        %v4763 = vmul.f32 %v4635, %v4699
        %v4764 = vmul.f32 %v4636, %v4700
        %v4765 = vmul.f32 %v4637, %v4701
        %v4766 = vmul.f32 %v4638, %v4702
        %v4767 = vmul.f32 %v4639, %v4703
        %v4768 = vmul.f32 %v4640, %v4704
        %v4769 = vmul.f32 %v4641, %v4705
        %v4770 = vmul.f32 %v4642, %v4706
        %v4771 = vmul.f32 %v4643, %v4707
        %v4772 = vmul.f32 %v4644, %v4708
        %v4773 = vmul.f32 %v4645, %v4709
        %v4774 = vmul.f32 %v4646, %v4710
        %v4775 = vmul.f32 %v4647, %v4711
        %v4776 = vmul.f32 %v4648, %v4712
        %v4777 = vmul.f32 %v4649, %v4713
        %v4778 = vmul.f32 %v4650, %v4714
        %v4779 = vmul.f32 %v4651, %v4715
        %v4780 = vmul.f32 %v4652, %v4716
        %v4781 = vmul.f32 %v4653, %v4717
        %v4782 = vmul.f32 %v4654, %v4718
        %v4783 = vmul.f32 %v4655, %v4719
        %v4784 = vld [vmem:[%s8] sm:$0xff]
        %v4785 = vld [vmem:[%s8 + $0x8] sm:$0xff]
        %v4786 = vld [vmem:[%s8 + $0x10] sm:$0xff]
        %v4787 = vld [vmem:[%s8 + $0x18] sm:$0xff]
        %v4788 = vld [vmem:[%s9] sm:$0x1]
        %v4790 = vlaneseq
        %v4791 = vshrl.u32 %v4790, 7
        %v4792 = vsub.s32 0, %v4791
        %v4793 = vrot.slane %v4788, %v4792
        %v4796 = vsel %vm2272, %v4720, 0
        %v4799 = vsel %vm2272, %v4721, 0
        %v4802 = vsel %vm2272, %v4722, 0
        %v4805 = vsel %vm2272, %v4723, 0
        %v4808 = vsel %vm2272, %v4724, 0
        %v4811 = vsel %vm2272, %v4725, 0
        %v4814 = vsel %vm2272, %v4726, 0
        %v4817 = vsel %vm2272, %v4727, 0
        %v4820 = vsel %vm2272, %v4728, 0
        %v4823 = vsel %vm2272, %v4729, 0
        %v4826 = vsel %vm2272, %v4730, 0
        %v4829 = vsel %vm2272, %v4731, 0
        %v4832 = vsel %vm2272, %v4732, 0
        %v4835 = vsel %vm2272, %v4733, 0
        %v4838 = vsel %vm2272, %v4734, 0
        %v4841 = vsel %vm2272, %v4735, 0
        %v4844 = vsel %vm2272, %v4736, 0
        %v4847 = vsel %vm2272, %v4737, 0
        %v4850 = vsel %vm2272, %v4738, 0
        %v4853 = vsel %vm2272, %v4739, 0
        %v4856 = vsel %vm2272, %v4740, 0
        %v4859 = vsel %vm2272, %v4741, 0
        %v4862 = vsel %vm2272, %v4742, 0
        %v4865 = vsel %vm2272, %v4743, 0
        %v4868 = vsel %vm2272, %v4744, 0
        %v4871 = vsel %vm2272, %v4745, 0
        %v4874 = vsel %vm2272, %v4746, 0
        %v4877 = vsel %vm2272, %v4747, 0
        %v4880 = vsel %vm2272, %v4748, 0
        %v4883 = vsel %vm2272, %v4749, 0
        %v4886 = vsel %vm2272, %v4750, 0
        %v4889 = vsel %vm2272, %v4751, 0
        %v4892 = vsel %vm2272, %v4752, 0
        %v4895 = vsel %vm2272, %v4753, 0
        %v4898 = vsel %vm2272, %v4754, 0
        %v4901 = vsel %vm2272, %v4755, 0
        %v4904 = vsel %vm2272, %v4756, 0
        %v4907 = vsel %vm2272, %v4757, 0
        %v4910 = vsel %vm2272, %v4758, 0
        %v4913 = vsel %vm2272, %v4759, 0
        %v4916 = vsel %vm2272, %v4760, 0
        %v4919 = vsel %vm2272, %v4761, 0
        %v4922 = vsel %vm2272, %v4762, 0
        %v4925 = vsel %vm2272, %v4763, 0
        %v4928 = vsel %vm2272, %v4764, 0
        %v4931 = vsel %vm2272, %v4765, 0
        %v4934 = vsel %vm2272, %v4766, 0
        %v4937 = vsel %vm2272, %v4767, 0
        %v4940 = vsel %vm2272, %v4768, 0
        %v4943 = vsel %vm2272, %v4769, 0
        %v4946 = vsel %vm2272, %v4770, 0
        %v4949 = vsel %vm2272, %v4771, 0
        %v4952 = vsel %vm2272, %v4772, 0
        %v4955 = vsel %vm2272, %v4773, 0
        %v4958 = vsel %vm2272, %v4774, 0
        %v4961 = vsel %vm2272, %v4775, 0
        %v4964 = vsel %vm2272, %v4776, 0
        %v4967 = vsel %vm2272, %v4777, 0
        %v4970 = vsel %vm2272, %v4778, 0
        %v4973 = vsel %vm2272, %v4779, 0
        %v4976 = vsel %vm2272, %v4780, 0
        %v4979 = vsel %vm2272, %v4781, 0
        %v4982 = vsel %vm2272, %v4782, 0
        %v4985 = vsel %vm2272, %v4783, 0
        %4987 = vmatprep.subr.mxu0 0.0
        %4988 = vmatpush1.msra.mxu0 %v4784
        %4989 = vmatprep.subr.mxu0 0.0
        %4990 = vmatpush1.msra.mxu0 %v4785
        %4991 = vmatprep.subr.mxu0 0.0
        %4992 = vmatpush1.msra.mxu0 %v4786
        %4993 = vmatprep.subr.mxu0 0.0
        %4994 = vmatpush1.msra.mxu0 %v4787
        %4995 = vmatprep.subr.mxu0 0.0
        %4996 = vmatpush1.msra.mxu0 0.0
        %4997 = vmatprep.subr.mxu0 0.0
        %4998 = vmatpush1.msra.mxu0 0.0
        %4999 = vmatprep.subr.mxu0 0.0
        %5000 = vmatpush1.msra.mxu0 0.0
        %5001 = vmatprep.subr.mxu0 0.0
        %5002 = vmatpush1.msra.mxu0 0.0
        %5003 = vmatprep.subr.mxu0 0.0
        %5004 = vmatpush1.msra.mxu0 0.0
        %5005 = vmatprep.subr.mxu0 0.0
        %5006 = vmatpush1.msra.mxu0 0.0
        %5007 = vmatprep.subr.mxu0 0.0
        %5008 = vmatpush1.msra.mxu0 0.0
        %5009 = vmatprep.subr.mxu0 0.0
        %5010 = vmatpush1.msra.mxu0 0.0
        %5011 = vmatprep.subr.mxu0 0.0
        %5012 = vmatpush1.msra.mxu0 0.0
        %5013 = vmatprep.subr.mxu0 0.0
        %5014 = vmatpush1.msra.mxu0 0.0
        %5015 = vmatprep.subr.mxu0 0.0
        %5016 = vmatpush1.msra.mxu0 0.0
        %5017 = vmatprep.subr.mxu0 0.0
        %5018 = vmatpush1.msra.mxu0 0.0
        %5019 = vmatprep.subr.mxu0 0.0
        %5020 = vmatpush1.msra.mxu0 0.0
        %5021 = vmatprep.subr.mxu0 0.0
        %5022 = vmatpush1.msra.mxu0 0.0
        %5023 = vmatprep.subr.mxu0 0.0
        %5024 = vmatpush1.msra.mxu0 0.0
        %5025 = vmatprep.subr.mxu0 0.0
        %5026 = vmatpush1.msra.mxu0 0.0
        %5027 = vmatprep.subr.mxu0 0.0
        %5028 = vmatpush1.msra.mxu0 0.0
        %5029 = vmatprep.subr.mxu0 0.0
        %5030 = vmatpush1.msra.mxu0 0.0
        %5031 = vmatprep.subr.mxu0 0.0
        %5032 = vmatpush1.msra.mxu0 0.0
        %5033 = vmatprep.subr.mxu0 0.0
        %5034 = vmatpush1.msra.mxu0 0.0
        %5035 = vmatprep.subr.mxu0 0.0
        %5036 = vmatpush1.msra.mxu0 0.0
        %5037 = vmatprep.subr.mxu0 0.0
        %5038 = vmatpush1.msra.mxu0 0.0
        %5039 = vmatprep.subr.mxu0 0.0
        %5040 = vmatpush1.msra.mxu0 0.0
        %5041 = vmatprep.subr.mxu0 0.0
        %5042 = vmatpush1.msra.mxu0 0.0
        %5043 = vmatprep.subr.mxu0 0.0
        %5044 = vmatpush1.msra.mxu0 0.0
        %5045 = vmatprep.subr.mxu0 0.0
        %5046 = vmatpush1.msra.mxu0 0.0
        %5047 = vmatprep.subr.mxu0 0.0
        %5048 = vmatpush1.msra.mxu0 0.0
        %5049 = vmatprep.subr.mxu0 0.0
        %5050 = vmatpush1.msra.mxu0 0.0
        %5051 = vmatprep.mubr.f32.mxu0 0.0
        %5052 = vmatmul.mubr.f32.gmra.mrb[0].mxu0 %v4796
        %v5053 = vpop.f32.mrb[0].mxu0
        %v5054 = vadd.f32 %v4793, %v5053
        %v5055 = vpop.f32.mrb[0].mxu0
        %5056 = vmatprep.mubr.f32.mxu0 0.0
        %5057 = vmatmul.mubr.f32.gmra.mrb[0].mxu0 %v4799
        %v5058 = vpop.f32.mrb[0].mxu0
        %v5059 = vadd.f32 %v4793, %v5058
        %v5060 = vpop.f32.mrb[0].mxu0
        %5061 = vmatprep.mubr.f32.mxu0 0.0
        %5062 = vmatmul.mubr.f32.gmra.mrb[0].mxu0 %v4802
        %v5063 = vpop.f32.mrb[0].mxu0
        %v5064 = vadd.f32 %v4793, %v5063
        %v5065 = vpop.f32.mrb[0].mxu0
        %5066 = vmatprep.mubr.f32.mxu0 0.0
        %5067 = vmatmul.mubr.f32.gmra.mrb[0].mxu0 %v4805
        %v5068 = vpop.f32.mrb[0].mxu0
        %v5069 = vadd.f32 %v4793, %v5068
        %v5070 = vpop.f32.mrb[0].mxu0
        %5071 = vmatprep.mubr.f32.mxu0 0.0
        %5072 = vmatmul.mubr.f32.gmra.mrb[0].mxu0 %v4808
        %v5073 = vpop.f32.mrb[0].mxu0
        %v5074 = vadd.f32 %v4793, %v5073
        %v5075 = vpop.f32.mrb[0].mxu0
        %5076 = vmatprep.mubr.f32.mxu0 0.0
        %5077 = vmatmul.mubr.f32.gmra.mrb[0].mxu0 %v4811
        %v5078 = vpop.f32.mrb[0].mxu0
        %v5079 = vadd.f32 %v4793, %v5078
        %v5080 = vpop.f32.mrb[0].mxu0
        %5081 = vmatprep.mubr.f32.mxu0 0.0
        %5082 = vmatmul.mubr.f32.gmra.mrb[0].mxu0 %v4814
        %v5083 = vpop.f32.mrb[0].mxu0
        %v5084 = vadd.f32 %v4793, %v5083
        %v5085 = vpop.f32.mrb[0].mxu0
        %5086 = vmatprep.mubr.f32.mxu0 0.0
        %5087 = vmatmul.mubr.f32.gmra.mrb[0].mxu0 %v4817
        %v5088 = vpop.f32.mrb[0].mxu0
        %v5089 = vadd.f32 %v4793, %v5088
        %v5090 = vpop.f32.mrb[0].mxu0
        %5091 = vmatprep.mubr.f32.mxu0 0.0
        %5092 = vmatmul.mubr.f32.gmra.mrb[0].mxu0 %v4820
        %v5093 = vpop.f32.mrb[0].mxu0
        %v5094 = vadd.f32 %v4793, %v5093
        %v5095 = vpop.f32.mrb[0].mxu0
        %5096 = vmatprep.mubr.f32.mxu0 0.0
        %5097 = vmatmul.mubr.f32.gmra.mrb[0].mxu0 %v4823
        %v5098 = vpop.f32.mrb[0].mxu0
        %v5099 = vadd.f32 %v4793, %v5098
        %v5100 = vpop.f32.mrb[0].mxu0
        %5101 = vmatprep.mubr.f32.mxu0 0.0
        %5102 = vmatmul.mubr.f32.gmra.mrb[0].mxu0 %v4826
        %v5103 = vpop.f32.mrb[0].mxu0
        %v5104 = vadd.f32 %v4793, %v5103
        %v5105 = vpop.f32.mrb[0].mxu0
        %5106 = vmatprep.mubr.f32.mxu0 0.0
        %5107 = vmatmul.mubr.f32.gmra.mrb[0].mxu0 %v4829
        %v5108 = vpop.f32.mrb[0].mxu0
        %v5109 = vadd.f32 %v4793, %v5108
        %v5110 = vpop.f32.mrb[0].mxu0
        %5111 = vmatprep.mubr.f32.mxu0 0.0
        %5112 = vmatmul.mubr.f32.gmra.mrb[0].mxu0 %v4832
        %v5113 = vpop.f32.mrb[0].mxu0
        %v5114 = vadd.f32 %v4793, %v5113
        %v5115 = vpop.f32.mrb[0].mxu0
        %5116 = vmatprep.mubr.f32.mxu0 0.0
        %5117 = vmatmul.mubr.f32.gmra.mrb[0].mxu0 %v4835
        %v5118 = vpop.f32.mrb[0].mxu0
        %v5119 = vadd.f32 %v4793, %v5118
        %v5120 = vpop.f32.mrb[0].mxu0
        %5121 = vmatprep.mubr.f32.mxu0 0.0
        %5122 = vmatmul.mubr.f32.gmra.mrb[0].mxu0 %v4838
        %v5123 = vpop.f32.mrb[0].mxu0
        %v5124 = vadd.f32 %v4793, %v5123
        %v5125 = vpop.f32.mrb[0].mxu0
        %5126 = vmatprep.mubr.f32.mxu0 0.0
        %5127 = vmatmul.mubr.f32.gmra.mrb[0].mxu0 %v4841
        %v5128 = vpop.f32.mrb[0].mxu0
        %v5129 = vadd.f32 %v4793, %v5128
        %v5130 = vpop.f32.mrb[0].mxu0
        %5131 = vmatprep.mubr.f32.mxu0 0.0
        %5132 = vmatmul.mubr.f32.gmra.mrb[0].mxu0 %v4844
        %v5133 = vpop.f32.mrb[0].mxu0
        %v5134 = vadd.f32 %v4793, %v5133
        %v5135 = vpop.f32.mrb[0].mxu0
        %5136 = vmatprep.mubr.f32.mxu0 0.0
        %5137 = vmatmul.mubr.f32.gmra.mrb[0].mxu0 %v4847
        %v5138 = vpop.f32.mrb[0].mxu0
        %v5139 = vadd.f32 %v4793, %v5138
        %v5140 = vpop.f32.mrb[0].mxu0
        %5141 = vmatprep.mubr.f32.mxu0 0.0
        %5142 = vmatmul.mubr.f32.gmra.mrb[0].mxu0 %v4850
        %v5143 = vpop.f32.mrb[0].mxu0
        %v5144 = vadd.f32 %v4793, %v5143
        %v5145 = vpop.f32.mrb[0].mxu0
        %5146 = vmatprep.mubr.f32.mxu0 0.0
        %5147 = vmatmul.mubr.f32.gmra.mrb[0].mxu0 %v4853
        %v5148 = vpop.f32.mrb[0].mxu0
        %v5149 = vadd.f32 %v4793, %v5148
        %v5150 = vpop.f32.mrb[0].mxu0
        %5151 = vmatprep.mubr.f32.mxu0 0.0
        %5152 = vmatmul.mubr.f32.gmra.mrb[0].mxu0 %v4856
        %v5153 = vpop.f32.mrb[0].mxu0
        %v5154 = vadd.f32 %v4793, %v5153
        %v5155 = vpop.f32.mrb[0].mxu0
        %5156 = vmatprep.mubr.f32.mxu0 0.0
        %5157 = vmatmul.mubr.f32.gmra.mrb[0].mxu0 %v4859
        %v5158 = vpop.f32.mrb[0].mxu0
        %v5159 = vadd.f32 %v4793, %v5158
        %v5160 = vpop.f32.mrb[0].mxu0
        %5161 = vmatprep.mubr.f32.mxu0 0.0
        %5162 = vmatmul.mubr.f32.gmra.mrb[0].mxu0 %v4862
        %v5163 = vpop.f32.mrb[0].mxu0
        %v5164 = vadd.f32 %v4793, %v5163
        %v5165 = vpop.f32.mrb[0].mxu0
        %5166 = vmatprep.mubr.f32.mxu0 0.0
        %5167 = vmatmul.mubr.f32.gmra.mrb[0].mxu0 %v4865
        %v5168 = vpop.f32.mrb[0].mxu0
        %v5169 = vadd.f32 %v4793, %v5168
        %v5170 = vpop.f32.mrb[0].mxu0
        %5171 = vmatprep.mubr.f32.mxu0 0.0
        %5172 = vmatmul.mubr.f32.gmra.mrb[0].mxu0 %v4868
        %v5173 = vpop.f32.mrb[0].mxu0
        %v5174 = vadd.f32 %v4793, %v5173
        %v5175 = vpop.f32.mrb[0].mxu0
        %5176 = vmatprep.mubr.f32.mxu0 0.0
        %5177 = vmatmul.mubr.f32.gmra.mrb[0].mxu0 %v4871
        %v5178 = vpop.f32.mrb[0].mxu0
        %v5179 = vadd.f32 %v4793, %v5178
        %v5180 = vpop.f32.mrb[0].mxu0
        %5181 = vmatprep.mubr.f32.mxu0 0.0
        %5182 = vmatmul.mubr.f32.gmra.mrb[0].mxu0 %v4874
        %v5183 = vpop.f32.mrb[0].mxu0
        %v5184 = vadd.f32 %v4793, %v5183
        %v5185 = vpop.f32.mrb[0].mxu0
        %5186 = vmatprep.mubr.f32.mxu0 0.0
        %5187 = vmatmul.mubr.f32.gmra.mrb[0].mxu0 %v4877
        %v5188 = vpop.f32.mrb[0].mxu0
        %v5189 = vadd.f32 %v4793, %v5188
        %v5190 = vpop.f32.mrb[0].mxu0
        %5191 = vmatprep.mubr.f32.mxu0 0.0
        %5192 = vmatmul.mubr.f32.gmra.mrb[0].mxu0 %v4880
        %v5193 = vpop.f32.mrb[0].mxu0
        %v5194 = vadd.f32 %v4793, %v5193
        %v5195 = vpop.f32.mrb[0].mxu0
        %5196 = vmatprep.mubr.f32.mxu0 0.0
        %5197 = vmatmul.mubr.f32.gmra.mrb[0].mxu0 %v4883
        %v5198 = vpop.f32.mrb[0].mxu0
        %v5199 = vadd.f32 %v4793, %v5198
        %v5200 = vpop.f32.mrb[0].mxu0
        %5201 = vmatprep.mubr.f32.mxu0 0.0
        %5202 = vmatmul.mubr.f32.gmra.mrb[0].mxu0 %v4886
        %v5203 = vpop.f32.mrb[0].mxu0
        %v5204 = vadd.f32 %v4793, %v5203
        %v5205 = vpop.f32.mrb[0].mxu0
        %5206 = vmatprep.mubr.f32.mxu0 0.0
        %5207 = vmatmul.mubr.f32.gmra.mrb[0].mxu0 %v4889
        %v5208 = vpop.f32.mrb[0].mxu0
        %v5209 = vadd.f32 %v4793, %v5208
        %v5210 = vpop.f32.mrb[0].mxu0
        %5211 = vmatprep.mubr.f32.mxu0 0.0
        %5212 = vmatmul.mubr.f32.gmra.mrb[0].mxu0 %v4892
        %v5213 = vpop.f32.mrb[0].mxu0
        %v5214 = vadd.f32 %v4793, %v5213
        %v5215 = vpop.f32.mrb[0].mxu0
        %5216 = vmatprep.mubr.f32.mxu0 0.0
        %5217 = vmatmul.mubr.f32.gmra.mrb[0].mxu0 %v4895
        %v5218 = vpop.f32.mrb[0].mxu0
        %v5219 = vadd.f32 %v4793, %v5218
        %v5220 = vpop.f32.mrb[0].mxu0
        %5221 = vmatprep.mubr.f32.mxu0 0.0
        %5222 = vmatmul.mubr.f32.gmra.mrb[0].mxu0 %v4898
        %v5223 = vpop.f32.mrb[0].mxu0
        %v5224 = vadd.f32 %v4793, %v5223
        %v5225 = vpop.f32.mrb[0].mxu0
        %5226 = vmatprep.mubr.f32.mxu0 0.0
        %5227 = vmatmul.mubr.f32.gmra.mrb[0].mxu0 %v4901
        %v5228 = vpop.f32.mrb[0].mxu0
        %v5229 = vadd.f32 %v4793, %v5228
        %v5230 = vpop.f32.mrb[0].mxu0
        %5231 = vmatprep.mubr.f32.mxu0 0.0
        %5232 = vmatmul.mubr.f32.gmra.mrb[0].mxu0 %v4904
        %v5233 = vpop.f32.mrb[0].mxu0
        %v5234 = vadd.f32 %v4793, %v5233
        %v5235 = vpop.f32.mrb[0].mxu0
        %5236 = vmatprep.mubr.f32.mxu0 0.0
        %5237 = vmatmul.mubr.f32.gmra.mrb[0].mxu0 %v4907
        %v5238 = vpop.f32.mrb[0].mxu0
        %v5239 = vadd.f32 %v4793, %v5238
        %v5240 = vpop.f32.mrb[0].mxu0
        %5241 = vmatprep.mubr.f32.mxu0 0.0
        %5242 = vmatmul.mubr.f32.gmra.mrb[0].mxu0 %v4910
        %v5243 = vpop.f32.mrb[0].mxu0
        %v5244 = vadd.f32 %v4793, %v5243
        %v5245 = vpop.f32.mrb[0].mxu0
        %5246 = vmatprep.mubr.f32.mxu0 0.0
        %5247 = vmatmul.mubr.f32.gmra.mrb[0].mxu0 %v4913
        %v5248 = vpop.f32.mrb[0].mxu0
        %v5249 = vadd.f32 %v4793, %v5248
        %v5250 = vpop.f32.mrb[0].mxu0
        %5251 = vmatprep.mubr.f32.mxu0 0.0
        %5252 = vmatmul.mubr.f32.gmra.mrb[0].mxu0 %v4916
        %v5253 = vpop.f32.mrb[0].mxu0
        %v5254 = vadd.f32 %v4793, %v5253
        %v5255 = vpop.f32.mrb[0].mxu0
        %5256 = vmatprep.mubr.f32.mxu0 0.0
        %5257 = vmatmul.mubr.f32.gmra.mrb[0].mxu0 %v4919
        %v5258 = vpop.f32.mrb[0].mxu0
        %v5259 = vadd.f32 %v4793, %v5258
        %v5260 = vpop.f32.mrb[0].mxu0
        %5261 = vmatprep.mubr.f32.mxu0 0.0
        %5262 = vmatmul.mubr.f32.gmra.mrb[0].mxu0 %v4922
        %v5263 = vpop.f32.mrb[0].mxu0
        %v5264 = vadd.f32 %v4793, %v5263
        %v5265 = vpop.f32.mrb[0].mxu0
        %5266 = vmatprep.mubr.f32.mxu0 0.0
        %5267 = vmatmul.mubr.f32.gmra.mrb[0].mxu0 %v4925
        %v5268 = vpop.f32.mrb[0].mxu0
        %v5269 = vadd.f32 %v4793, %v5268
        %v5270 = vpop.f32.mrb[0].mxu0
        %5271 = vmatprep.mubr.f32.mxu0 0.0
        %5272 = vmatmul.mubr.f32.gmra.mrb[0].mxu0 %v4928
        %v5273 = vpop.f32.mrb[0].mxu0
        %v5274 = vadd.f32 %v4793, %v5273
        %v5275 = vpop.f32.mrb[0].mxu0
        %5276 = vmatprep.mubr.f32.mxu0 0.0
        %5277 = vmatmul.mubr.f32.gmra.mrb[0].mxu0 %v4931
        %v5278 = vpop.f32.mrb[0].mxu0
        %v5279 = vadd.f32 %v4793, %v5278
        %v5280 = vpop.f32.mrb[0].mxu0
        %5281 = vmatprep.mubr.f32.mxu0 0.0
        %5282 = vmatmul.mubr.f32.gmra.mrb[0].mxu0 %v4934
        %v5283 = vpop.f32.mrb[0].mxu0
        %v5284 = vadd.f32 %v4793, %v5283
        %v5285 = vpop.f32.mrb[0].mxu0
        %5286 = vmatprep.mubr.f32.mxu0 0.0
        %5287 = vmatmul.mubr.f32.gmra.mrb[0].mxu0 %v4937
        %v5288 = vpop.f32.mrb[0].mxu0
        %v5289 = vadd.f32 %v4793, %v5288
        %v5290 = vpop.f32.mrb[0].mxu0
        %5291 = vmatprep.mubr.f32.mxu0 0.0
        %5292 = vmatmul.mubr.f32.gmra.mrb[0].mxu0 %v4940
        %v5293 = vpop.f32.mrb[0].mxu0
        %v5294 = vadd.f32 %v4793, %v5293
        %v5295 = vpop.f32.mrb[0].mxu0
        %5296 = vmatprep.mubr.f32.mxu0 0.0
        %5297 = vmatmul.mubr.f32.gmra.mrb[0].mxu0 %v4943
        %v5298 = vpop.f32.mrb[0].mxu0
        %v5299 = vadd.f32 %v4793, %v5298
        %v5300 = vpop.f32.mrb[0].mxu0
        %5301 = vmatprep.mubr.f32.mxu0 0.0
        %5302 = vmatmul.mubr.f32.gmra.mrb[0].mxu0 %v4946
        %v5303 = vpop.f32.mrb[0].mxu0
        %v5304 = vadd.f32 %v4793, %v5303
        %v5305 = vpop.f32.mrb[0].mxu0
        %5306 = vmatprep.mubr.f32.mxu0 0.0
        %5307 = vmatmul.mubr.f32.gmra.mrb[0].mxu0 %v4949
        %v5308 = vpop.f32.mrb[0].mxu0
        %v5309 = vadd.f32 %v4793, %v5308
        %v5310 = vpop.f32.mrb[0].mxu0
        %5311 = vmatprep.mubr.f32.mxu0 0.0
        %5312 = vmatmul.mubr.f32.gmra.mrb[0].mxu0 %v4952
        %v5313 = vpop.f32.mrb[0].mxu0
        %v5314 = vadd.f32 %v4793, %v5313
        %v5315 = vpop.f32.mrb[0].mxu0
        %5316 = vmatprep.mubr.f32.mxu0 0.0
        %5317 = vmatmul.mubr.f32.gmra.mrb[0].mxu0 %v4955
        %v5318 = vpop.f32.mrb[0].mxu0
        %v5319 = vadd.f32 %v4793, %v5318
        %v5320 = vpop.f32.mrb[0].mxu0
        %5321 = vmatprep.mubr.f32.mxu0 0.0
        %5322 = vmatmul.mubr.f32.gmra.mrb[0].mxu0 %v4958
        %v5323 = vpop.f32.mrb[0].mxu0
        %v5324 = vadd.f32 %v4793, %v5323
        %v5325 = vpop.f32.mrb[0].mxu0
        %5326 = vmatprep.mubr.f32.mxu0 0.0
        %5327 = vmatmul.mubr.f32.gmra.mrb[0].mxu0 %v4961
        %v5328 = vpop.f32.mrb[0].mxu0
        %v5329 = vadd.f32 %v4793, %v5328
        %v5330 = vpop.f32.mrb[0].mxu0
        %5331 = vmatprep.mubr.f32.mxu0 0.0
        %5332 = vmatmul.mubr.f32.gmra.mrb[0].mxu0 %v4964
        %v5333 = vpop.f32.mrb[0].mxu0
        %v5334 = vadd.f32 %v4793, %v5333
        %v5335 = vpop.f32.mrb[0].mxu0
        %5336 = vmatprep.mubr.f32.mxu0 0.0
        %5337 = vmatmul.mubr.f32.gmra.mrb[0].mxu0 %v4967
        %v5338 = vpop.f32.mrb[0].mxu0
        %v5339 = vadd.f32 %v4793, %v5338
        %v5340 = vpop.f32.mrb[0].mxu0
        %5341 = vmatprep.mubr.f32.mxu0 0.0
        %5342 = vmatmul.mubr.f32.gmra.mrb[0].mxu0 %v4970
        %v5343 = vpop.f32.mrb[0].mxu0
        %v5344 = vadd.f32 %v4793, %v5343
        %v5345 = vpop.f32.mrb[0].mxu0
        %5346 = vmatprep.mubr.f32.mxu0 0.0
        %5347 = vmatmul.mubr.f32.gmra.mrb[0].mxu0 %v4973
        %v5348 = vpop.f32.mrb[0].mxu0
        %v5349 = vadd.f32 %v4793, %v5348
        %v5350 = vpop.f32.mrb[0].mxu0
        %5351 = vmatprep.mubr.f32.mxu0 0.0
        %5352 = vmatmul.mubr.f32.gmra.mrb[0].mxu0 %v4976
        %v5353 = vpop.f32.mrb[0].mxu0
        %v5354 = vadd.f32 %v4793, %v5353
        %v5355 = vpop.f32.mrb[0].mxu0
        %5356 = vmatprep.mubr.f32.mxu0 0.0
        %5357 = vmatmul.mubr.f32.gmra.mrb[0].mxu0 %v4979
        %v5358 = vpop.f32.mrb[0].mxu0
        %v5359 = vadd.f32 %v4793, %v5358
        %v5360 = vpop.f32.mrb[0].mxu0
        %5361 = vmatprep.mubr.f32.mxu0 0.0
        %5362 = vmatmul.mubr.f32.gmra.mrb[0].mxu0 %v4982
        %v5363 = vpop.f32.mrb[0].mxu0
        %v5364 = vadd.f32 %v4793, %v5363
        %v5365 = vpop.f32.mrb[0].mxu0
        %5366 = vmatprep.mubr.f32.mxu0 0.0
        %5367 = vmatmul.mubr.f32.gmra.mrb[0].mxu0 %v4985
        %v5368 = vpop.f32.mrb[0].mxu0
        %v5369 = vadd.f32 %v4793, %v5368
        %v5370 = vpop.f32.mrb[0].mxu0
        %5371 = vdwg.mxu0
        %v5372 = vmax.f32 %v5054, 0.0
        %v5373 = vmax.f32 %v5059, 0.0
        %v5374 = vmax.f32 %v5064, 0.0
        %v5375 = vmax.f32 %v5069, 0.0
        %v5376 = vmax.f32 %v5074, 0.0
        %v5377 = vmax.f32 %v5079, 0.0
        %v5378 = vmax.f32 %v5084, 0.0
        %v5379 = vmax.f32 %v5089, 0.0
        %v5380 = vmax.f32 %v5094, 0.0
        %v5381 = vmax.f32 %v5099, 0.0
        %v5382 = vmax.f32 %v5104, 0.0
        %v5383 = vmax.f32 %v5109, 0.0
        %v5384 = vmax.f32 %v5114, 0.0
        %v5385 = vmax.f32 %v5119, 0.0
        %v5386 = vmax.f32 %v5124, 0.0
        %v5387 = vmax.f32 %v5129, 0.0
        %v5388 = vmax.f32 %v5134, 0.0
        %v5389 = vmax.f32 %v5139, 0.0
        %v5390 = vmax.f32 %v5144, 0.0
        %v5391 = vmax.f32 %v5149, 0.0
        %v5392 = vmax.f32 %v5154, 0.0
        %v5393 = vmax.f32 %v5159, 0.0
        %v5394 = vmax.f32 %v5164, 0.0
        %v5395 = vmax.f32 %v5169, 0.0
        %v5396 = vmax.f32 %v5174, 0.0
        %v5397 = vmax.f32 %v5179, 0.0
        %v5398 = vmax.f32 %v5184, 0.0
        %v5399 = vmax.f32 %v5189, 0.0
        %v5400 = vmax.f32 %v5194, 0.0
        %v5401 = vmax.f32 %v5199, 0.0
        %v5402 = vmax.f32 %v5204, 0.0
        %v5403 = vmax.f32 %v5209, 0.0
        %v5404 = vmax.f32 %v5214, 0.0
        %v5405 = vmax.f32 %v5219, 0.0
        %v5406 = vmax.f32 %v5224, 0.0
        %v5407 = vmax.f32 %v5229, 0.0
        %v5408 = vmax.f32 %v5234, 0.0
        %v5409 = vmax.f32 %v5239, 0.0
        %v5410 = vmax.f32 %v5244, 0.0
        %v5411 = vmax.f32 %v5249, 0.0
        %v5412 = vmax.f32 %v5254, 0.0
        %v5413 = vmax.f32 %v5259, 0.0
        %v5414 = vmax.f32 %v5264, 0.0
        %v5415 = vmax.f32 %v5269, 0.0
        %v5416 = vmax.f32 %v5274, 0.0
        %v5417 = vmax.f32 %v5279, 0.0
        %v5418 = vmax.f32 %v5284, 0.0
        %v5419 = vmax.f32 %v5289, 0.0
        %v5420 = vmax.f32 %v5294, 0.0
        %v5421 = vmax.f32 %v5299, 0.0
        %v5422 = vmax.f32 %v5304, 0.0
        %v5423 = vmax.f32 %v5309, 0.0
        %v5424 = vmax.f32 %v5314, 0.0
        %v5425 = vmax.f32 %v5319, 0.0
        %v5426 = vmax.f32 %v5324, 0.0
        %v5427 = vmax.f32 %v5329, 0.0
        %v5428 = vmax.f32 %v5334, 0.0
        %v5429 = vmax.f32 %v5339, 0.0
        %v5430 = vmax.f32 %v5344, 0.0
        %v5431 = vmax.f32 %v5349, 0.0
        %v5432 = vmax.f32 %v5354, 0.0
        %v5433 = vmax.f32 %v5359, 0.0
        %v5434 = vmax.f32 %v5364, 0.0
        %v5435 = vmax.f32 %v5369, 0.0
        %s5436 = scalar_lea.vmem %s8, 32
        %v5437 = vld [vmem:[%s5436] sm:$0xff]
        %v5438 = vld [vmem:[%s5436 + $0x8] sm:$0xff]
        %v5439 = vld [vmem:[%s5436 + $0x10] sm:$0xff]
        %v5440 = vld [vmem:[%s5436 + $0x18] sm:$0xff]
        %s5441 = scalar_lea.vmem %s9, 1
        %v5442 = vld [vmem:[%s5441] sm:$0x1]
        %v5444 = vlaneseq
        %v5445 = vshrl.u32 %v5444, 7
        %v5446 = vsub.s32 0, %v5445
        %v5447 = vrot.slane %v5442, %v5446
        %v5450 = vsel %vm2272, %v5372, 0
        %v5453 = vsel %vm2272, %v5373, 0
        %v5456 = vsel %vm2272, %v5374, 0
        %v5459 = vsel %vm2272, %v5375, 0
        %v5462 = vsel %vm2272, %v5376, 0
        %v5465 = vsel %vm2272, %v5377, 0
        %v5468 = vsel %vm2272, %v5378, 0
        %v5471 = vsel %vm2272, %v5379, 0
        %v5474 = vsel %vm2272, %v5380, 0
        %v5477 = vsel %vm2272, %v5381, 0
        %v5480 = vsel %vm2272, %v5382, 0
        %v5483 = vsel %vm2272, %v5383, 0
        %v5486 = vsel %vm2272, %v5384, 0
        %v5489 = vsel %vm2272, %v5385, 0
        %v5492 = vsel %vm2272, %v5386, 0
        %v5495 = vsel %vm2272, %v5387, 0
        %v5498 = vsel %vm2272, %v5388, 0
        %v5501 = vsel %vm2272, %v5389, 0
        %v5504 = vsel %vm2272, %v5390, 0
        %v5507 = vsel %vm2272, %v5391, 0
        %v5510 = vsel %vm2272, %v5392, 0
        %v5513 = vsel %vm2272, %v5393, 0
        %v5516 = vsel %vm2272, %v5394, 0
        %v5519 = vsel %vm2272, %v5395, 0
        %v5522 = vsel %vm2272, %v5396, 0
        %v5525 = vsel %vm2272, %v5397, 0
        %v5528 = vsel %vm2272, %v5398, 0
        %v5531 = vsel %vm2272, %v5399, 0
        %v5534 = vsel %vm2272, %v5400, 0
        %v5537 = vsel %vm2272, %v5401, 0
        %v5540 = vsel %vm2272, %v5402, 0
        %v5543 = vsel %vm2272, %v5403, 0
        %v5546 = vsel %vm2272, %v5404, 0
        %v5549 = vsel %vm2272, %v5405, 0
        %v5552 = vsel %vm2272, %v5406, 0
        %v5555 = vsel %vm2272, %v5407, 0
        %v5558 = vsel %vm2272, %v5408, 0
        %v5561 = vsel %vm2272, %v5409, 0
        %v5564 = vsel %vm2272, %v5410, 0
        %v5567 = vsel %vm2272, %v5411, 0
        %v5570 = vsel %vm2272, %v5412, 0
        %v5573 = vsel %vm2272, %v5413, 0
        %v5576 = vsel %vm2272, %v5414, 0
        %v5579 = vsel %vm2272, %v5415, 0
        %v5582 = vsel %vm2272, %v5416, 0
        %v5585 = vsel %vm2272, %v5417, 0
        %v5588 = vsel %vm2272, %v5418, 0
        %v5591 = vsel %vm2272, %v5419, 0
        %v5594 = vsel %vm2272, %v5420, 0
        %v5597 = vsel %vm2272, %v5421, 0
        %v5600 = vsel %vm2272, %v5422, 0
        %v5603 = vsel %vm2272, %v5423, 0
        %v5606 = vsel %vm2272, %v5424, 0
        %v5609 = vsel %vm2272, %v5425, 0
        %v5612 = vsel %vm2272, %v5426, 0
        %v5615 = vsel %vm2272, %v5427, 0
        %v5618 = vsel %vm2272, %v5428, 0
        %v5621 = vsel %vm2272, %v5429, 0
        %v5624 = vsel %vm2272, %v5430, 0
        %v5627 = vsel %vm2272, %v5431, 0
        %v5630 = vsel %vm2272, %v5432, 0
        %v5633 = vsel %vm2272, %v5433, 0
        %v5636 = vsel %vm2272, %v5434, 0
        %v5639 = vsel %vm2272, %v5435, 0
        %5641 = vmatprep.subr.mxu0 0.0
        %5642 = vmatpush1.msra.mxu0 %v5437
        %5643 = vmatprep.subr.mxu0 0.0
        %5644 = vmatpush1.msra.mxu0 %v5438
        %5645 = vmatprep.subr.mxu0 0.0
        %5646 = vmatpush1.msra.mxu0 %v5439
        %5647 = vmatprep.subr.mxu0 0.0
        %5648 = vmatpush1.msra.mxu0 %v5440
        %5649 = vmatprep.subr.mxu0 0.0
        %5650 = vmatpush1.msra.mxu0 0.0
        %5651 = vmatprep.subr.mxu0 0.0
        %5652 = vmatpush1.msra.mxu0 0.0
        %5653 = vmatprep.subr.mxu0 0.0
        %5654 = vmatpush1.msra.mxu0 0.0
        %5655 = vmatprep.subr.mxu0 0.0
        %5656 = vmatpush1.msra.mxu0 0.0
        %5657 = vmatprep.subr.mxu0 0.0
        %5658 = vmatpush1.msra.mxu0 0.0
        %5659 = vmatprep.subr.mxu0 0.0
        %5660 = vmatpush1.msra.mxu0 0.0
        %5661 = vmatprep.subr.mxu0 0.0
        %5662 = vmatpush1.msra.mxu0 0.0
        %5663 = vmatprep.subr.mxu0 0.0
        %5664 = vmatpush1.msra.mxu0 0.0
        %5665 = vmatprep.subr.mxu0 0.0
        %5666 = vmatpush1.msra.mxu0 0.0
        %5667 = vmatprep.subr.mxu0 0.0
        %5668 = vmatpush1.msra.mxu0 0.0
        %5669 = vmatprep.subr.mxu0 0.0
        %5670 = vmatpush1.msra.mxu0 0.0
        %5671 = vmatprep.subr.mxu0 0.0
        %5672 = vmatpush1.msra.mxu0 0.0
        %5673 = vmatprep.subr.mxu0 0.0
        %5674 = vmatpush1.msra.mxu0 0.0
        %5675 = vmatprep.subr.mxu0 0.0
        %5676 = vmatpush1.msra.mxu0 0.0
        %5677 = vmatprep.subr.mxu0 0.0
        %5678 = vmatpush1.msra.mxu0 0.0
        %5679 = vmatprep.subr.mxu0 0.0
        %5680 = vmatpush1.msra.mxu0 0.0
        %5681 = vmatprep.subr.mxu0 0.0
        %5682 = vmatpush1.msra.mxu0 0.0
        %5683 = vmatprep.subr.mxu0 0.0
        %5684 = vmatpush1.msra.mxu0 0.0
        %5685 = vmatprep.subr.mxu0 0.0
        %5686 = vmatpush1.msra.mxu0 0.0
        %5687 = vmatprep.subr.mxu0 0.0
        %5688 = vmatpush1.msra.mxu0 0.0
        %5689 = vmatprep.subr.mxu0 0.0
        %5690 = vmatpush1.msra.mxu0 0.0
        %5691 = vmatprep.subr.mxu0 0.0
        %5692 = vmatpush1.msra.mxu0 0.0
        %5693 = vmatprep.subr.mxu0 0.0
        %5694 = vmatpush1.msra.mxu0 0.0
        %5695 = vmatprep.subr.mxu0 0.0
        %5696 = vmatpush1.msra.mxu0 0.0
        %5697 = vmatprep.subr.mxu0 0.0
        %5698 = vmatpush1.msra.mxu0 0.0
        %5699 = vmatprep.subr.mxu0 0.0
        %5700 = vmatpush1.msra.mxu0 0.0
        %5701 = vmatprep.subr.mxu0 0.0
        %5702 = vmatpush1.msra.mxu0 0.0
        %5703 = vmatprep.subr.mxu0 0.0
        %5704 = vmatpush1.msra.mxu0 0.0
        %5705 = vmatprep.mubr.f32.mxu0 0.0
        %5706 = vmatmul.mubr.f32.gmra.mrb[0].mxu0 %v5450
        %v5707 = vpop.f32.mrb[0].mxu0
        %v5708 = vadd.f32 %v5447, %v5707
        %v5709 = vpop.f32.mrb[0].mxu0
        %5710 = vmatprep.mubr.f32.mxu0 0.0
        %5711 = vmatmul.mubr.f32.gmra.mrb[0].mxu0 %v5453
        %v5712 = vpop.f32.mrb[0].mxu0
        %v5713 = vadd.f32 %v5447, %v5712
        %v5714 = vpop.f32.mrb[0].mxu0
        %5715 = vmatprep.mubr.f32.mxu0 0.0
        %5716 = vmatmul.mubr.f32.gmra.mrb[0].mxu0 %v5456
        %v5717 = vpop.f32.mrb[0].mxu0
        %v5718 = vadd.f32 %v5447, %v5717
        %v5719 = vpop.f32.mrb[0].mxu0
        %5720 = vmatprep.mubr.f32.mxu0 0.0
        %5721 = vmatmul.mubr.f32.gmra.mrb[0].mxu0 %v5459
        %v5722 = vpop.f32.mrb[0].mxu0
        %v5723 = vadd.f32 %v5447, %v5722
        %v5724 = vpop.f32.mrb[0].mxu0
        %5725 = vmatprep.mubr.f32.mxu0 0.0
        %5726 = vmatmul.mubr.f32.gmra.mrb[0].mxu0 %v5462
        %v5727 = vpop.f32.mrb[0].mxu0
        %v5728 = vadd.f32 %v5447, %v5727
        %v5729 = vpop.f32.mrb[0].mxu0
        %5730 = vmatprep.mubr.f32.mxu0 0.0
        %5731 = vmatmul.mubr.f32.gmra.mrb[0].mxu0 %v5465
        %v5732 = vpop.f32.mrb[0].mxu0
        %v5733 = vadd.f32 %v5447, %v5732
        %v5734 = vpop.f32.mrb[0].mxu0
        %5735 = vmatprep.mubr.f32.mxu0 0.0
        %5736 = vmatmul.mubr.f32.gmra.mrb[0].mxu0 %v5468
        %v5737 = vpop.f32.mrb[0].mxu0
        %v5738 = vadd.f32 %v5447, %v5737
        %v5739 = vpop.f32.mrb[0].mxu0
        %5740 = vmatprep.mubr.f32.mxu0 0.0
        %5741 = vmatmul.mubr.f32.gmra.mrb[0].mxu0 %v5471
        %v5742 = vpop.f32.mrb[0].mxu0
        %v5743 = vadd.f32 %v5447, %v5742
        %v5744 = vpop.f32.mrb[0].mxu0
        %5745 = vmatprep.mubr.f32.mxu0 0.0
        %5746 = vmatmul.mubr.f32.gmra.mrb[0].mxu0 %v5474
        %v5747 = vpop.f32.mrb[0].mxu0
        %v5748 = vadd.f32 %v5447, %v5747
        %v5749 = vpop.f32.mrb[0].mxu0
        %5750 = vmatprep.mubr.f32.mxu0 0.0
        %5751 = vmatmul.mubr.f32.gmra.mrb[0].mxu0 %v5477
        %v5752 = vpop.f32.mrb[0].mxu0
        %v5753 = vadd.f32 %v5447, %v5752
        %v5754 = vpop.f32.mrb[0].mxu0
        %5755 = vmatprep.mubr.f32.mxu0 0.0
        %5756 = vmatmul.mubr.f32.gmra.mrb[0].mxu0 %v5480
        %v5757 = vpop.f32.mrb[0].mxu0
        %v5758 = vadd.f32 %v5447, %v5757
        %v5759 = vpop.f32.mrb[0].mxu0
        %5760 = vmatprep.mubr.f32.mxu0 0.0
        %5761 = vmatmul.mubr.f32.gmra.mrb[0].mxu0 %v5483
        %v5762 = vpop.f32.mrb[0].mxu0
        %v5763 = vadd.f32 %v5447, %v5762
        %v5764 = vpop.f32.mrb[0].mxu0
        %5765 = vmatprep.mubr.f32.mxu0 0.0
        %5766 = vmatmul.mubr.f32.gmra.mrb[0].mxu0 %v5486
        %v5767 = vpop.f32.mrb[0].mxu0
        %v5768 = vadd.f32 %v5447, %v5767
        %v5769 = vpop.f32.mrb[0].mxu0
        %5770 = vmatprep.mubr.f32.mxu0 0.0
        %5771 = vmatmul.mubr.f32.gmra.mrb[0].mxu0 %v5489
        %v5772 = vpop.f32.mrb[0].mxu0
        %v5773 = vadd.f32 %v5447, %v5772
        %v5774 = vpop.f32.mrb[0].mxu0
        %5775 = vmatprep.mubr.f32.mxu0 0.0
        %5776 = vmatmul.mubr.f32.gmra.mrb[0].mxu0 %v5492
        %v5777 = vpop.f32.mrb[0].mxu0
        %v5778 = vadd.f32 %v5447, %v5777
        %v5779 = vpop.f32.mrb[0].mxu0
        %5780 = vmatprep.mubr.f32.mxu0 0.0
        %5781 = vmatmul.mubr.f32.gmra.mrb[0].mxu0 %v5495
        %v5782 = vpop.f32.mrb[0].mxu0
        %v5783 = vadd.f32 %v5447, %v5782
        %v5784 = vpop.f32.mrb[0].mxu0
        %5785 = vmatprep.mubr.f32.mxu0 0.0
        %5786 = vmatmul.mubr.f32.gmra.mrb[0].mxu0 %v5498
        %v5787 = vpop.f32.mrb[0].mxu0
        %v5788 = vadd.f32 %v5447, %v5787
        %v5789 = vpop.f32.mrb[0].mxu0
        %5790 = vmatprep.mubr.f32.mxu0 0.0
        %5791 = vmatmul.mubr.f32.gmra.mrb[0].mxu0 %v5501
        %v5792 = vpop.f32.mrb[0].mxu0
        %v5793 = vadd.f32 %v5447, %v5792
        %v5794 = vpop.f32.mrb[0].mxu0
        %5795 = vmatprep.mubr.f32.mxu0 0.0
        %5796 = vmatmul.mubr.f32.gmra.mrb[0].mxu0 %v5504
        %v5797 = vpop.f32.mrb[0].mxu0
        %v5798 = vadd.f32 %v5447, %v5797
        %v5799 = vpop.f32.mrb[0].mxu0
        %5800 = vmatprep.mubr.f32.mxu0 0.0
        %5801 = vmatmul.mubr.f32.gmra.mrb[0].mxu0 %v5507
        %v5802 = vpop.f32.mrb[0].mxu0
        %v5803 = vadd.f32 %v5447, %v5802
        %v5804 = vpop.f32.mrb[0].mxu0
        %5805 = vmatprep.mubr.f32.mxu0 0.0
        %5806 = vmatmul.mubr.f32.gmra.mrb[0].mxu0 %v5510
        %v5807 = vpop.f32.mrb[0].mxu0
        %v5808 = vadd.f32 %v5447, %v5807
        %v5809 = vpop.f32.mrb[0].mxu0
        %5810 = vmatprep.mubr.f32.mxu0 0.0
        %5811 = vmatmul.mubr.f32.gmra.mrb[0].mxu0 %v5513
        %v5812 = vpop.f32.mrb[0].mxu0
        %v5813 = vadd.f32 %v5447, %v5812
        %v5814 = vpop.f32.mrb[0].mxu0
        %5815 = vmatprep.mubr.f32.mxu0 0.0
        %5816 = vmatmul.mubr.f32.gmra.mrb[0].mxu0 %v5516
        %v5817 = vpop.f32.mrb[0].mxu0
        %v5818 = vadd.f32 %v5447, %v5817
        %v5819 = vpop.f32.mrb[0].mxu0
        %5820 = vmatprep.mubr.f32.mxu0 0.0
        %5821 = vmatmul.mubr.f32.gmra.mrb[0].mxu0 %v5519
        %v5822 = vpop.f32.mrb[0].mxu0
        %v5823 = vadd.f32 %v5447, %v5822
        %v5824 = vpop.f32.mrb[0].mxu0
        %5825 = vmatprep.mubr.f32.mxu0 0.0
        %5826 = vmatmul.mubr.f32.gmra.mrb[0].mxu0 %v5522
        %v5827 = vpop.f32.mrb[0].mxu0
        %v5828 = vadd.f32 %v5447, %v5827
        %v5829 = vpop.f32.mrb[0].mxu0
        %5830 = vmatprep.mubr.f32.mxu0 0.0
        %5831 = vmatmul.mubr.f32.gmra.mrb[0].mxu0 %v5525
        %v5832 = vpop.f32.mrb[0].mxu0
        %v5833 = vadd.f32 %v5447, %v5832
        %v5834 = vpop.f32.mrb[0].mxu0
        %5835 = vmatprep.mubr.f32.mxu0 0.0
        %5836 = vmatmul.mubr.f32.gmra.mrb[0].mxu0 %v5528
        %v5837 = vpop.f32.mrb[0].mxu0
        %v5838 = vadd.f32 %v5447, %v5837
        %v5839 = vpop.f32.mrb[0].mxu0
        %5840 = vmatprep.mubr.f32.mxu0 0.0
        %5841 = vmatmul.mubr.f32.gmra.mrb[0].mxu0 %v5531
        %v5842 = vpop.f32.mrb[0].mxu0
        %v5843 = vadd.f32 %v5447, %v5842
        %v5844 = vpop.f32.mrb[0].mxu0
        %5845 = vmatprep.mubr.f32.mxu0 0.0
        %5846 = vmatmul.mubr.f32.gmra.mrb[0].mxu0 %v5534
        %v5847 = vpop.f32.mrb[0].mxu0
        %v5848 = vadd.f32 %v5447, %v5847
        %v5849 = vpop.f32.mrb[0].mxu0
        %5850 = vmatprep.mubr.f32.mxu0 0.0
        %5851 = vmatmul.mubr.f32.gmra.mrb[0].mxu0 %v5537
        %v5852 = vpop.f32.mrb[0].mxu0
        %v5853 = vadd.f32 %v5447, %v5852
        %v5854 = vpop.f32.mrb[0].mxu0
        %5855 = vmatprep.mubr.f32.mxu0 0.0
        %5856 = vmatmul.mubr.f32.gmra.mrb[0].mxu0 %v5540
        %v5857 = vpop.f32.mrb[0].mxu0
        %v5858 = vadd.f32 %v5447, %v5857
        %v5859 = vpop.f32.mrb[0].mxu0
        %5860 = vmatprep.mubr.f32.mxu0 0.0
        %5861 = vmatmul.mubr.f32.gmra.mrb[0].mxu0 %v5543
        %v5862 = vpop.f32.mrb[0].mxu0
        %v5863 = vadd.f32 %v5447, %v5862
        %v5864 = vpop.f32.mrb[0].mxu0
        %5865 = vmatprep.mubr.f32.mxu0 0.0
        %5866 = vmatmul.mubr.f32.gmra.mrb[0].mxu0 %v5546
        %v5867 = vpop.f32.mrb[0].mxu0
        %v5868 = vadd.f32 %v5447, %v5867
        %v5869 = vpop.f32.mrb[0].mxu0
        %5870 = vmatprep.mubr.f32.mxu0 0.0
        %5871 = vmatmul.mubr.f32.gmra.mrb[0].mxu0 %v5549
        %v5872 = vpop.f32.mrb[0].mxu0
        %v5873 = vadd.f32 %v5447, %v5872
        %v5874 = vpop.f32.mrb[0].mxu0
        %5875 = vmatprep.mubr.f32.mxu0 0.0
        %5876 = vmatmul.mubr.f32.gmra.mrb[0].mxu0 %v5552
        %v5877 = vpop.f32.mrb[0].mxu0
        %v5878 = vadd.f32 %v5447, %v5877
        %v5879 = vpop.f32.mrb[0].mxu0
        %5880 = vmatprep.mubr.f32.mxu0 0.0
        %5881 = vmatmul.mubr.f32.gmra.mrb[0].mxu0 %v5555
        %v5882 = vpop.f32.mrb[0].mxu0
        %v5883 = vadd.f32 %v5447, %v5882
        %v5884 = vpop.f32.mrb[0].mxu0
        %5885 = vmatprep.mubr.f32.mxu0 0.0
        %5886 = vmatmul.mubr.f32.gmra.mrb[0].mxu0 %v5558
        %v5887 = vpop.f32.mrb[0].mxu0
        %v5888 = vadd.f32 %v5447, %v5887
        %v5889 = vpop.f32.mrb[0].mxu0
        %5890 = vmatprep.mubr.f32.mxu0 0.0
        %5891 = vmatmul.mubr.f32.gmra.mrb[0].mxu0 %v5561
        %v5892 = vpop.f32.mrb[0].mxu0
        %v5893 = vadd.f32 %v5447, %v5892
        %v5894 = vpop.f32.mrb[0].mxu0
        %5895 = vmatprep.mubr.f32.mxu0 0.0
        %5896 = vmatmul.mubr.f32.gmra.mrb[0].mxu0 %v5564
        %v5897 = vpop.f32.mrb[0].mxu0
        %v5898 = vadd.f32 %v5447, %v5897
        %v5899 = vpop.f32.mrb[0].mxu0
        %5900 = vmatprep.mubr.f32.mxu0 0.0
        %5901 = vmatmul.mubr.f32.gmra.mrb[0].mxu0 %v5567
        %v5902 = vpop.f32.mrb[0].mxu0
        %v5903 = vadd.f32 %v5447, %v5902
        %v5904 = vpop.f32.mrb[0].mxu0
        %5905 = vmatprep.mubr.f32.mxu0 0.0
        %5906 = vmatmul.mubr.f32.gmra.mrb[0].mxu0 %v5570
        %v5907 = vpop.f32.mrb[0].mxu0
        %v5908 = vadd.f32 %v5447, %v5907
        %v5909 = vpop.f32.mrb[0].mxu0
        %5910 = vmatprep.mubr.f32.mxu0 0.0
        %5911 = vmatmul.mubr.f32.gmra.mrb[0].mxu0 %v5573
        %v5912 = vpop.f32.mrb[0].mxu0
        %v5913 = vadd.f32 %v5447, %v5912
        %v5914 = vpop.f32.mrb[0].mxu0
        %5915 = vmatprep.mubr.f32.mxu0 0.0
        %5916 = vmatmul.mubr.f32.gmra.mrb[0].mxu0 %v5576
        %v5917 = vpop.f32.mrb[0].mxu0
        %v5918 = vadd.f32 %v5447, %v5917
        %v5919 = vpop.f32.mrb[0].mxu0
        %5920 = vmatprep.mubr.f32.mxu0 0.0
        %5921 = vmatmul.mubr.f32.gmra.mrb[0].mxu0 %v5579
        %v5922 = vpop.f32.mrb[0].mxu0
        %v5923 = vadd.f32 %v5447, %v5922
        %v5924 = vpop.f32.mrb[0].mxu0
        %5925 = vmatprep.mubr.f32.mxu0 0.0
        %5926 = vmatmul.mubr.f32.gmra.mrb[0].mxu0 %v5582
        %v5927 = vpop.f32.mrb[0].mxu0
        %v5928 = vadd.f32 %v5447, %v5927
        %v5929 = vpop.f32.mrb[0].mxu0
        %5930 = vmatprep.mubr.f32.mxu0 0.0
        %5931 = vmatmul.mubr.f32.gmra.mrb[0].mxu0 %v5585
        %v5932 = vpop.f32.mrb[0].mxu0
        %v5933 = vadd.f32 %v5447, %v5932
        %v5934 = vpop.f32.mrb[0].mxu0
        %5935 = vmatprep.mubr.f32.mxu0 0.0
        %5936 = vmatmul.mubr.f32.gmra.mrb[0].mxu0 %v5588
        %v5937 = vpop.f32.mrb[0].mxu0
        %v5938 = vadd.f32 %v5447, %v5937
        %v5939 = vpop.f32.mrb[0].mxu0
        %5940 = vmatprep.mubr.f32.mxu0 0.0
        %5941 = vmatmul.mubr.f32.gmra.mrb[0].mxu0 %v5591
        %v5942 = vpop.f32.mrb[0].mxu0
        %v5943 = vadd.f32 %v5447, %v5942
        %v5944 = vpop.f32.mrb[0].mxu0
        %5945 = vmatprep.mubr.f32.mxu0 0.0
        %5946 = vmatmul.mubr.f32.gmra.mrb[0].mxu0 %v5594
        %v5947 = vpop.f32.mrb[0].mxu0
        %v5948 = vadd.f32 %v5447, %v5947
        %v5949 = vpop.f32.mrb[0].mxu0
        %5950 = vmatprep.mubr.f32.mxu0 0.0
        %5951 = vmatmul.mubr.f32.gmra.mrb[0].mxu0 %v5597
        %v5952 = vpop.f32.mrb[0].mxu0
        %v5953 = vadd.f32 %v5447, %v5952
        %v5954 = vpop.f32.mrb[0].mxu0
        %5955 = vmatprep.mubr.f32.mxu0 0.0
        %5956 = vmatmul.mubr.f32.gmra.mrb[0].mxu0 %v5600
        %v5957 = vpop.f32.mrb[0].mxu0
        %v5958 = vadd.f32 %v5447, %v5957
        %v5959 = vpop.f32.mrb[0].mxu0
        %5960 = vmatprep.mubr.f32.mxu0 0.0
        %5961 = vmatmul.mubr.f32.gmra.mrb[0].mxu0 %v5603
        %v5962 = vpop.f32.mrb[0].mxu0
        %v5963 = vadd.f32 %v5447, %v5962
        %v5964 = vpop.f32.mrb[0].mxu0
        %5965 = vmatprep.mubr.f32.mxu0 0.0
        %5966 = vmatmul.mubr.f32.gmra.mrb[0].mxu0 %v5606
        %v5967 = vpop.f32.mrb[0].mxu0
        %v5968 = vadd.f32 %v5447, %v5967
        %v5969 = vpop.f32.mrb[0].mxu0
        %5970 = vmatprep.mubr.f32.mxu0 0.0
        %5971 = vmatmul.mubr.f32.gmra.mrb[0].mxu0 %v5609
        %v5972 = vpop.f32.mrb[0].mxu0
        %v5973 = vadd.f32 %v5447, %v5972
        %v5974 = vpop.f32.mrb[0].mxu0
        %5975 = vmatprep.mubr.f32.mxu0 0.0
        %5976 = vmatmul.mubr.f32.gmra.mrb[0].mxu0 %v5612
        %v5977 = vpop.f32.mrb[0].mxu0
        %v5978 = vadd.f32 %v5447, %v5977
        %v5979 = vpop.f32.mrb[0].mxu0
        %5980 = vmatprep.mubr.f32.mxu0 0.0
        %5981 = vmatmul.mubr.f32.gmra.mrb[0].mxu0 %v5615
        %v5982 = vpop.f32.mrb[0].mxu0
        %v5983 = vadd.f32 %v5447, %v5982
        %v5984 = vpop.f32.mrb[0].mxu0
        %5985 = vmatprep.mubr.f32.mxu0 0.0
        %5986 = vmatmul.mubr.f32.gmra.mrb[0].mxu0 %v5618
        %v5987 = vpop.f32.mrb[0].mxu0
        %v5988 = vadd.f32 %v5447, %v5987
        %v5989 = vpop.f32.mrb[0].mxu0
        %5990 = vmatprep.mubr.f32.mxu0 0.0
        %5991 = vmatmul.mubr.f32.gmra.mrb[0].mxu0 %v5621
        %v5992 = vpop.f32.mrb[0].mxu0
        %v5993 = vadd.f32 %v5447, %v5992
        %v5994 = vpop.f32.mrb[0].mxu0
        %5995 = vmatprep.mubr.f32.mxu0 0.0
        %5996 = vmatmul.mubr.f32.gmra.mrb[0].mxu0 %v5624
        %v5997 = vpop.f32.mrb[0].mxu0
        %v5998 = vadd.f32 %v5447, %v5997
        %v5999 = vpop.f32.mrb[0].mxu0
        %6000 = vmatprep.mubr.f32.mxu0 0.0
        %6001 = vmatmul.mubr.f32.gmra.mrb[0].mxu0 %v5627
        %v6002 = vpop.f32.mrb[0].mxu0
        %v6003 = vadd.f32 %v5447, %v6002
        %v6004 = vpop.f32.mrb[0].mxu0
        %6005 = vmatprep.mubr.f32.mxu0 0.0
        %6006 = vmatmul.mubr.f32.gmra.mrb[0].mxu0 %v5630
        %v6007 = vpop.f32.mrb[0].mxu0
        %v6008 = vadd.f32 %v5447, %v6007
        %v6009 = vpop.f32.mrb[0].mxu0
        %6010 = vmatprep.mubr.f32.mxu0 0.0
        %6011 = vmatmul.mubr.f32.gmra.mrb[0].mxu0 %v5633
        %v6012 = vpop.f32.mrb[0].mxu0
        %v6013 = vadd.f32 %v5447, %v6012
        %v6014 = vpop.f32.mrb[0].mxu0
        %6015 = vmatprep.mubr.f32.mxu0 0.0
        %6016 = vmatmul.mubr.f32.gmra.mrb[0].mxu0 %v5636
        %v6017 = vpop.f32.mrb[0].mxu0
        %v6018 = vadd.f32 %v5447, %v6017
        %v6019 = vpop.f32.mrb[0].mxu0
        %6020 = vmatprep.mubr.f32.mxu0 0.0
        %6021 = vmatmul.mubr.f32.gmra.mrb[0].mxu0 %v5639
        %v6022 = vpop.f32.mrb[0].mxu0
        %v6023 = vadd.f32 %v5447, %v6022
        %v6024 = vpop.f32.mrb[0].mxu0
        %6025 = vdwg.mxu0
        %v6026 = vmax.f32 %v5708, 0.0
        %v6027 = vmax.f32 %v5713, 0.0
        %v6028 = vmax.f32 %v5718, 0.0
        %v6029 = vmax.f32 %v5723, 0.0
        %v6030 = vmax.f32 %v5728, 0.0
        %v6031 = vmax.f32 %v5733, 0.0
        %v6032 = vmax.f32 %v5738, 0.0
        %v6033 = vmax.f32 %v5743, 0.0
        %v6034 = vmax.f32 %v5748, 0.0
        %v6035 = vmax.f32 %v5753, 0.0
        %v6036 = vmax.f32 %v5758, 0.0
        %v6037 = vmax.f32 %v5763, 0.0
        %v6038 = vmax.f32 %v5768, 0.0
        %v6039 = vmax.f32 %v5773, 0.0
        %v6040 = vmax.f32 %v5778, 0.0
        %v6041 = vmax.f32 %v5783, 0.0
        %v6042 = vmax.f32 %v5788, 0.0
        %v6043 = vmax.f32 %v5793, 0.0
        %v6044 = vmax.f32 %v5798, 0.0
        %v6045 = vmax.f32 %v5803, 0.0
        %v6046 = vmax.f32 %v5808, 0.0
        %v6047 = vmax.f32 %v5813, 0.0
        %v6048 = vmax.f32 %v5818, 0.0
        %v6049 = vmax.f32 %v5823, 0.0
        %v6050 = vmax.f32 %v5828, 0.0
        %v6051 = vmax.f32 %v5833, 0.0
        %v6052 = vmax.f32 %v5838, 0.0
        %v6053 = vmax.f32 %v5843, 0.0
        %v6054 = vmax.f32 %v5848, 0.0
        %v6055 = vmax.f32 %v5853, 0.0
        %v6056 = vmax.f32 %v5858, 0.0
        %v6057 = vmax.f32 %v5863, 0.0
        %v6058 = vmax.f32 %v5868, 0.0
        %v6059 = vmax.f32 %v5873, 0.0
        %v6060 = vmax.f32 %v5878, 0.0
        %v6061 = vmax.f32 %v5883, 0.0
        %v6062 = vmax.f32 %v5888, 0.0
        %v6063 = vmax.f32 %v5893, 0.0
        %v6064 = vmax.f32 %v5898, 0.0
        %v6065 = vmax.f32 %v5903, 0.0
        %v6066 = vmax.f32 %v5908, 0.0
        %v6067 = vmax.f32 %v5913, 0.0
        %v6068 = vmax.f32 %v5918, 0.0
        %v6069 = vmax.f32 %v5923, 0.0
        %v6070 = vmax.f32 %v5928, 0.0
        %v6071 = vmax.f32 %v5933, 0.0
        %v6072 = vmax.f32 %v5938, 0.0
        %v6073 = vmax.f32 %v5943, 0.0
        %v6074 = vmax.f32 %v5948, 0.0
        %v6075 = vmax.f32 %v5953, 0.0
        %v6076 = vmax.f32 %v5958, 0.0
        %v6077 = vmax.f32 %v5963, 0.0
        %v6078 = vmax.f32 %v5968, 0.0
        %v6079 = vmax.f32 %v5973, 0.0
        %v6080 = vmax.f32 %v5978, 0.0
        %v6081 = vmax.f32 %v5983, 0.0
        %v6082 = vmax.f32 %v5988, 0.0
        %v6083 = vmax.f32 %v5993, 0.0
        %v6084 = vmax.f32 %v5998, 0.0
        %v6085 = vmax.f32 %v6003, 0.0
        %v6086 = vmax.f32 %v6008, 0.0
        %v6087 = vmax.f32 %v6013, 0.0
        %v6088 = vmax.f32 %v6018, 0.0
        %v6089 = vmax.f32 %v6023, 0.0
        %v6090 = vld [vmem:[%s10] sm:$0xff]
        %v6091 = vld [vmem:[%s10 + $0x8] sm:$0xff]
        %v6092 = vld [vmem:[%s10 + $0x10] sm:$0xff]
        %v6093 = vld [vmem:[%s10 + $0x18] sm:$0xff]
        %v6094 = vld [vmem:[%s11] sm:$0x1]
        %v6096 = vlaneseq
        %v6097 = vshrl.u32 %v6096, 7
        %v6098 = vsub.s32 0, %v6097
        %v6099 = vrot.slane %v6094, %v6098
        %v6102 = vsel %vm2272, %v6026, 0
        %v6105 = vsel %vm2272, %v6027, 0
        %v6108 = vsel %vm2272, %v6028, 0
        %v6111 = vsel %vm2272, %v6029, 0
        %v6114 = vsel %vm2272, %v6030, 0
        %v6117 = vsel %vm2272, %v6031, 0
        %v6120 = vsel %vm2272, %v6032, 0
        %v6123 = vsel %vm2272, %v6033, 0
        %v6126 = vsel %vm2272, %v6034, 0
        %v6129 = vsel %vm2272, %v6035, 0
        %v6132 = vsel %vm2272, %v6036, 0
        %v6135 = vsel %vm2272, %v6037, 0
        %v6138 = vsel %vm2272, %v6038, 0
        %v6141 = vsel %vm2272, %v6039, 0
        %v6144 = vsel %vm2272, %v6040, 0
        %v6147 = vsel %vm2272, %v6041, 0
        %v6150 = vsel %vm2272, %v6042, 0
        %v6153 = vsel %vm2272, %v6043, 0
        %v6156 = vsel %vm2272, %v6044, 0
        %v6159 = vsel %vm2272, %v6045, 0
        %v6162 = vsel %vm2272, %v6046, 0
        %v6165 = vsel %vm2272, %v6047, 0
        %v6168 = vsel %vm2272, %v6048, 0
        %v6171 = vsel %vm2272, %v6049, 0
        %v6174 = vsel %vm2272, %v6050, 0
        %v6177 = vsel %vm2272, %v6051, 0
        %v6180 = vsel %vm2272, %v6052, 0
        %v6183 = vsel %vm2272, %v6053, 0
        %v6186 = vsel %vm2272, %v6054, 0
        %v6189 = vsel %vm2272, %v6055, 0
        %v6192 = vsel %vm2272, %v6056, 0
        %v6195 = vsel %vm2272, %v6057, 0
        %v6198 = vsel %vm2272, %v6058, 0
        %v6201 = vsel %vm2272, %v6059, 0
        %v6204 = vsel %vm2272, %v6060, 0
        %v6207 = vsel %vm2272, %v6061, 0
        %v6210 = vsel %vm2272, %v6062, 0
        %v6213 = vsel %vm2272, %v6063, 0
        %v6216 = vsel %vm2272, %v6064, 0
        %v6219 = vsel %vm2272, %v6065, 0
        %v6222 = vsel %vm2272, %v6066, 0
        %v6225 = vsel %vm2272, %v6067, 0
        %v6228 = vsel %vm2272, %v6068, 0
        %v6231 = vsel %vm2272, %v6069, 0
        %v6234 = vsel %vm2272, %v6070, 0
        %v6237 = vsel %vm2272, %v6071, 0
        %v6240 = vsel %vm2272, %v6072, 0
        %v6243 = vsel %vm2272, %v6073, 0
        %v6246 = vsel %vm2272, %v6074, 0
        %v6249 = vsel %vm2272, %v6075, 0
        %v6252 = vsel %vm2272, %v6076, 0
        %v6255 = vsel %vm2272, %v6077, 0
        %v6258 = vsel %vm2272, %v6078, 0
        %v6261 = vsel %vm2272, %v6079, 0
        %v6264 = vsel %vm2272, %v6080, 0
        %v6267 = vsel %vm2272, %v6081, 0
        %v6270 = vsel %vm2272, %v6082, 0
        %v6273 = vsel %vm2272, %v6083, 0
        %v6276 = vsel %vm2272, %v6084, 0
        %v6279 = vsel %vm2272, %v6085, 0
        %v6282 = vsel %vm2272, %v6086, 0
        %v6285 = vsel %vm2272, %v6087, 0
        %v6288 = vsel %vm2272, %v6088, 0
        %v6291 = vsel %vm2272, %v6089, 0
        %6293 = vmatprep.subr.mxu0 0.0
        %6294 = vmatpush1.msra.mxu0 %v6090
        %6295 = vmatprep.subr.mxu0 0.0
        %6296 = vmatpush1.msra.mxu0 %v6091
        %6297 = vmatprep.subr.mxu0 0.0
        %6298 = vmatpush1.msra.mxu0 %v6092
        %6299 = vmatprep.subr.mxu0 0.0
        %6300 = vmatpush1.msra.mxu0 %v6093
        %6301 = vmatprep.subr.mxu0 0.0
        %6302 = vmatpush1.msra.mxu0 0.0
        %6303 = vmatprep.subr.mxu0 0.0
        %6304 = vmatpush1.msra.mxu0 0.0
        %6305 = vmatprep.subr.mxu0 0.0
        %6306 = vmatpush1.msra.mxu0 0.0
        %6307 = vmatprep.subr.mxu0 0.0
        %6308 = vmatpush1.msra.mxu0 0.0
        %6309 = vmatprep.subr.mxu0 0.0
        %6310 = vmatpush1.msra.mxu0 0.0
        %6311 = vmatprep.subr.mxu0 0.0
        %6312 = vmatpush1.msra.mxu0 0.0
        %6313 = vmatprep.subr.mxu0 0.0
        %6314 = vmatpush1.msra.mxu0 0.0
        %6315 = vmatprep.subr.mxu0 0.0
        %6316 = vmatpush1.msra.mxu0 0.0
        %6317 = vmatprep.subr.mxu0 0.0
        %6318 = vmatpush1.msra.mxu0 0.0
        %6319 = vmatprep.subr.mxu0 0.0
        %6320 = vmatpush1.msra.mxu0 0.0
        %6321 = vmatprep.subr.mxu0 0.0
        %6322 = vmatpush1.msra.mxu0 0.0
        %6323 = vmatprep.subr.mxu0 0.0
        %6324 = vmatpush1.msra.mxu0 0.0
        %6325 = vmatprep.subr.mxu0 0.0
        %6326 = vmatpush1.msra.mxu0 0.0
        %6327 = vmatprep.subr.mxu0 0.0
        %6328 = vmatpush1.msra.mxu0 0.0
        %6329 = vmatprep.subr.mxu0 0.0
        %6330 = vmatpush1.msra.mxu0 0.0
        %6331 = vmatprep.subr.mxu0 0.0
        %6332 = vmatpush1.msra.mxu0 0.0
        %6333 = vmatprep.subr.mxu0 0.0
        %6334 = vmatpush1.msra.mxu0 0.0
        %6335 = vmatprep.subr.mxu0 0.0
        %6336 = vmatpush1.msra.mxu0 0.0
        %6337 = vmatprep.subr.mxu0 0.0
        %6338 = vmatpush1.msra.mxu0 0.0
        %6339 = vmatprep.subr.mxu0 0.0
        %6340 = vmatpush1.msra.mxu0 0.0
        %6341 = vmatprep.subr.mxu0 0.0
        %6342 = vmatpush1.msra.mxu0 0.0
        %6343 = vmatprep.subr.mxu0 0.0
        %6344 = vmatpush1.msra.mxu0 0.0
        %6345 = vmatprep.subr.mxu0 0.0
        %6346 = vmatpush1.msra.mxu0 0.0
        %6347 = vmatprep.subr.mxu0 0.0
        %6348 = vmatpush1.msra.mxu0 0.0
        %6349 = vmatprep.subr.mxu0 0.0
        %6350 = vmatpush1.msra.mxu0 0.0
        %6351 = vmatprep.subr.mxu0 0.0
        %6352 = vmatpush1.msra.mxu0 0.0
        %6353 = vmatprep.subr.mxu0 0.0
        %6354 = vmatpush1.msra.mxu0 0.0
        %6355 = vmatprep.subr.mxu0 0.0
        %6356 = vmatpush1.msra.mxu0 0.0
        %6357 = vmatprep.mubr.f32.mxu0 0.0
        %6358 = vmatmul.mubr.f32.gmra.mrb[0].mxu0 %v6102
        %v6359 = vpop.f32.mrb[0].mxu0
        %v6360 = vadd.f32 %v6099, %v6359
        %v6361 = vpop.f32.mrb[0].mxu0
        %6362 = vmatprep.mubr.f32.mxu0 0.0
        %6363 = vmatmul.mubr.f32.gmra.mrb[0].mxu0 %v6105
        %v6364 = vpop.f32.mrb[0].mxu0
        %v6365 = vadd.f32 %v6099, %v6364
        %v6366 = vpop.f32.mrb[0].mxu0
        %6367 = vmatprep.mubr.f32.mxu0 0.0
        %6368 = vmatmul.mubr.f32.gmra.mrb[0].mxu0 %v6108
        %v6369 = vpop.f32.mrb[0].mxu0
        %v6370 = vadd.f32 %v6099, %v6369
        %v6371 = vpop.f32.mrb[0].mxu0
        %6372 = vmatprep.mubr.f32.mxu0 0.0
        %6373 = vmatmul.mubr.f32.gmra.mrb[0].mxu0 %v6111
        %v6374 = vpop.f32.mrb[0].mxu0
        %v6375 = vadd.f32 %v6099, %v6374
        %v6376 = vpop.f32.mrb[0].mxu0
        %6377 = vmatprep.mubr.f32.mxu0 0.0
        %6378 = vmatmul.mubr.f32.gmra.mrb[0].mxu0 %v6114
        %v6379 = vpop.f32.mrb[0].mxu0
        %v6380 = vadd.f32 %v6099, %v6379
        %v6381 = vpop.f32.mrb[0].mxu0
        %6382 = vmatprep.mubr.f32.mxu0 0.0
        %6383 = vmatmul.mubr.f32.gmra.mrb[0].mxu0 %v6117
        %v6384 = vpop.f32.mrb[0].mxu0
        %v6385 = vadd.f32 %v6099, %v6384
        %v6386 = vpop.f32.mrb[0].mxu0
        %6387 = vmatprep.mubr.f32.mxu0 0.0
        %6388 = vmatmul.mubr.f32.gmra.mrb[0].mxu0 %v6120
        %v6389 = vpop.f32.mrb[0].mxu0
        %v6390 = vadd.f32 %v6099, %v6389
        %v6391 = vpop.f32.mrb[0].mxu0
        %6392 = vmatprep.mubr.f32.mxu0 0.0
        %6393 = vmatmul.mubr.f32.gmra.mrb[0].mxu0 %v6123
        %v6394 = vpop.f32.mrb[0].mxu0
        %v6395 = vadd.f32 %v6099, %v6394
        %v6396 = vpop.f32.mrb[0].mxu0
        %6397 = vmatprep.mubr.f32.mxu0 0.0
        %6398 = vmatmul.mubr.f32.gmra.mrb[0].mxu0 %v6126
        %v6399 = vpop.f32.mrb[0].mxu0
        %v6400 = vadd.f32 %v6099, %v6399
        %v6401 = vpop.f32.mrb[0].mxu0
        %6402 = vmatprep.mubr.f32.mxu0 0.0
        %6403 = vmatmul.mubr.f32.gmra.mrb[0].mxu0 %v6129
        %v6404 = vpop.f32.mrb[0].mxu0
        %v6405 = vadd.f32 %v6099, %v6404
        %v6406 = vpop.f32.mrb[0].mxu0
        %6407 = vmatprep.mubr.f32.mxu0 0.0
        %6408 = vmatmul.mubr.f32.gmra.mrb[0].mxu0 %v6132
        %v6409 = vpop.f32.mrb[0].mxu0
        %v6410 = vadd.f32 %v6099, %v6409
        %v6411 = vpop.f32.mrb[0].mxu0
        %6412 = vmatprep.mubr.f32.mxu0 0.0
        %6413 = vmatmul.mubr.f32.gmra.mrb[0].mxu0 %v6135
        %v6414 = vpop.f32.mrb[0].mxu0
        %v6415 = vadd.f32 %v6099, %v6414
        %v6416 = vpop.f32.mrb[0].mxu0
        %6417 = vmatprep.mubr.f32.mxu0 0.0
        %6418 = vmatmul.mubr.f32.gmra.mrb[0].mxu0 %v6138
        %v6419 = vpop.f32.mrb[0].mxu0
        %v6420 = vadd.f32 %v6099, %v6419
        %v6421 = vpop.f32.mrb[0].mxu0
        %6422 = vmatprep.mubr.f32.mxu0 0.0
        %6423 = vmatmul.mubr.f32.gmra.mrb[0].mxu0 %v6141
        %v6424 = vpop.f32.mrb[0].mxu0
        %v6425 = vadd.f32 %v6099, %v6424
        %v6426 = vpop.f32.mrb[0].mxu0
        %6427 = vmatprep.mubr.f32.mxu0 0.0
        %6428 = vmatmul.mubr.f32.gmra.mrb[0].mxu0 %v6144
        %v6429 = vpop.f32.mrb[0].mxu0
        %v6430 = vadd.f32 %v6099, %v6429
        %v6431 = vpop.f32.mrb[0].mxu0
        %6432 = vmatprep.mubr.f32.mxu0 0.0
        %6433 = vmatmul.mubr.f32.gmra.mrb[0].mxu0 %v6147
        %v6434 = vpop.f32.mrb[0].mxu0
        %v6435 = vadd.f32 %v6099, %v6434
        %v6436 = vpop.f32.mrb[0].mxu0
        %6437 = vmatprep.mubr.f32.mxu0 0.0
        %6438 = vmatmul.mubr.f32.gmra.mrb[0].mxu0 %v6150
        %v6439 = vpop.f32.mrb[0].mxu0
        %v6440 = vadd.f32 %v6099, %v6439
        %v6441 = vpop.f32.mrb[0].mxu0
        %6442 = vmatprep.mubr.f32.mxu0 0.0
        %6443 = vmatmul.mubr.f32.gmra.mrb[0].mxu0 %v6153
        %v6444 = vpop.f32.mrb[0].mxu0
        %v6445 = vadd.f32 %v6099, %v6444
        %v6446 = vpop.f32.mrb[0].mxu0
        %6447 = vmatprep.mubr.f32.mxu0 0.0
        %6448 = vmatmul.mubr.f32.gmra.mrb[0].mxu0 %v6156
        %v6449 = vpop.f32.mrb[0].mxu0
        %v6450 = vadd.f32 %v6099, %v6449
        %v6451 = vpop.f32.mrb[0].mxu0
        %6452 = vmatprep.mubr.f32.mxu0 0.0
        %6453 = vmatmul.mubr.f32.gmra.mrb[0].mxu0 %v6159
        %v6454 = vpop.f32.mrb[0].mxu0
        %v6455 = vadd.f32 %v6099, %v6454
        %v6456 = vpop.f32.mrb[0].mxu0
        %6457 = vmatprep.mubr.f32.mxu0 0.0
        %6458 = vmatmul.mubr.f32.gmra.mrb[0].mxu0 %v6162
        %v6459 = vpop.f32.mrb[0].mxu0
        %v6460 = vadd.f32 %v6099, %v6459
        %v6461 = vpop.f32.mrb[0].mxu0
        %6462 = vmatprep.mubr.f32.mxu0 0.0
        %6463 = vmatmul.mubr.f32.gmra.mrb[0].mxu0 %v6165
        %v6464 = vpop.f32.mrb[0].mxu0
        %v6465 = vadd.f32 %v6099, %v6464
        %v6466 = vpop.f32.mrb[0].mxu0
        %6467 = vmatprep.mubr.f32.mxu0 0.0
        %6468 = vmatmul.mubr.f32.gmra.mrb[0].mxu0 %v6168
        %v6469 = vpop.f32.mrb[0].mxu0
        %v6470 = vadd.f32 %v6099, %v6469
        %v6471 = vpop.f32.mrb[0].mxu0
        %6472 = vmatprep.mubr.f32.mxu0 0.0
        %6473 = vmatmul.mubr.f32.gmra.mrb[0].mxu0 %v6171
        %v6474 = vpop.f32.mrb[0].mxu0
        %v6475 = vadd.f32 %v6099, %v6474
        %v6476 = vpop.f32.mrb[0].mxu0
        %6477 = vmatprep.mubr.f32.mxu0 0.0
        %6478 = vmatmul.mubr.f32.gmra.mrb[0].mxu0 %v6174
        %v6479 = vpop.f32.mrb[0].mxu0
        %v6480 = vadd.f32 %v6099, %v6479
        %v6481 = vpop.f32.mrb[0].mxu0
        %6482 = vmatprep.mubr.f32.mxu0 0.0
        %6483 = vmatmul.mubr.f32.gmra.mrb[0].mxu0 %v6177
        %v6484 = vpop.f32.mrb[0].mxu0
        %v6485 = vadd.f32 %v6099, %v6484
        %v6486 = vpop.f32.mrb[0].mxu0
        %6487 = vmatprep.mubr.f32.mxu0 0.0
        %6488 = vmatmul.mubr.f32.gmra.mrb[0].mxu0 %v6180
        %v6489 = vpop.f32.mrb[0].mxu0
        %v6490 = vadd.f32 %v6099, %v6489
        %v6491 = vpop.f32.mrb[0].mxu0
        %6492 = vmatprep.mubr.f32.mxu0 0.0
        %6493 = vmatmul.mubr.f32.gmra.mrb[0].mxu0 %v6183
        %v6494 = vpop.f32.mrb[0].mxu0
        %v6495 = vadd.f32 %v6099, %v6494
        %v6496 = vpop.f32.mrb[0].mxu0
        %6497 = vmatprep.mubr.f32.mxu0 0.0
        %6498 = vmatmul.mubr.f32.gmra.mrb[0].mxu0 %v6186
        %v6499 = vpop.f32.mrb[0].mxu0
        %v6500 = vadd.f32 %v6099, %v6499
        %v6501 = vpop.f32.mrb[0].mxu0
        %6502 = vmatprep.mubr.f32.mxu0 0.0
        %6503 = vmatmul.mubr.f32.gmra.mrb[0].mxu0 %v6189
        %v6504 = vpop.f32.mrb[0].mxu0
        %v6505 = vadd.f32 %v6099, %v6504
        %v6506 = vpop.f32.mrb[0].mxu0
        %6507 = vmatprep.mubr.f32.mxu0 0.0
        %6508 = vmatmul.mubr.f32.gmra.mrb[0].mxu0 %v6192
        %v6509 = vpop.f32.mrb[0].mxu0
        %v6510 = vadd.f32 %v6099, %v6509
        %v6511 = vpop.f32.mrb[0].mxu0
        %6512 = vmatprep.mubr.f32.mxu0 0.0
        %6513 = vmatmul.mubr.f32.gmra.mrb[0].mxu0 %v6195
        %v6514 = vpop.f32.mrb[0].mxu0
        %v6515 = vadd.f32 %v6099, %v6514
        %v6516 = vpop.f32.mrb[0].mxu0
        %6517 = vmatprep.mubr.f32.mxu0 0.0
        %6518 = vmatmul.mubr.f32.gmra.mrb[0].mxu0 %v6198
        %v6519 = vpop.f32.mrb[0].mxu0
        %v6520 = vadd.f32 %v6099, %v6519
        %v6521 = vpop.f32.mrb[0].mxu0
        %6522 = vmatprep.mubr.f32.mxu0 0.0
        %6523 = vmatmul.mubr.f32.gmra.mrb[0].mxu0 %v6201
        %v6524 = vpop.f32.mrb[0].mxu0
        %v6525 = vadd.f32 %v6099, %v6524
        %v6526 = vpop.f32.mrb[0].mxu0
        %6527 = vmatprep.mubr.f32.mxu0 0.0
        %6528 = vmatmul.mubr.f32.gmra.mrb[0].mxu0 %v6204
        %v6529 = vpop.f32.mrb[0].mxu0
        %v6530 = vadd.f32 %v6099, %v6529
        %v6531 = vpop.f32.mrb[0].mxu0
        %6532 = vmatprep.mubr.f32.mxu0 0.0
        %6533 = vmatmul.mubr.f32.gmra.mrb[0].mxu0 %v6207
        %v6534 = vpop.f32.mrb[0].mxu0
        %v6535 = vadd.f32 %v6099, %v6534
        %v6536 = vpop.f32.mrb[0].mxu0
        %6537 = vmatprep.mubr.f32.mxu0 0.0
        %6538 = vmatmul.mubr.f32.gmra.mrb[0].mxu0 %v6210
        %v6539 = vpop.f32.mrb[0].mxu0
        %v6540 = vadd.f32 %v6099, %v6539
        %v6541 = vpop.f32.mrb[0].mxu0
        %6542 = vmatprep.mubr.f32.mxu0 0.0
        %6543 = vmatmul.mubr.f32.gmra.mrb[0].mxu0 %v6213
        %v6544 = vpop.f32.mrb[0].mxu0
        %v6545 = vadd.f32 %v6099, %v6544
        %v6546 = vpop.f32.mrb[0].mxu0
        %6547 = vmatprep.mubr.f32.mxu0 0.0
        %6548 = vmatmul.mubr.f32.gmra.mrb[0].mxu0 %v6216
        %v6549 = vpop.f32.mrb[0].mxu0
        %v6550 = vadd.f32 %v6099, %v6549
        %v6551 = vpop.f32.mrb[0].mxu0
        %6552 = vmatprep.mubr.f32.mxu0 0.0
        %6553 = vmatmul.mubr.f32.gmra.mrb[0].mxu0 %v6219
        %v6554 = vpop.f32.mrb[0].mxu0
        %v6555 = vadd.f32 %v6099, %v6554
        %v6556 = vpop.f32.mrb[0].mxu0
        %6557 = vmatprep.mubr.f32.mxu0 0.0
        %6558 = vmatmul.mubr.f32.gmra.mrb[0].mxu0 %v6222
        %v6559 = vpop.f32.mrb[0].mxu0
        %v6560 = vadd.f32 %v6099, %v6559
        %v6561 = vpop.f32.mrb[0].mxu0
        %6562 = vmatprep.mubr.f32.mxu0 0.0
        %6563 = vmatmul.mubr.f32.gmra.mrb[0].mxu0 %v6225
        %v6564 = vpop.f32.mrb[0].mxu0
        %v6565 = vadd.f32 %v6099, %v6564
        %v6566 = vpop.f32.mrb[0].mxu0
        %6567 = vmatprep.mubr.f32.mxu0 0.0
        %6568 = vmatmul.mubr.f32.gmra.mrb[0].mxu0 %v6228
        %v6569 = vpop.f32.mrb[0].mxu0
        %v6570 = vadd.f32 %v6099, %v6569
        %v6571 = vpop.f32.mrb[0].mxu0
        %6572 = vmatprep.mubr.f32.mxu0 0.0
        %6573 = vmatmul.mubr.f32.gmra.mrb[0].mxu0 %v6231
        %v6574 = vpop.f32.mrb[0].mxu0
        %v6575 = vadd.f32 %v6099, %v6574
        %v6576 = vpop.f32.mrb[0].mxu0
        %6577 = vmatprep.mubr.f32.mxu0 0.0
        %6578 = vmatmul.mubr.f32.gmra.mrb[0].mxu0 %v6234
        %v6579 = vpop.f32.mrb[0].mxu0
        %v6580 = vadd.f32 %v6099, %v6579
        %v6581 = vpop.f32.mrb[0].mxu0
        %6582 = vmatprep.mubr.f32.mxu0 0.0
        %6583 = vmatmul.mubr.f32.gmra.mrb[0].mxu0 %v6237
        %v6584 = vpop.f32.mrb[0].mxu0
        %v6585 = vadd.f32 %v6099, %v6584
        %v6586 = vpop.f32.mrb[0].mxu0
        %6587 = vmatprep.mubr.f32.mxu0 0.0
        %6588 = vmatmul.mubr.f32.gmra.mrb[0].mxu0 %v6240
        %v6589 = vpop.f32.mrb[0].mxu0
        %v6590 = vadd.f32 %v6099, %v6589
        %v6591 = vpop.f32.mrb[0].mxu0
        %6592 = vmatprep.mubr.f32.mxu0 0.0
        %6593 = vmatmul.mubr.f32.gmra.mrb[0].mxu0 %v6243
        %v6594 = vpop.f32.mrb[0].mxu0
        %v6595 = vadd.f32 %v6099, %v6594
        %v6596 = vpop.f32.mrb[0].mxu0
        %6597 = vmatprep.mubr.f32.mxu0 0.0
        %6598 = vmatmul.mubr.f32.gmra.mrb[0].mxu0 %v6246
        %v6599 = vpop.f32.mrb[0].mxu0
        %v6600 = vadd.f32 %v6099, %v6599
        %v6601 = vpop.f32.mrb[0].mxu0
        %6602 = vmatprep.mubr.f32.mxu0 0.0
        %6603 = vmatmul.mubr.f32.gmra.mrb[0].mxu0 %v6249
        %v6604 = vpop.f32.mrb[0].mxu0
        %v6605 = vadd.f32 %v6099, %v6604
        %v6606 = vpop.f32.mrb[0].mxu0
        %6607 = vmatprep.mubr.f32.mxu0 0.0
        %6608 = vmatmul.mubr.f32.gmra.mrb[0].mxu0 %v6252
        %v6609 = vpop.f32.mrb[0].mxu0
        %v6610 = vadd.f32 %v6099, %v6609
        %v6611 = vpop.f32.mrb[0].mxu0
        %6612 = vmatprep.mubr.f32.mxu0 0.0
        %6613 = vmatmul.mubr.f32.gmra.mrb[0].mxu0 %v6255
        %v6614 = vpop.f32.mrb[0].mxu0
        %v6615 = vadd.f32 %v6099, %v6614
        %v6616 = vpop.f32.mrb[0].mxu0
        %6617 = vmatprep.mubr.f32.mxu0 0.0
        %6618 = vmatmul.mubr.f32.gmra.mrb[0].mxu0 %v6258
        %v6619 = vpop.f32.mrb[0].mxu0
        %v6620 = vadd.f32 %v6099, %v6619
        %v6621 = vpop.f32.mrb[0].mxu0
        %6622 = vmatprep.mubr.f32.mxu0 0.0
        %6623 = vmatmul.mubr.f32.gmra.mrb[0].mxu0 %v6261
        %v6624 = vpop.f32.mrb[0].mxu0
        %v6625 = vadd.f32 %v6099, %v6624
        %v6626 = vpop.f32.mrb[0].mxu0
        %6627 = vmatprep.mubr.f32.mxu0 0.0
        %6628 = vmatmul.mubr.f32.gmra.mrb[0].mxu0 %v6264
        %v6629 = vpop.f32.mrb[0].mxu0
        %v6630 = vadd.f32 %v6099, %v6629
        %v6631 = vpop.f32.mrb[0].mxu0
        %6632 = vmatprep.mubr.f32.mxu0 0.0
        %6633 = vmatmul.mubr.f32.gmra.mrb[0].mxu0 %v6267
        %v6634 = vpop.f32.mrb[0].mxu0
        %v6635 = vadd.f32 %v6099, %v6634
        %v6636 = vpop.f32.mrb[0].mxu0
        %6637 = vmatprep.mubr.f32.mxu0 0.0
        %6638 = vmatmul.mubr.f32.gmra.mrb[0].mxu0 %v6270
        %v6639 = vpop.f32.mrb[0].mxu0
        %v6640 = vadd.f32 %v6099, %v6639
        %v6641 = vpop.f32.mrb[0].mxu0
        %6642 = vmatprep.mubr.f32.mxu0 0.0
        %6643 = vmatmul.mubr.f32.gmra.mrb[0].mxu0 %v6273
        %v6644 = vpop.f32.mrb[0].mxu0
        %v6645 = vadd.f32 %v6099, %v6644
        %v6646 = vpop.f32.mrb[0].mxu0
        %6647 = vmatprep.mubr.f32.mxu0 0.0
        %6648 = vmatmul.mubr.f32.gmra.mrb[0].mxu0 %v6276
        %v6649 = vpop.f32.mrb[0].mxu0
        %v6650 = vadd.f32 %v6099, %v6649
        %v6651 = vpop.f32.mrb[0].mxu0
        %6652 = vmatprep.mubr.f32.mxu0 0.0
        %6653 = vmatmul.mubr.f32.gmra.mrb[0].mxu0 %v6279
        %v6654 = vpop.f32.mrb[0].mxu0
        %v6655 = vadd.f32 %v6099, %v6654
        %v6656 = vpop.f32.mrb[0].mxu0
        %6657 = vmatprep.mubr.f32.mxu0 0.0
        %6658 = vmatmul.mubr.f32.gmra.mrb[0].mxu0 %v6282
        %v6659 = vpop.f32.mrb[0].mxu0
        %v6660 = vadd.f32 %v6099, %v6659
        %v6661 = vpop.f32.mrb[0].mxu0
        %6662 = vmatprep.mubr.f32.mxu0 0.0
        %6663 = vmatmul.mubr.f32.gmra.mrb[0].mxu0 %v6285
        %v6664 = vpop.f32.mrb[0].mxu0
        %v6665 = vadd.f32 %v6099, %v6664
        %v6666 = vpop.f32.mrb[0].mxu0
        %6667 = vmatprep.mubr.f32.mxu0 0.0
        %6668 = vmatmul.mubr.f32.gmra.mrb[0].mxu0 %v6288
        %v6669 = vpop.f32.mrb[0].mxu0
        %v6670 = vadd.f32 %v6099, %v6669
        %v6671 = vpop.f32.mrb[0].mxu0
        %6672 = vmatprep.mubr.f32.mxu0 0.0
        %6673 = vmatmul.mubr.f32.gmra.mrb[0].mxu0 %v6291
        %v6674 = vpop.f32.mrb[0].mxu0
        %v6675 = vadd.f32 %v6099, %v6674
        %v6676 = vpop.f32.mrb[0].mxu0
        %6677 = vdwg.mxu0
        %6678 = vst [vmem:[%s423] sm:$0xff] %v6360
        %6679 = vst [vmem:[%s423 + $0x8] sm:$0xff] %v6365
        %6680 = vst [vmem:[%s423 + $0x10] sm:$0xff] %v6370
        %6681 = vst [vmem:[%s423 + $0x18] sm:$0xff] %v6375
        %6682 = vst [vmem:[%s423 + $0x20] sm:$0xff] %v6380
        %6683 = vst [vmem:[%s423 + $0x28] sm:$0xff] %v6385
        %6684 = vst [vmem:[%s423 + $0x30] sm:$0xff] %v6390
        %6685 = vst [vmem:[%s423 + $0x38] sm:$0xff] %v6395
        %6686 = vst [vmem:[%s423 + $0x40] sm:$0xff] %v6400
        %6687 = vst [vmem:[%s423 + $0x48] sm:$0xff] %v6405
        %6688 = vst [vmem:[%s423 + $0x50] sm:$0xff] %v6410
        %6689 = vst [vmem:[%s423 + $0x58] sm:$0xff] %v6415
        %6690 = vst [vmem:[%s423 + $0x60] sm:$0xff] %v6420
        %6691 = vst [vmem:[%s423 + $0x68] sm:$0xff] %v6425
        %6692 = vst [vmem:[%s423 + $0x70] sm:$0xff] %v6430
        %6693 = vst [vmem:[%s423 + $0x78] sm:$0xff] %v6435
        %6694 = vst [vmem:[%s423 + $0x80] sm:$0xff] %v6440
        %6695 = vst [vmem:[%s423 + $0x88] sm:$0xff] %v6445
        %6696 = vst [vmem:[%s423 + $0x90] sm:$0xff] %v6450
        %6697 = vst [vmem:[%s423 + $0x98] sm:$0xff] %v6455
        %6698 = vst [vmem:[%s423 + $0xa0] sm:$0xff] %v6460
        %6699 = vst [vmem:[%s423 + $0xa8] sm:$0xff] %v6465
        %6700 = vst [vmem:[%s423 + $0xb0] sm:$0xff] %v6470
        %6701 = vst [vmem:[%s423 + $0xb8] sm:$0xff] %v6475
        %6702 = vst [vmem:[%s423 + $0xc0] sm:$0xff] %v6480
        %6703 = vst [vmem:[%s423 + $0xc8] sm:$0xff] %v6485
        %6704 = vst [vmem:[%s423 + $0xd0] sm:$0xff] %v6490
        %6705 = vst [vmem:[%s423 + $0xd8] sm:$0xff] %v6495
        %6706 = vst [vmem:[%s423 + $0xe0] sm:$0xff] %v6500
        %6707 = vst [vmem:[%s423 + $0xe8] sm:$0xff] %v6505
        %6708 = vst [vmem:[%s423 + $0xf0] sm:$0xff] %v6510
        %6709 = vst [vmem:[%s423 + $0xf8] sm:$0xff] %v6515
        %6710 = vst [vmem:[%s423 + $0x100] sm:$0xff] %v6520
        %6711 = vst [vmem:[%s423 + $0x108] sm:$0xff] %v6525
        %6712 = vst [vmem:[%s423 + $0x110] sm:$0xff] %v6530
        %6713 = vst [vmem:[%s423 + $0x118] sm:$0xff] %v6535
        %6714 = vst [vmem:[%s423 + $0x120] sm:$0xff] %v6540
        %6715 = vst [vmem:[%s423 + $0x128] sm:$0xff] %v6545
        %6716 = vst [vmem:[%s423 + $0x130] sm:$0xff] %v6550
        %6717 = vst [vmem:[%s423 + $0x138] sm:$0xff] %v6555
        %6718 = vst [vmem:[%s423 + $0x140] sm:$0xff] %v6560
        %6719 = vst [vmem:[%s423 + $0x148] sm:$0xff] %v6565
        %6720 = vst [vmem:[%s423 + $0x150] sm:$0xff] %v6570
        %6721 = vst [vmem:[%s423 + $0x158] sm:$0xff] %v6575
        %6722 = vst [vmem:[%s423 + $0x160] sm:$0xff] %v6580
        %6723 = vst [vmem:[%s423 + $0x168] sm:$0xff] %v6585
        %6724 = vst [vmem:[%s423 + $0x170] sm:$0xff] %v6590
        %6725 = vst [vmem:[%s423 + $0x178] sm:$0xff] %v6595
        %6726 = vst [vmem:[%s423 + $0x180] sm:$0xff] %v6600
        %6727 = vst [vmem:[%s423 + $0x188] sm:$0xff] %v6605
        %6728 = vst [vmem:[%s423 + $0x190] sm:$0xff] %v6610
        %6729 = vst [vmem:[%s423 + $0x198] sm:$0xff] %v6615
        %6730 = vst [vmem:[%s423 + $0x1a0] sm:$0xff] %v6620
        %6731 = vst [vmem:[%s423 + $0x1a8] sm:$0xff] %v6625
        %6732 = vst [vmem:[%s423 + $0x1b0] sm:$0xff] %v6630
        %6733 = vst [vmem:[%s423 + $0x1b8] sm:$0xff] %v6635
        %6734 = vst [vmem:[%s423 + $0x1c0] sm:$0xff] %v6640
        %6735 = vst [vmem:[%s423 + $0x1c8] sm:$0xff] %v6645
        %6736 = vst [vmem:[%s423 + $0x1d0] sm:$0xff] %v6650
        %6737 = vst [vmem:[%s423 + $0x1d8] sm:$0xff] %v6655
        %6738 = vst [vmem:[%s423 + $0x1e0] sm:$0xff] %v6660
        %6739 = vst [vmem:[%s423 + $0x1e8] sm:$0xff] %v6665
        %6740 = vst [vmem:[%s423 + $0x1f0] sm:$0xff] %v6670
        %6741 = vst [vmem:[%s423 + $0x1f8] sm:$0xff] %v6675
        %s6742 = sand.u32 %s296, 1
        %s6743 = scalar_lea.sflag [#allocation3], %s6742
        %s6744 = sand.u32 %s296, 1
        %s6745 = smul.addr %s6744, 512
        %s6746 = scalar_lea.vmem [#allocation2], %s6745
        // Predicated region
        $region69: #{tpu_custom_call.1} parent=67 // pred_check
          %p6747 = pneg %p306
        $region70: #{tpu_custom_call.1} parent=67 // pred_check_branch
          %6749 = sbr.rel (%p6747) target = $region72
        $region71: #{tpu_custom_call.1} parent=67 // pred_region
          %s6750 = smul.u32 64, %s26
          %s6752 = ssub.s32 8192, 8192
          %6753 = vsyncadd %s6743, %s6752
          %s6754 = smul.addr %s6750, 128
          %s6755 = scalar_lea.hbm %s12, %s6754
          %s6756 = sshll.u32 %s6746, 4
          %s6757 = int_to_ptr.vmem [resolvable:$true] %s6756
          %6762 = dma.vmem_to_hbm [thread:$0]  %s6757, 8192, %s6755, %s6743, 128, 128, 8
        $region72: #{tpu_custom_call.1} parent=67 // pred_fallthru
          _
      $region68: #{tpu_custom_call.1} parent=5 // pred_fallthru
        _
      %p6763 = scmp.le.s32.totalorder 2, %s21
      // Predicated region
      $region73: #{tpu_custom_call.1} parent=5 // pred_check
        %p6764 = pneg %p6763
      $region74: #{tpu_custom_call.1} parent=5 // pred_check_branch
        %6766 = sbr.rel (%p6764) target = $region76
      $region75: #{tpu_custom_call.1} parent=5 // pred_region
        %s6767 = ssub.s32 %s21, 2
        // Predicated region
        $region77: #{tpu_custom_call.1} parent=75 // pred_check
          %p6768 = pneg %p312
        $region78: #{tpu_custom_call.1} parent=75 // pred_check_branch
          %6770 = sbr.rel (%p6768) target = $region80
        $region79: #{tpu_custom_call.1} parent=75 // pred_region
          %s6771 = sand.u32 %s297, 1
          %s6772 = scalar_lea.sflag [#allocation3], %s6771
          %s6773 = sand.u32 %s297, 1
          %s6774 = smul.addr %s6773, 512
          %s6775 = scalar_lea.vmem [#allocation2], %s6774
          %6776 = dma.done %s6772, 8192
        $region80: #{tpu_custom_call.1} parent=75 // pred_fallthru
          _
      $region76: #{tpu_custom_call.1} parent=5 // pred_fallthru
        _
    $region6: #{tpu_custom_call.1} parent=1 // loop_footer
      %s25 = sadd.s32 1, %s21
    $region7: #{tpu_custom_call.1} parent=1 // loop_footer_branch
      %20 = sbr.rel target = $region3
    $region8: #{tpu_custom_call.1} parent=1 // loop_exit
      _
    %6777 = vsyncpa [#allocation3], 1
    %s6778 = scalar_lea.sflag [#allocation3], 1
    %6779 = vsyncpa %s6778, 1

</llo_original>
